<compile_context>
chip_gen: v5e
topology: v5e:2x2
jax: 0.10.0
libtpu: 0.0.40
codegen_flags: <defaults>
</compile_context>

<pallas_src>
import functools

import jax
import jax.numpy as jnp
from jax.experimental import pallas as pl
from jax.experimental.pallas import tpu as pltpu

EPS = 1e-5
NEG_SLOPE = 0.01
LANE = 128                 # pad output channels to a multiple of this
ROW_ALIGN = 32             # row-tile granularity (safe for f32 & bf16 packing)
MAX_CONV_TILE = 2048
MAX_ELEM_TILE = 8192


def _round_up(x, m):
    return (x + m - 1) // m * m


@functools.lru_cache(maxsize=1)
def _vmem_sizes():
    """Generation-aware (working-set budget, scoped vmem limit) in bytes."""
    phys = 128 * 1024 * 1024
    try:
        phys = int(getattr(pltpu.get_tpu_info(), "vmem_capacity_bytes", phys))
    except Exception:
        pass
    limit = min(phys * 3 // 4, 96 * 1024 * 1024)   # ~48 MiB on v7x, ~96 MiB on v5e/v6e
    return limit // 2, limit


def _choose_conv_tile(s, k, cpad, budget):
    """Rows per conv1 tile: double-buffered bf16 patches + bf16 y streams."""
    s_cap = _round_up(max(s, 1), ROW_ALIGN)
    weight_live = 2 * k * cpad * 2                      # double-buffered bf16 weights
    rem = max(budget - weight_live, 4 * ROW_ALIGN * (k + cpad))
    per_row = 2 * (k * 2 + cpad * 2)
    t = min(rem // per_row, MAX_CONV_TILE, s_cap)
    t -= t % ROW_ALIGN
    return int(max(t, ROW_ALIGN))


def _choose_elem_tile(s, cpad, cin, budget):
    """Rows per tile for the elementwise (norm+act+residual) pass: no K operand,
    so it gets a much larger tile than the conv pass."""
    s_cap = _round_up(max(s, 1), ROW_ALIGN)
    per_row = 2 * (cpad * 2 + cin * 2 + cpad * 4)
    t = min(budget // per_row, MAX_ELEM_TILE, s_cap)
    t -= t % ROW_ALIGN
    return int(max(t, ROW_ALIGN))


# ---------------------------------------------------------------------------
# conv1 only: channels-last im2col.  Column order is (kd, kh, kw, C), matching
# weights reshaped as transpose(w, (2,3,4,1,0)).reshape(27*Cin, Cout).
# conv1's output volume is 8x downsampled, so this blow-up is ~3.4x of the
# input volume (not 27x) — acceptable; conv2 uses the plane kernel below.
# ---------------------------------------------------------------------------
def im2col_ndhwc(x, k, stride, pad):
    N, D, H, W, C = x.shape
    xp = jnp.pad(x, ((0, 0), (pad, pad), (pad, pad), (pad, pad), (0, 0)))
    Do = (D + 2 * pad - k) // stride + 1
    Ho = (H + 2 * pad - k) // stride + 1
    Wo = (W + 2 * pad - k) // stride + 1
    slabs = []
    for kd in range(k):
        for kh in range(k):
            for kw in range(k):
                sl = xp[:, kd:kd + stride * Do:stride,
                        kh:kh + stride * Ho:stride,
                        kw:kw + stride * Wo:stride, :]
                slabs.append(sl.reshape(N, Do * Ho * Wo, C))
    return jnp.concatenate(slabs, axis=-1), (Do, Ho, Wo)


# ---------------------------------------------------------------------------
# conv1 pass: tiled im2col matmul.  Stats are accumulated on the PRE-BIAS f32
# dot result (shift-invariant variance, padded rows contribute exactly 0),
# then the bias is added and the result is stored as bf16.
# ---------------------------------------------------------------------------
def _conv_stats_kernel(p_ref, w_ref, b_ref, y_ref, sum_ref, ssq_ref):
    s_idx = pl.program_id(1)

    @pl.when(s_idx == 0)
    def _():
        sum_ref[...] = jnp.zeros_like(sum_ref)
        ssq_ref[...] = jnp.zeros_like(ssq_ref)

    acc = jnp.dot(p_ref[0], w_ref[...], preferred_element_type=jnp.float32)
    sum_ref[0] += jnp.sum(acc, axis=0, keepdims=True)
    ssq_ref[0] += jnp.sum(acc * acc, axis=0, keepdims=True)
    y_ref[0] = (acc + b_ref[...]).astype(y_ref.dtype)


def conv_stats_call(patches, w, b, tile_s, vmem_limit):
    N, S1, K = patches.shape
    Cpad = w.shape[1]
    grid = (N, S1 // tile_s)
    flops = 2 * N * S1 * K * Cpad
    bytes_accessed = (N * S1 * K * 2 + K * Cpad * 2 +
                      N * S1 * Cpad * 2 + 2 * N * Cpad * 4)
    return pl.pallas_call(
        _conv_stats_kernel,
        out_shape=(
            jax.ShapeDtypeStruct((N, S1, Cpad), jnp.bfloat16),   # y (conv + bias)
            jax.ShapeDtypeStruct((N, 1, Cpad), jnp.float32),     # sum (pre-bias)
            jax.ShapeDtypeStruct((N, 1, Cpad), jnp.float32),     # sum of squares
        ),
        grid=grid,
        in_specs=[
            pl.BlockSpec((1, tile_s, K), lambda n, s: (n, s, 0)),
            pl.BlockSpec((K, Cpad), lambda n, s: (0, 0)),
            pl.BlockSpec((1, Cpad), lambda n, s: (0, 0)),
        ],
        out_specs=(
            pl.BlockSpec((1, tile_s, Cpad), lambda n, s: (n, s, 0)),
            pl.BlockSpec((1, 1, Cpad), lambda n, s: (n, 0, 0)),
            pl.BlockSpec((1, 1, Cpad), lambda n, s: (n, 0, 0)),
        ),
        compiler_params=pltpu.CompilerParams(
            dimension_semantics=("parallel", "arbitrary"),
            vmem_limit_bytes=vmem_limit),
        cost_estimate=pl.CostEstimate(flops=int(flops), transcendentals=0,
                                      bytes_accessed=int(bytes_accessed)),
    )(patches, w, b)


# ---------------------------------------------------------------------------
# conv2 pass: stride-1 3x3x3 conv as a plane kernel (no im2col).
# Input y1w: (N, Do+2, (Ho+2)*Wo, 3*Cpad) bf16 — the normalized+activated
# conv1 output, zero-padded spatially by 1 and W-unrolled (the 3 kw taps are
# concatenated along channels).  The 3 kd taps come in as 3 shifted D-plane
# streams (index maps d+kd), the 3 kh taps are contiguous row slices
# [kh*Wo : (kh+Ho)*Wo) of the resident plane.  9 MXU matmuls accumulate in
# f32; stats are taken pre-bias; y2 is stored bf16.
# ---------------------------------------------------------------------------
def _conv2_plane_kernel(p0_ref, p1_ref, p2_ref, w_ref, b_ref,
                        y_ref, sum_ref, ssq_ref, *, Ho, Wo):
    d = pl.program_id(1)

    @pl.when(d == 0)
    def _():
        sum_ref[...] = jnp.zeros_like(sum_ref)
        ssq_ref[...] = jnp.zeros_like(ssq_ref)

    planes = (p0_ref, p1_ref, p2_ref)
    acc = None
    for kd in range(3):
        for kh in range(3):
            xk = planes[kd][0, 0, kh * Wo:(kh + Ho) * Wo, :]      # (Ho*Wo, 3*Cpad)
            t = jnp.dot(xk, w_ref[kd, kh], preferred_element_type=jnp.float32)
            acc = t if acc is None else acc + t

    sum_ref[0] += jnp.sum(acc, axis=0, keepdims=True)
    ssq_ref[0] += jnp.sum(acc * acc, axis=0, keepdims=True)
    y_ref[0, 0] = (acc + b_ref[...]).astype(y_ref.dtype)


def conv2_plane_call(y1w, w2k, b2, Do, Ho, Wo, vmem_limit):
    N, Dp2, R2, K3 = y1w.shape          # K3 = 3*Cpad, R2 = (Ho+2)*Wo
    Cpad = w2k.shape[-1]
    R = Ho * Wo
    grid = (N, Do)
    kern = functools.partial(_conv2_plane_kernel, Ho=Ho, Wo=Wo)
    flops = 2 * N * Do * 9 * R * K3 * Cpad
    bytes_accessed = (3 * N * Do * R2 * K3 * 2 + 9 * K3 * Cpad * 2 +
                      N * Do * R * Cpad * 2 + 2 * N * Cpad * 4)
    plane_specs = [
        pl.BlockSpec((1, 1, R2, K3), lambda n, d, kd=kd: (n, d + kd, 0, 0))
        for kd in range(3)
    ]
    return pl.pallas_call(
        kern,
        out_shape=(
            jax.ShapeDtypeStruct((N, Do, R, Cpad), jnp.bfloat16),  # y2 (conv + bias)
            jax.ShapeDtypeStruct((N, 1, Cpad), jnp.float32),       # sum (pre-bias)
            jax.ShapeDtypeStruct((N, 1, Cpad), jnp.float32),       # sum of squares
        ),
        grid=grid,
        in_specs=plane_specs + [
            pl.BlockSpec((3, 3, K3, Cpad), lambda n, d: (0, 0, 0, 0)),
            pl.BlockSpec((1, Cpad), lambda n, d: (0, 0)),
        ],
        out_specs=(
            pl.BlockSpec((1, 1, R, Cpad), lambda n, d: (n, d, 0, 0)),
            pl.BlockSpec((1, 1, Cpad), lambda n, d: (n, 0, 0)),
            pl.BlockSpec((1, 1, Cpad), lambda n, d: (n, 0, 0)),
        ),
        compiler_params=pltpu.CompilerParams(
            dimension_semantics=("parallel", "arbitrary"),
            vmem_limit_bytes=vmem_limit),
        cost_estimate=pl.CostEstimate(flops=int(flops), transcendentals=0,
                                      bytes_accessed=int(bytes_accessed)),
    )(y1w, y1w, y1w, w2k, b2)


# ---------------------------------------------------------------------------
# Final pass: normalize + LeakyReLU + fused residual 1x1 matmul + add.
# ---------------------------------------------------------------------------
def _norm_act_res_kernel(y_ref, mean_ref, rstd_ref, xds_ref, wr_ref, o_ref):
    yn = (y_ref[0].astype(jnp.float32) - mean_ref[0]) * rstd_ref[0]
    act = jnp.where(yn >= 0, yn, NEG_SLOPE * yn)
    res = jnp.dot(xds_ref[0], wr_ref[...], preferred_element_type=jnp.float32)
    o_ref[0] = (act + res).astype(o_ref.dtype)


def norm_act_res_call(y, mean, rstd, x_ds, wr, tile_s, vmem_limit):
    N, S2, Cpad = y.shape
    Cin = x_ds.shape[-1]
    grid = (N, S2 // tile_s)
    flops = 2 * N * S2 * Cin * Cpad + 5 * N * S2 * Cpad
    bytes_accessed = (N * S2 * Cpad * (2 + 4) + N * S2 * Cin * 2 +
                      Cin * Cpad * 2 + 2 * N * Cpad * 4)
    return pl.pallas_call(
        _norm_act_res_kernel,
        out_shape=jax.ShapeDtypeStruct((N, S2, Cpad), jnp.float32),
        grid=grid,
        in_specs=[
            pl.BlockSpec((1, tile_s, Cpad), lambda n, s: (n, s, 0)),
            pl.BlockSpec((1, 1, Cpad), lambda n, s: (n, 0, 0)),
            pl.BlockSpec((1, 1, Cpad), lambda n, s: (n, 0, 0)),
            pl.BlockSpec((1, tile_s, Cin), lambda n, s: (n, s, 0)),
            pl.BlockSpec((Cin, Cpad), lambda n, s: (0, 0)),
        ],
        out_specs=pl.BlockSpec((1, tile_s, Cpad), lambda n, s: (n, s, 0)),
        compiler_params=pltpu.CompilerParams(
            dimension_semantics=("parallel", "parallel"),
            vmem_limit_bytes=vmem_limit),
        cost_estimate=pl.CostEstimate(flops=int(flops), transcendentals=0,
                                      bytes_accessed=int(bytes_accessed)),
    )(y, mean, rstd, x_ds, wr)


# ---------------------------------------------------------------------------
# Full DownsamplingBlock forward.
# ---------------------------------------------------------------------------
def downsampling_block_forward(x, params):
    """x: (N, Cin, D, H, W) f32 -> (N, Cout, D//2, H//2, W//2) f32."""
    w1, b1, w2, b2, wr = params
    N, Cin, D, H, W = x.shape
    Cout = w1.shape[0]
    Cpad = _round_up(Cout, LANE)
    budget, vlimit = _vmem_sizes()

    x_cl = jnp.transpose(x, (0, 2, 3, 4, 1))              # channels-last

    # ---------------- conv1: k=3, stride=2, pad=1 (im2col path) ------------
    p1, (Do, Ho, Wo) = im2col_ndhwc(x_cl, 3, 2, 1)        # (N, S, 27*Cin)
    S = Do * Ho * Wo
    K1 = 27 * Cin
    tile_s1 = _choose_conv_tile(S, K1, Cpad, budget)
    S1 = _round_up(S, tile_s1)
    p1 = jnp.pad(p1, ((0, 0), (0, S1 - S), (0, 0))).astype(jnp.bfloat16)

    w1_flat = jnp.transpose(w1, (2, 3, 4, 1, 0)).reshape(K1, Cout)
    w1_flat = jnp.pad(w1_flat, ((0, 0), (0, Cpad - Cout))).astype(jnp.bfloat16)
    b1_pad = jnp.pad(b1, (0, Cpad - Cout)).reshape(1, Cpad).astype(jnp.float32)

    y1, s1, q1 = conv_stats_call(p1, w1_flat, b1_pad, tile_s1, vlimit)
    m1 = s1 / S                                           # pre-bias mean
    var1 = jnp.maximum(q1 / S - m1 * m1, 0.0)             # shift-invariant
    mean1 = m1 + b1_pad                                   # fold bias back in
    rstd1 = jax.lax.rsqrt(var1 + EPS)

    # ---- conv1 norm + LeakyReLU fused into conv2's input construction -----
    y1v = y1[:, :S, :].astype(jnp.float32)
    y1n = (y1v - mean1) * rstd1
    y1n = jnp.where(y1n >= 0, y1n, NEG_SLOPE * y1n).astype(jnp.bfloat16)
    y1n = y1n.reshape(N, Do, Ho, Wo, Cpad)

    # zero-pad spatially by 1 and W-unroll the 3 kw taps into channels
    ypad = jnp.pad(y1n, ((0, 0), (1, 1), (1, 1), (1, 1), (0, 0)))
    y1w = jnp.concatenate([ypad[:, :, :, kw:kw + Wo, :] for kw in range(3)],
                          axis=-1)                        # (N, Do+2, Ho+2, Wo, 3*Cpad)
    y1w = y1w.reshape(N, Do + 2, (Ho + 2) * Wo, 3 * Cpad)

    # ---------------- conv2: k=3, stride=1, pad=1 (plane kernel) ------------
    w2k = jnp.transpose(w2, (2, 3, 4, 1, 0))              # (3,3,3,Cout,Cout)
    w2k = jnp.pad(w2k, ((0, 0), (0, 0), (0, 0),
                        (0, Cpad - Cout), (0, Cpad - Cout)))
    w2k = w2k.reshape(3, 3, 3 * Cpad, Cpad).astype(jnp.bfloat16)
    b2_pad = jnp.pad(b2, (0, Cpad - Cout)).reshape(1, Cpad).astype(jnp.float32)

    y2, s2, q2 = conv2_plane_call(y1w, w2k, b2_pad, Do, Ho, Wo, vlimit)
    m2 = s2 / S
    var2 = jnp.maximum(q2 / S - m2 * m2, 0.0)
    mean2 = m2 + b2_pad
    rstd2 = jax.lax.rsqrt(var2 + EPS)

    # ------ residual: 1x1 conv, stride 2, no bias (centre-tap subsample) ----
    x_ds = x_cl[:, ::2, ::2, ::2, :].reshape(N, S, Cin).astype(jnp.bfloat16)
    wr_flat = jnp.pad(wr.reshape(Cout, Cin).T,
                      ((0, 0), (0, Cpad - Cout))).astype(jnp.bfloat16)

    # ------ normalize + LeakyReLU + residual (large elementwise tile) -------
    tile_e = _choose_elem_tile(S, Cpad, Cin, budget)
    S2 = _round_up(S, tile_e)
    y2f = jnp.pad(y2.reshape(N, S, Cpad), ((0, 0), (0, S2 - S), (0, 0)))
    x_ds = jnp.pad(x_ds, ((0, 0), (0, S2 - S), (0, 0)))

    out = norm_act_res_call(y2f, mean2, rstd2, x_ds, wr_flat, tile_e, vlimit)

    out = out[:, :S, :Cout].reshape(N, Do, Ho, Wo, Cout)
    # TODO(synk): skip this transpose when the consumer is the next Pallas block.
    return jnp.transpose(out, (0, 4, 1, 2, 3))            # back to NCDHW


def init_params(key, in_channels, out_channels):
    k1, k2, k3, k4, k5 = jax.random.split(key, 5)
    w1 = 0.1 * jax.random.normal(k1, (out_channels, in_channels, 3, 3, 3), jnp.float32)
    b1 = 0.1 * jax.random.normal(k2, (out_channels,), jnp.float32)
    w2 = 0.1 * jax.random.normal(k3, (out_channels, out_channels, 3, 3, 3), jnp.float32)
    b2 = 0.1 * jax.random.normal(k4, (out_channels,), jnp.float32)
    wr = 0.1 * jax.random.normal(k5, (out_channels, in_channels, 1, 1, 1), jnp.float32)
    return (w1, b1, w2, b2, wr)


if __name__ == "__main__":
    key = jax.random.PRNGKey(0)
    kx, kp = jax.random.split(key)

    N, Cin, Cout = 2, 4, 8
    D = H = W = 8
    x = jax.random.normal(kx, (N, Cin, D, H, W), jnp.float32)
    params = init_params(kp, Cin, Cout)

    out = jax.jit(downsampling_block_forward)(x, params)
    out = jax.block_until_ready(out)
    assert out.shape == (N, Cout, D // 2, H // 2, W // 2), out.shape
    assert bool(jnp.all(jnp.isfinite(out)))
    print("KERNEL_OK")
</pallas_src>

<mosaic_0001>
module attributes {stable_mosaic.version = 11 : i64} {
  func.func @_conv_stats_kernel(%arg0: i32, %arg1: i32, %arg2: memref<1x64x108xbf16, #tpu.memory_space<vmem>>, %arg3: memref<108x128xbf16, #tpu.memory_space<vmem>>, %arg4: memref<1x128xf32, #tpu.memory_space<vmem>>, %arg5: memref<1x64x128xbf16, #tpu.memory_space<vmem>>, %arg6: memref<1x1x128xf32, #tpu.memory_space<vmem>>, %arg7: memref<1x1x128xf32, #tpu.memory_space<vmem>>) attributes {dimension_semantics = [#tpu.dimension_semantics<parallel>, #tpu.dimension_semantics<arbitrary>], iteration_bounds = array<i64: 2, 1>, scalar_prefetch = 0 : i64, scratch_operands = 0 : i64, tpu.core_type = #tpu.core_type<tc>, window_params = [{transform_indices = @transform_0, window_bounds = array<i64: 1, 64, 108>}, {pipeline_mode = #tpu.pipeline_mode<synchronous>, transform_indices = @transform_1, window_bounds = array<i64: 108, 128>}, {pipeline_mode = #tpu.pipeline_mode<synchronous>, transform_indices = @transform_2, window_bounds = array<i64: 1, 128>}, {transform_indices = @transform_3, window_bounds = array<i64: 1, 64, 128>}, {transform_indices = @transform_4, window_bounds = array<i64: 1, 1, 128>}, {transform_indices = @transform_5, window_bounds = array<i64: 1, 1, 128>}]} {
    %c0_i32 = arith.constant 0 : i32
    %0 = arith.cmpi eq, %arg1, %c0_i32 : i32
    %1 = arith.extui %0 : i1 to i32
    %c0_i32_0 = arith.constant 0 : i32
    %2 = arith.cmpi ne, %1, %c0_i32_0 : i32
    scf.if %2 {
      %cst_24 = arith.constant 0.000000e+00 : f32
      %31 = vector.broadcast %cst_24 : f32 to vector<1x1x128xf32>
      %c0_25 = arith.constant 0 : index
      %c0_26 = arith.constant 0 : index
      %c0_27 = arith.constant 0 : index
      %32 = vector.load %arg6[%c0_25, %c0_26, %c0_27] : memref<1x1x128xf32, #tpu.memory_space<vmem>>, vector<1x1x128xf32>
      tpu.vector_store %arg6[%c0_25, %c0_26, %c0_27], %31 {strides = array<i32>} : memref<1x1x128xf32, #tpu.memory_space<vmem>>, vector<1x1x128xf32>,
      %cst_28 = arith.constant 0.000000e+00 : f32
      %33 = vector.broadcast %cst_28 : f32 to vector<1x1x128xf32>
      %c0_29 = arith.constant 0 : index
      %c0_30 = arith.constant 0 : index
      %c0_31 = arith.constant 0 : index
      %34 = vector.load %arg7[%c0_29, %c0_30, %c0_31] : memref<1x1x128xf32, #tpu.memory_space<vmem>>, vector<1x1x128xf32>
      tpu.vector_store %arg7[%c0_29, %c0_30, %c0_31], %33 {strides = array<i32>} : memref<1x1x128xf32, #tpu.memory_space<vmem>>, vector<1x1x128xf32>,
    } else {
    }
    %c0 = arith.constant 0 : index
    %c0_1 = arith.constant 0 : index
    %c0_2 = arith.constant 0 : index
    %3 = vector.load %arg2[%c0, %c0_1, %c0_2] : memref<1x64x108xbf16, #tpu.memory_space<vmem>>, vector<1x64x108xbf16>
    %4 = vector.shape_cast %3 : vector<1x64x108xbf16> to vector<64x108xbf16>
    %c0_3 = arith.constant 0 : index
    %c0_4 = arith.constant 0 : index
    %5 = vector.load %arg3[%c0_3, %c0_4] : memref<108x128xbf16, #tpu.memory_space<vmem>>, vector<108x128xbf16>
    %cst = arith.constant dense<0.000000e+00> : vector<64x128xf32>
    %6 = tpu.matmul %4, %5, %cst {dimension_numbers = #tpu.dot_dimension_numbers<[1], [0], [0], [1], [0, 0, 1, 1], [], []>} : vector<64x108xbf16>, vector<108x128xbf16>, vector<64x128xf32> -> vector<64x128xf32>
    %c0_5 = arith.constant 0 : index
    %c0_6 = arith.constant 0 : index
    %c0_7 = arith.constant 0 : index
    %7 = vector.load %arg6[%c0_5, %c0_6, %c0_7] : memref<1x1x128xf32, #tpu.memory_space<vmem>>, vector<1x1x128xf32>
    %8 = vector.shape_cast %7 : vector<1x1x128xf32> to vector<1x128xf32>
    %cst_8 = arith.constant dense<0.000000e+00> : vector<128xf32>
    %9 = vector.multi_reduction <add>, %6, %cst_8 [0] : vector<64x128xf32> to vector<128xf32>
    %10 = vector.shape_cast %9 : vector<128xf32> to vector<1x128xf32>
    %11 = arith.addf %8, %10 : vector<1x128xf32>
    %c0_9 = arith.constant 0 : index
    %c0_10 = arith.constant 0 : index
    %c0_11 = arith.constant 0 : index
    %12 = vector.load %arg6[%c0_9, %c0_10, %c0_11] : memref<1x1x128xf32, #tpu.memory_space<vmem>>, vector<1x1x128xf32>
    %13 = vector.shape_cast %12 : vector<1x1x128xf32> to vector<1x128xf32>
    %14 = vector.shape_cast %11 : vector<1x128xf32> to vector<1x1x128xf32>
    tpu.vector_store %arg6[%c0_9, %c0_10, %c0_11], %14 {strides = array<i32>} : memref<1x1x128xf32, #tpu.memory_space<vmem>>, vector<1x1x128xf32>,
    %c0_12 = arith.constant 0 : index
    %c0_13 = arith.constant 0 : index
    %c0_14 = arith.constant 0 : index
    %15 = vector.load %arg7[%c0_12, %c0_13, %c0_14] : memref<1x1x128xf32, #tpu.memory_space<vmem>>, vector<1x1x128xf32>
    %16 = vector.shape_cast %15 : vector<1x1x128xf32> to vector<1x128xf32>
    %17 = arith.mulf %6, %6 : vector<64x128xf32>
    %cst_15 = arith.constant dense<0.000000e+00> : vector<128xf32>
    %18 = vector.multi_reduction <add>, %17, %cst_15 [0] : vector<64x128xf32> to vector<128xf32>
    %19 = vector.shape_cast %18 : vector<128xf32> to vector<1x128xf32>
    %20 = arith.addf %16, %19 : vector<1x128xf32>
    %c0_16 = arith.constant 0 : index
    %c0_17 = arith.constant 0 : index
    %c0_18 = arith.constant 0 : index
    %21 = vector.load %arg7[%c0_16, %c0_17, %c0_18] : memref<1x1x128xf32, #tpu.memory_space<vmem>>, vector<1x1x128xf32>
    %22 = vector.shape_cast %21 : vector<1x1x128xf32> to vector<1x128xf32>
    %23 = vector.shape_cast %20 : vector<1x128xf32> to vector<1x1x128xf32>
    tpu.vector_store %arg7[%c0_16, %c0_17, %c0_18], %23 {strides = array<i32>} : memref<1x1x128xf32, #tpu.memory_space<vmem>>, vector<1x1x128xf32>,
    %c0_19 = arith.constant 0 : index
    %c0_20 = arith.constant 0 : index
    %24 = vector.load %arg4[%c0_19, %c0_20] : memref<1x128xf32, #tpu.memory_space<vmem>>, vector<1x128xf32>
    %25 = vector.broadcast %24 : vector<1x128xf32> to vector<64x128xf32>
    %26 = arith.addf %6, %25 : vector<64x128xf32>
    %27 = arith.truncf %26 : vector<64x128xf32> to vector<64x128xbf16>
    %c0_21 = arith.constant 0 : index
    %c0_22 = arith.constant 0 : index
    %c0_23 = arith.constant 0 : index
    %28 = vector.load %arg5[%c0_21, %c0_22, %c0_23] : memref<1x64x128xbf16, #tpu.memory_space<vmem>>, vector<1x64x128xbf16>
    %29 = vector.shape_cast %28 : vector<1x64x128xbf16> to vector<64x128xbf16>
    %30 = vector.shape_cast %27 : vector<64x128xbf16> to vector<1x64x128xbf16>
    tpu.vector_store %arg5[%c0_21, %c0_22, %c0_23], %30 {strides = array<i32>} : memref<1x64x128xbf16, #tpu.memory_space<vmem>>, vector<1x64x128xbf16>,
    return
  }
  func.func @transform_0(%arg0: i32, %arg1: i32) -> (i32, i32, i32) {
    %c0_i32 = arith.constant 0 : i32
    %c0_i32_0 = arith.constant 0 : i32
    return %arg0, %arg1, %c0_i32 : i32, i32, i32
  }
  func.func @transform_1(%arg0: i32, %arg1: i32) -> (i32, i32) {
    %c0_i32 = arith.constant 0 : i32
    %c0_i32_0 = arith.constant 0 : i32
    %c0_i32_1 = arith.constant 0 : i32
    return %c0_i32, %c0_i32_0 : i32, i32
  }
  func.func @transform_2(%arg0: i32, %arg1: i32) -> (i32, i32) {
    %c0_i32 = arith.constant 0 : i32
    %c0_i32_0 = arith.constant 0 : i32
    %c0_i32_1 = arith.constant 0 : i32
    return %c0_i32, %c0_i32_0 : i32, i32
  }
  func.func @transform_3(%arg0: i32, %arg1: i32) -> (i32, i32, i32) {
    %c0_i32 = arith.constant 0 : i32
    %c0_i32_0 = arith.constant 0 : i32
    return %arg0, %arg1, %c0_i32 : i32, i32, i32
  }
  func.func @transform_4(%arg0: i32, %arg1: i32) -> (i32, i32, i32) {
    %c0_i32 = arith.constant 0 : i32
    %c0_i32_0 = arith.constant 0 : i32
    %c0_i32_1 = arith.constant 0 : i32
    return %arg0, %c0_i32, %c0_i32_0 : i32, i32, i32
  }
  func.func @transform_5(%arg0: i32, %arg1: i32) -> (i32, i32, i32) {
    %c0_i32 = arith.constant 0 : i32
    %c0_i32_0 = arith.constant 0 : i32
    %c0_i32_1 = arith.constant 0 : i32
    return %arg0, %c0_i32, %c0_i32_0 : i32, i32, i32
  }
}

module attributes {stable_mosaic.version = 11 : i64} {
  func.func @_conv2_plane_kernel(%arg0: i32, %arg1: i32, %arg2: memref<1x1x24x384xbf16, #tpu.memory_space<vmem>>, %arg3: memref<1x1x24x384xbf16, #tpu.memory_space<vmem>>, %arg4: memref<1x1x24x384xbf16, #tpu.memory_space<vmem>>, %arg5: memref<3x3x384x128xbf16, #tpu.memory_space<vmem>>, %arg6: memref<1x128xf32, #tpu.memory_space<vmem>>, %arg7: memref<1x1x16x128xbf16, #tpu.memory_space<vmem>>, %arg8: memref<1x1x128xf32, #tpu.memory_space<vmem>>, %arg9: memref<1x1x128xf32, #tpu.memory_space<vmem>>) attributes {dimension_semantics = [#tpu.dimension_semantics<parallel>, #tpu.dimension_semantics<arbitrary>], iteration_bounds = array<i64: 2, 4>, scalar_prefetch = 0 : i64, scratch_operands = 0 : i64, tpu.core_type = #tpu.core_type<tc>, window_params = [{transform_indices = @transform_0, window_bounds = array<i64: 1, 1, 24, 384>}, {transform_indices = @transform_1, window_bounds = array<i64: 1, 1, 24, 384>}, {transform_indices = @transform_2, window_bounds = array<i64: 1, 1, 24, 384>}, {pipeline_mode = #tpu.pipeline_mode<synchronous>, transform_indices = @transform_3, window_bounds = array<i64: 3, 3, 384, 128>}, {pipeline_mode = #tpu.pipeline_mode<synchronous>, transform_indices = @transform_4, window_bounds = array<i64: 1, 128>}, {transform_indices = @transform_5, window_bounds = array<i64: 1, 1, 16, 128>}, {transform_indices = @transform_6, window_bounds = array<i64: 1, 1, 128>}, {transform_indices = @transform_7, window_bounds = array<i64: 1, 1, 128>}]} {
    %c0_i32 = arith.constant 0 : i32
    %0 = arith.cmpi eq, %arg1, %c0_i32 : i32
    %1 = arith.extui %0 : i1 to i32
    %c0_i32_0 = arith.constant 0 : i32
    %2 = arith.cmpi ne, %1, %c0_i32_0 : i32
    scf.if %2 {
      %cst_96 = arith.constant 0.000000e+00 : f32
      %80 = vector.broadcast %cst_96 : f32 to vector<1x1x128xf32>
      %c0_97 = arith.constant 0 : index
      %c0_98 = arith.constant 0 : index
      %c0_99 = arith.constant 0 : index
      %81 = vector.load %arg8[%c0_97, %c0_98, %c0_99] : memref<1x1x128xf32, #tpu.memory_space<vmem>>, vector<1x1x128xf32>
      tpu.vector_store %arg8[%c0_97, %c0_98, %c0_99], %80 {strides = array<i32>} : memref<1x1x128xf32, #tpu.memory_space<vmem>>, vector<1x1x128xf32>,
      %cst_100 = arith.constant 0.000000e+00 : f32
      %82 = vector.broadcast %cst_100 : f32 to vector<1x1x128xf32>
      %c0_101 = arith.constant 0 : index
      %c0_102 = arith.constant 0 : index
      %c0_103 = arith.constant 0 : index
      %83 = vector.load %arg9[%c0_101, %c0_102, %c0_103] : memref<1x1x128xf32, #tpu.memory_space<vmem>>, vector<1x1x128xf32>
      tpu.vector_store %arg9[%c0_101, %c0_102, %c0_103], %82 {strides = array<i32>} : memref<1x1x128xf32, #tpu.memory_space<vmem>>, vector<1x1x128xf32>,
    } else {
    }
    %c0 = arith.constant 0 : index
    %c0_1 = arith.constant 0 : index
    %c0_2 = arith.constant 0 : index
    %c0_3 = arith.constant 0 : index
    %3 = vector.load %arg2[%c0, %c0_1, %c0_2, %c0_3] : memref<1x1x24x384xbf16, #tpu.memory_space<vmem>>, vector<1x1x16x384xbf16>
    %4 = vector.shape_cast %3 : vector<1x1x16x384xbf16> to vector<16x384xbf16>
    %c0_4 = arith.constant 0 : index
    %c0_5 = arith.constant 0 : index
    %c0_6 = arith.constant 0 : index
    %c0_7 = arith.constant 0 : index
    %5 = vector.load %arg5[%c0_4, %c0_5, %c0_6, %c0_7] : memref<3x3x384x128xbf16, #tpu.memory_space<vmem>>, vector<1x1x384x128xbf16>
    %6 = vector.shape_cast %5 : vector<1x1x384x128xbf16> to vector<384x128xbf16>
    %cst = arith.constant dense<0.000000e+00> : vector<16x128xf32>
    %7 = tpu.matmul %4, %6, %cst {dimension_numbers = #tpu.dot_dimension_numbers<[1], [0], [0], [1], [0, 0, 1, 1], [], []>} : vector<16x384xbf16>, vector<384x128xbf16>, vector<16x128xf32> -> vector<16x128xf32>
    %c0_8 = arith.constant 0 : index
    %c0_9 = arith.constant 0 : index
    %c4 = arith.constant 4 : index
    %c0_10 = arith.constant 0 : index
    %8 = vector.load %arg2[%c0_8, %c0_9, %c4, %c0_10] : memref<1x1x24x384xbf16, #tpu.memory_space<vmem>>, vector<1x1x16x384xbf16>
    %9 = vector.shape_cast %8 : vector<1x1x16x384xbf16> to vector<16x384xbf16>
    %c0_11 = arith.constant 0 : index
    %c1 = arith.constant 1 : index
    %c0_12 = arith.constant 0 : index
    %c0_13 = arith.constant 0 : index
    %10 = vector.load %arg5[%c0_11, %c1, %c0_12, %c0_13] : memref<3x3x384x128xbf16, #tpu.memory_space<vmem>>, vector<1x1x384x128xbf16>
    %11 = vector.shape_cast %10 : vector<1x1x384x128xbf16> to vector<384x128xbf16>
    %cst_14 = arith.constant dense<0.000000e+00> : vector<16x128xf32>
    %12 = tpu.matmul %9, %11, %cst_14 {dimension_numbers = #tpu.dot_dimension_numbers<[1], [0], [0], [1], [0, 0, 1, 1], [], []>} : vector<16x384xbf16>, vector<384x128xbf16>, vector<16x128xf32> -> vector<16x128xf32>
    %13 = arith.addf %7, %12 : vector<16x128xf32>
    %c0_15 = arith.constant 0 : index
    %c0_16 = arith.constant 0 : index
    %c8 = arith.constant 8 : index
    %c0_17 = arith.constant 0 : index
    %14 = vector.load %arg2[%c0_15, %c0_16, %c8, %c0_17] : memref<1x1x24x384xbf16, #tpu.memory_space<vmem>>, vector<1x1x16x384xbf16>
    %15 = vector.shape_cast %14 : vector<1x1x16x384xbf16> to vector<16x384xbf16>
    %c0_18 = arith.constant 0 : index
    %c2 = arith.constant 2 : index
    %c0_19 = arith.constant 0 : index
    %c0_20 = arith.constant 0 : index
    %16 = vector.load %arg5[%c0_18, %c2, %c0_19, %c0_20] : memref<3x3x384x128xbf16, #tpu.memory_space<vmem>>, vector<1x1x384x128xbf16>
    %17 = vector.shape_cast %16 : vector<1x1x384x128xbf16> to vector<384x128xbf16>
    %cst_21 = arith.constant dense<0.000000e+00> : vector<16x128xf32>
    %18 = tpu.matmul %15, %17, %cst_21 {dimension_numbers = #tpu.dot_dimension_numbers<[1], [0], [0], [1], [0, 0, 1, 1], [], []>} : vector<16x384xbf16>, vector<384x128xbf16>, vector<16x128xf32> -> vector<16x128xf32>
    %19 = arith.addf %13, %18 : vector<16x128xf32>
    %c0_22 = arith.constant 0 : index
    %c0_23 = arith.constant 0 : index
    %c0_24 = arith.constant 0 : index
    %c0_25 = arith.constant 0 : index
    %20 = vector.load %arg3[%c0_22, %c0_23, %c0_24, %c0_25] : memref<1x1x24x384xbf16, #tpu.memory_space<vmem>>, vector<1x1x16x384xbf16>
    %21 = vector.shape_cast %20 : vector<1x1x16x384xbf16> to vector<16x384xbf16>
    %c1_26 = arith.constant 1 : index
    %c0_27 = arith.constant 0 : index
    %c0_28 = arith.constant 0 : index
    %c0_29 = arith.constant 0 : index
    %22 = vector.load %arg5[%c1_26, %c0_27, %c0_28, %c0_29] : memref<3x3x384x128xbf16, #tpu.memory_space<vmem>>, vector<1x1x384x128xbf16>
    %23 = vector.shape_cast %22 : vector<1x1x384x128xbf16> to vector<384x128xbf16>
    %cst_30 = arith.constant dense<0.000000e+00> : vector<16x128xf32>
    %24 = tpu.matmul %21, %23, %cst_30 {dimension_numbers = #tpu.dot_dimension_numbers<[1], [0], [0], [1], [0, 0, 1, 1], [], []>} : vector<16x384xbf16>, vector<384x128xbf16>, vector<16x128xf32> -> vector<16x128xf32>
    %25 = arith.addf %19, %24 : vector<16x128xf32>
    %c0_31 = arith.constant 0 : index
    %c0_32 = arith.constant 0 : index
    %c4_33 = arith.constant 4 : index
    %c0_34 = arith.constant 0 : index
    %26 = vector.load %arg3[%c0_31, %c0_32, %c4_33, %c0_34] : memref<1x1x24x384xbf16, #tpu.memory_space<vmem>>, vector<1x1x16x384xbf16>
    %27 = vector.shape_cast %26 : vector<1x1x16x384xbf16> to vector<16x384xbf16>
    %c1_35 = arith.constant 1 : index
    %c1_36 = arith.constant 1 : index
    %c0_37 = arith.constant 0 : index
    %c0_38 = arith.constant 0 : index
    %28 = vector.load %arg5[%c1_35, %c1_36, %c0_37, %c0_38] : memref<3x3x384x128xbf16, #tpu.memory_space<vmem>>, vector<1x1x384x128xbf16>
    %29 = vector.shape_cast %28 : vector<1x1x384x128xbf16> to vector<384x128xbf16>
    %cst_39 = arith.constant dense<0.000000e+00> : vector<16x128xf32>
    %30 = tpu.matmul %27, %29, %cst_39 {dimension_numbers = #tpu.dot_dimension_numbers<[1], [0], [0], [1], [0, 0, 1, 1], [], []>} : vector<16x384xbf16>, vector<384x128xbf16>, vector<16x128xf32> -> vector<16x128xf32>
    %31 = arith.addf %25, %30 : vector<16x128xf32>
    %c0_40 = arith.constant 0 : index
    %c0_41 = arith.constant 0 : index
    %c8_42 = arith.constant 8 : index
    %c0_43 = arith.constant 0 : index
    %32 = vector.load %arg3[%c0_40, %c0_41, %c8_42, %c0_43] : memref<1x1x24x384xbf16, #tpu.memory_space<vmem>>, vector<1x1x16x384xbf16>
    %33 = vector.shape_cast %32 : vector<1x1x16x384xbf16> to vector<16x384xbf16>
    %c1_44 = arith.constant 1 : index
    %c2_45 = arith.constant 2 : index
    %c0_46 = arith.constant 0 : index
    %c0_47 = arith.constant 0 : index
    %34 = vector.load %arg5[%c1_44, %c2_45, %c0_46, %c0_47] : memref<3x3x384x128xbf16, #tpu.memory_space<vmem>>, vector<1x1x384x128xbf16>
    %35 = vector.shape_cast %34 : vector<1x1x384x128xbf16> to vector<384x128xbf16>
    %cst_48 = arith.constant dense<0.000000e+00> : vector<16x128xf32>
    %36 = tpu.matmul %33, %35, %cst_48 {dimension_numbers = #tpu.dot_dimension_numbers<[1], [0], [0], [1], [0, 0, 1, 1], [], []>} : vector<16x384xbf16>, vector<384x128xbf16>, vector<16x128xf32> -> vector<16x128xf32>
    %37 = arith.addf %31, %36 : vector<16x128xf32>
    %c0_49 = arith.constant 0 : index
    %c0_50 = arith.constant 0 : index
    %c0_51 = arith.constant 0 : index
    %c0_52 = arith.constant 0 : index
    %38 = vector.load %arg4[%c0_49, %c0_50, %c0_51, %c0_52] : memref<1x1x24x384xbf16, #tpu.memory_space<vmem>>, vector<1x1x16x384xbf16>
    %39 = vector.shape_cast %38 : vector<1x1x16x384xbf16> to vector<16x384xbf16>
    %c2_53 = arith.constant 2 : index
    %c0_54 = arith.constant 0 : index
    %c0_55 = arith.constant 0 : index
    %c0_56 = arith.constant 0 : index
    %40 = vector.load %arg5[%c2_53, %c0_54, %c0_55, %c0_56] : memref<3x3x384x128xbf16, #tpu.memory_space<vmem>>, vector<1x1x384x128xbf16>
    %41 = vector.shape_cast %40 : vector<1x1x384x128xbf16> to vector<384x128xbf16>
    %cst_57 = arith.constant dense<0.000000e+00> : vector<16x128xf32>
    %42 = tpu.matmul %39, %41, %cst_57 {dimension_numbers = #tpu.dot_dimension_numbers<[1], [0], [0], [1], [0, 0, 1, 1], [], []>} : vector<16x384xbf16>, vector<384x128xbf16>, vector<16x128xf32> -> vector<16x128xf32>
    %43 = arith.addf %37, %42 : vector<16x128xf32>
    %c0_58 = arith.constant 0 : index
    %c0_59 = arith.constant 0 : index
    %c4_60 = arith.constant 4 : index
    %c0_61 = arith.constant 0 : index
    %44 = vector.load %arg4[%c0_58, %c0_59, %c4_60, %c0_61] : memref<1x1x24x384xbf16, #tpu.memory_space<vmem>>, vector<1x1x16x384xbf16>
    %45 = vector.shape_cast %44 : vector<1x1x16x384xbf16> to vector<16x384xbf16>
    %c2_62 = arith.constant 2 : index
    %c1_63 = arith.constant 1 : index
    %c0_64 = arith.constant 0 : index
    %c0_65 = arith.constant 0 : index
    %46 = vector.load %arg5[%c2_62, %c1_63, %c0_64, %c0_65] : memref<3x3x384x128xbf16, #tpu.memory_space<vmem>>, vector<1x1x384x128xbf16>
    %47 = vector.shape_cast %46 : vector<1x1x384x128xbf16> to vector<384x128xbf16>
    %cst_66 = arith.constant dense<0.000000e+00> : vector<16x128xf32>
    %48 = tpu.matmul %45, %47, %cst_66 {dimension_numbers = #tpu.dot_dimension_numbers<[1], [0], [0], [1], [0, 0, 1, 1], [], []>} : vector<16x384xbf16>, vector<384x128xbf16>, vector<16x128xf32> -> vector<16x128xf32>
    %49 = arith.addf %43, %48 : vector<16x128xf32>
    %c0_67 = arith.constant 0 : index
    %c0_68 = arith.constant 0 : index
    %c8_69 = arith.constant 8 : index
    %c0_70 = arith.constant 0 : index
    %50 = vector.load %arg4[%c0_67, %c0_68, %c8_69, %c0_70] : memref<1x1x24x384xbf16, #tpu.memory_space<vmem>>, vector<1x1x16x384xbf16>
    %51 = vector.shape_cast %50 : vector<1x1x16x384xbf16> to vector<16x384xbf16>
    %c2_71 = arith.constant 2 : index
    %c2_72 = arith.constant 2 : index
    %c0_73 = arith.constant 0 : index
    %c0_74 = arith.constant 0 : index
    %52 = vector.load %arg5[%c2_71, %c2_72, %c0_73, %c0_74] : memref<3x3x384x128xbf16, #tpu.memory_space<vmem>>, vector<1x1x384x128xbf16>
    %53 = vector.shape_cast %52 : vector<1x1x384x128xbf16> to vector<384x128xbf16>
    %cst_75 = arith.constant dense<0.000000e+00> : vector<16x128xf32>
    %54 = tpu.matmul %51, %53, %cst_75 {dimension_numbers = #tpu.dot_dimension_numbers<[1], [0], [0], [1], [0, 0, 1, 1], [], []>} : vector<16x384xbf16>, vector<384x128xbf16>, vector<16x128xf32> -> vector<16x128xf32>
    %55 = arith.addf %49, %54 : vector<16x128xf32>
    %c0_76 = arith.constant 0 : index
    %c0_77 = arith.constant 0 : index
    %c0_78 = arith.constant 0 : index
    %56 = vector.load %arg8[%c0_76, %c0_77, %c0_78] : memref<1x1x128xf32, #tpu.memory_space<vmem>>, vector<1x1x128xf32>
    %57 = vector.shape_cast %56 : vector<1x1x128xf32> to vector<1x128xf32>
    %cst_79 = arith.constant dense<0.000000e+00> : vector<128xf32>
    %58 = vector.multi_reduction <add>, %55, %cst_79 [0] : vector<16x128xf32> to vector<128xf32>
    %59 = vector.shape_cast %58 : vector<128xf32> to vector<1x128xf32>
    %60 = arith.addf %57, %59 : vector<1x128xf32>
    %c0_80 = arith.constant 0 : index
    %c0_81 = arith.constant 0 : index
    %c0_82 = arith.constant 0 : index
    %61 = vector.load %arg8[%c0_80, %c0_81, %c0_82] : memref<1x1x128xf32, #tpu.memory_space<vmem>>, vector<1x1x128xf32>
    %62 = vector.shape_cast %61 : vector<1x1x128xf32> to vector<1x128xf32>
    %63 = vector.shape_cast %60 : vector<1x128xf32> to vector<1x1x128xf32>
    tpu.vector_store %arg8[%c0_80, %c0_81, %c0_82], %63 {strides = array<i32>} : memref<1x1x128xf32, #tpu.memory_space<vmem>>, vector<1x1x128xf32>,
    %c0_83 = arith.constant 0 : index
    %c0_84 = arith.constant 0 : index
    %c0_85 = arith.constant 0 : index
    %64 = vector.load %arg9[%c0_83, %c0_84, %c0_85] : memref<1x1x128xf32, #tpu.memory_space<vmem>>, vector<1x1x128xf32>
    %65 = vector.shape_cast %64 : vector<1x1x128xf32> to vector<1x128xf32>
    %66 = arith.mulf %55, %55 : vector<16x128xf32>
    %cst_86 = arith.constant dense<0.000000e+00> : vector<128xf32>
    %67 = vector.multi_reduction <add>, %66, %cst_86 [0] : vector<16x128xf32> to vector<128xf32>
    %68 = vector.shape_cast %67 : vector<128xf32> to vector<1x128xf32>
    %69 = arith.addf %65, %68 : vector<1x128xf32>
    %c0_87 = arith.constant 0 : index
    %c0_88 = arith.constant 0 : index
    %c0_89 = arith.constant 0 : index
    %70 = vector.load %arg9[%c0_87, %c0_88, %c0_89] : memref<1x1x128xf32, #tpu.memory_space<vmem>>, vector<1x1x128xf32>
    %71 = vector.shape_cast %70 : vector<1x1x128xf32> to vector<1x128xf32>
    %72 = vector.shape_cast %69 : vector<1x128xf32> to vector<1x1x128xf32>
    tpu.vector_store %arg9[%c0_87, %c0_88, %c0_89], %72 {strides = array<i32>} : memref<1x1x128xf32, #tpu.memory_space<vmem>>, vector<1x1x128xf32>,
    %c0_90 = arith.constant 0 : index
    %c0_91 = arith.constant 0 : index
    %73 = vector.load %arg6[%c0_90, %c0_91] : memref<1x128xf32, #tpu.memory_space<vmem>>, vector<1x128xf32>
    %74 = vector.broadcast %73 : vector<1x128xf32> to vector<16x128xf32>
    %75 = arith.addf %55, %74 : vector<16x128xf32>
    %76 = arith.truncf %75 : vector<16x128xf32> to vector<16x128xbf16>
    %c0_92 = arith.constant 0 : index
    %c0_93 = arith.constant 0 : index
    %c0_94 = arith.constant 0 : index
    %c0_95 = arith.constant 0 : index
    %77 = vector.load %arg7[%c0_92, %c0_93, %c0_94, %c0_95] : memref<1x1x16x128xbf16, #tpu.memory_space<vmem>>, vector<1x1x16x128xbf16>
    %78 = vector.shape_cast %77 : vector<1x1x16x128xbf16> to vector<16x128xbf16>
    %79 = vector.shape_cast %76 : vector<16x128xbf16> to vector<1x1x16x128xbf16>
    tpu.vector_store %arg7[%c0_92, %c0_93, %c0_94, %c0_95], %79 {strides = array<i32>} : memref<1x1x16x128xbf16, #tpu.memory_space<vmem>>, vector<1x1x16x128xbf16>,
    return
  }
  func.func @transform_0(%arg0: i32, %arg1: i32) -> (i32, i32, i32, i32) {
    %c0_i32 = arith.constant 0 : i32
    %0 = arith.addi %arg1, %c0_i32 : i32
    %c0_i32_0 = arith.constant 0 : i32
    %c0_i32_1 = arith.constant 0 : i32
    %c0_i32_2 = arith.constant 0 : i32
    return %arg0, %0, %c0_i32_0, %c0_i32_1 : i32, i32, i32, i32
  }
  func.func @transform_1(%arg0: i32, %arg1: i32) -> (i32, i32, i32, i32) {
    %c1_i32 = arith.constant 1 : i32
    %0 = arith.addi %arg1, %c1_i32 : i32
    %c0_i32 = arith.constant 0 : i32
    %c0_i32_0 = arith.constant 0 : i32
    %c0_i32_1 = arith.constant 0 : i32
    return %arg0, %0, %c0_i32, %c0_i32_0 : i32, i32, i32, i32
  }
  func.func @transform_2(%arg0: i32, %arg1: i32) -> (i32, i32, i32, i32) {
    %c2_i32 = arith.constant 2 : i32
    %0 = arith.addi %arg1, %c2_i32 : i32
    %c0_i32 = arith.constant 0 : i32
    %c0_i32_0 = arith.constant 0 : i32
    %c0_i32_1 = arith.constant 0 : i32
    return %arg0, %0, %c0_i32, %c0_i32_0 : i32, i32, i32, i32
  }
  func.func @transform_3(%arg0: i32, %arg1: i32) -> (i32, i32, i32, i32) {
    %c0_i32 = arith.constant 0 : i32
    %c0_i32_0 = arith.constant 0 : i32
    %c0_i32_1 = arith.constant 0 : i32
    %c0_i32_2 = arith.constant 0 : i32
    %c0_i32_3 = arith.constant 0 : i32
    return %c0_i32, %c0_i32_0, %c0_i32_1, %c0_i32_2 : i32, i32, i32, i32
  }
  func.func @transform_4(%arg0: i32, %arg1: i32) -> (i32, i32) {
    %c0_i32 = arith.constant 0 : i32
    %c0_i32_0 = arith.constant 0 : i32
    %c0_i32_1 = arith.constant 0 : i32
    return %c0_i32, %c0_i32_0 : i32, i32
  }
  func.func @transform_5(%arg0: i32, %arg1: i32) -> (i32, i32, i32, i32) {
    %c0_i32 = arith.constant 0 : i32
    %c0_i32_0 = arith.constant 0 : i32
    %c0_i32_1 = arith.constant 0 : i32
    return %arg0, %arg1, %c0_i32, %c0_i32_0 : i32, i32, i32, i32
  }
  func.func @transform_6(%arg0: i32, %arg1: i32) -> (i32, i32, i32) {
    %c0_i32 = arith.constant 0 : i32
    %c0_i32_0 = arith.constant 0 : i32
    %c0_i32_1 = arith.constant 0 : i32
    return %arg0, %c0_i32, %c0_i32_0 : i32, i32, i32
  }
  func.func @transform_7(%arg0: i32, %arg1: i32) -> (i32, i32, i32) {
    %c0_i32 = arith.constant 0 : i32
    %c0_i32_0 = arith.constant 0 : i32
    %c0_i32_1 = arith.constant 0 : i32
    return %arg0, %c0_i32, %c0_i32_0 : i32, i32, i32
  }
}

module attributes {stable_mosaic.version = 11 : i64} {
  func.func @_norm_act_res_kernel(%arg0: i32, %arg1: i32, %arg2: memref<1x64x128xbf16, #tpu.memory_space<vmem>>, %arg3: memref<1x1x128xf32, #tpu.memory_space<vmem>>, %arg4: memref<1x1x128xf32, #tpu.memory_space<vmem>>, %arg5: memref<1x64x4xbf16, #tpu.memory_space<vmem>>, %arg6: memref<4x128xbf16, #tpu.memory_space<vmem>>, %arg7: memref<1x64x128xf32, #tpu.memory_space<vmem>>) attributes {dimension_semantics = [#tpu.dimension_semantics<parallel>, #tpu.dimension_semantics<parallel>], iteration_bounds = array<i64: 2, 1>, scalar_prefetch = 0 : i64, scratch_operands = 0 : i64, tpu.core_type = #tpu.core_type<tc>, window_params = [{transform_indices = @transform_0, window_bounds = array<i64: 1, 64, 128>}, {transform_indices = @transform_1, window_bounds = array<i64: 1, 1, 128>}, {transform_indices = @transform_2, window_bounds = array<i64: 1, 1, 128>}, {transform_indices = @transform_3, window_bounds = array<i64: 1, 64, 4>}, {pipeline_mode = #tpu.pipeline_mode<synchronous>, transform_indices = @transform_4, window_bounds = array<i64: 4, 128>}, {transform_indices = @transform_5, window_bounds = array<i64: 1, 64, 128>}]} {
    %c0 = arith.constant 0 : index
    %c0_0 = arith.constant 0 : index
    %c0_1 = arith.constant 0 : index
    %0 = vector.load %arg2[%c0, %c0_0, %c0_1] : memref<1x64x128xbf16, #tpu.memory_space<vmem>>, vector<1x64x128xbf16>
    %1 = vector.shape_cast %0 : vector<1x64x128xbf16> to vector<64x128xbf16>
    %2 = arith.extf %1 : vector<64x128xbf16> to vector<64x128xf32>
    %c0_2 = arith.constant 0 : index
    %c0_3 = arith.constant 0 : index
    %c0_4 = arith.constant 0 : index
    %3 = vector.load %arg3[%c0_2, %c0_3, %c0_4] : memref<1x1x128xf32, #tpu.memory_space<vmem>>, vector<1x1x128xf32>
    %4 = vector.shape_cast %3 : vector<1x1x128xf32> to vector<1x128xf32>
    %5 = vector.broadcast %4 : vector<1x128xf32> to vector<64x128xf32>
    %6 = arith.subf %2, %5 : vector<64x128xf32>
    %c0_5 = arith.constant 0 : index
    %c0_6 = arith.constant 0 : index
    %c0_7 = arith.constant 0 : index
    %7 = vector.load %arg4[%c0_5, %c0_6, %c0_7] : memref<1x1x128xf32, #tpu.memory_space<vmem>>, vector<1x1x128xf32>
    %8 = vector.shape_cast %7 : vector<1x1x128xf32> to vector<1x128xf32>
    %9 = vector.broadcast %8 : vector<1x128xf32> to vector<64x128xf32>
    %10 = arith.mulf %6, %9 : vector<64x128xf32>
    %cst = arith.constant 0.000000e+00 : f32
    %11 = vector.broadcast %cst : f32 to vector<64x128xf32>
    %12 = arith.cmpf oge, %10, %11 : vector<64x128xf32>
    %cst_8 = arith.constant 0.00999999977 : f32
    %13 = vector.broadcast %cst_8 : f32 to vector<64x128xf32>
    %14 = arith.mulf %13, %10 : vector<64x128xf32>
    %15 = arith.select %12, %10, %14 : vector<64x128xi1>, vector<64x128xf32>
    %c0_9 = arith.constant 0 : index
    %c0_10 = arith.constant 0 : index
    %c0_11 = arith.constant 0 : index
    %16 = vector.load %arg5[%c0_9, %c0_10, %c0_11] : memref<1x64x4xbf16, #tpu.memory_space<vmem>>, vector<1x64x4xbf16>
    %17 = vector.shape_cast %16 : vector<1x64x4xbf16> to vector<64x4xbf16>
    %c0_12 = arith.constant 0 : index
    %c0_13 = arith.constant 0 : index
    %18 = vector.load %arg6[%c0_12, %c0_13] : memref<4x128xbf16, #tpu.memory_space<vmem>>, vector<4x128xbf16>
    %cst_14 = arith.constant dense<0.000000e+00> : vector<64x128xf32>
    %19 = tpu.matmul %17, %18, %cst_14 {dimension_numbers = #tpu.dot_dimension_numbers<[1], [0], [0], [1], [0, 0, 1, 1], [], []>} : vector<64x4xbf16>, vector<4x128xbf16>, vector<64x128xf32> -> vector<64x128xf32>
    %20 = arith.addf %15, %19 : vector<64x128xf32>
    %c0_15 = arith.constant 0 : index
    %c0_16 = arith.constant 0 : index
    %c0_17 = arith.constant 0 : index
    %21 = vector.load %arg7[%c0_15, %c0_16, %c0_17] : memref<1x64x128xf32, #tpu.memory_space<vmem>>, vector<1x64x128xf32>
    %22 = vector.shape_cast %21 : vector<1x64x128xf32> to vector<64x128xf32>
    %23 = vector.shape_cast %20 : vector<64x128xf32> to vector<1x64x128xf32>
    tpu.vector_store %arg7[%c0_15, %c0_16, %c0_17], %23 {strides = array<i32>} : memref<1x64x128xf32, #tpu.memory_space<vmem>>, vector<1x64x128xf32>,
    return
  }
  func.func @transform_0(%arg0: i32, %arg1: i32) -> (i32, i32, i32) {
    %c0_i32 = arith.constant 0 : i32
    %c0_i32_0 = arith.constant 0 : i32
    return %arg0, %arg1, %c0_i32 : i32, i32, i32
  }
  func.func @transform_1(%arg0: i32, %arg1: i32) -> (i32, i32, i32) {
    %c0_i32 = arith.constant 0 : i32
    %c0_i32_0 = arith.constant 0 : i32
    %c0_i32_1 = arith.constant 0 : i32
    return %arg0, %c0_i32, %c0_i32_0 : i32, i32, i32
  }
  func.func @transform_2(%arg0: i32, %arg1: i32) -> (i32, i32, i32) {
    %c0_i32 = arith.constant 0 : i32
    %c0_i32_0 = arith.constant 0 : i32
    %c0_i32_1 = arith.constant 0 : i32
    return %arg0, %c0_i32, %c0_i32_0 : i32, i32, i32
  }
  func.func @transform_3(%arg0: i32, %arg1: i32) -> (i32, i32, i32) {
    %c0_i32 = arith.constant 0 : i32
    %c0_i32_0 = arith.constant 0 : i32
    return %arg0, %arg1, %c0_i32 : i32, i32, i32
  }
  func.func @transform_4(%arg0: i32, %arg1: i32) -> (i32, i32) {
    %c0_i32 = arith.constant 0 : i32
    %c0_i32_0 = arith.constant 0 : i32
    %c0_i32_1 = arith.constant 0 : i32
    return %c0_i32, %c0_i32_0 : i32, i32
  }
  func.func @transform_5(%arg0: i32, %arg1: i32) -> (i32, i32, i32) {
    %c0_i32 = arith.constant 0 : i32
    %c0_i32_0 = arith.constant 0 : i32
    return %arg0, %arg1, %c0_i32 : i32, i32, i32
  }
}

</mosaic_0001>

<llo_original>
// kernel: downsampling_block_forward.3
$region0: #{downsampling_block_forward.3}
  #allocation0 [shape = 'u32[]', space=smem, size = 0x4, offset = 0x4, fixed_abs, tag = 'smem constant byte address 0x4 - core index']
  #allocation1 [shape = 'u32[72,128]{1,0:T(1,128)}', space=vmem, size = 0x9000, scoped, tag = 'internal scratch']
  %s0 = inlined_call_operand.vmem [shape: bf16[2,64,108], index: 0, kind: input, shape index: {}]
  %s1 = inlined_call_operand.vmem [shape: bf16[108,128], index: 1, kind: input, shape index: {}]
  %s2 = inlined_call_operand.vmem [shape: f32[1,128], index: 2, kind: input, shape index: {}]
  %s3 = inlined_call_operand.vmem [shape: bf16[2,64,128], index: 3, kind: output, shape index: {0}]
  %s4 = inlined_call_operand.vmem [shape: f32[2,1,128], index: 4, kind: output, shape index: {1}]
  %s5 = inlined_call_operand.vmem [shape: f32[2,1,128], index: 5, kind: output, shape index: {2}]
  %6 = xla_tuple %s3, %s4, %s5
  %s7 = sld [smem:[#allocation0]]
  $region65: #{downsampling_block_forward.3} parent=0
    _
  %s9 = ssub.s32 1, %s7
  %s10 = scalar_select 0, %s9, %s7
  loop: start=0, step=1, limit=4
  $region2: #{downsampling_block_forward.3} parent=0 // loop_pre_header
    _
  $region3: #{downsampling_block_forward.3} parent=0 // loop_header
    %s12 = sphi 0, %s16
    %p13 = scmp.ge.s32.totalorder %s12, 4
    %s19 = sphi 0, %s31
    %s20 = sphi 0, %s27
    %s21 = sphi 0, %s19
    %s22 = sphi 0, %s20
    %s23 = sphi 0, %s21
    %s24 = sphi 0, %s22
    %s36 = sphi 0, %s38
    %s39 = sphi 0, %s36
    %s40 = sphi 0, %s39
    %s56 = sphi 0, %s40
    %s60 = sphi 0, %s60
    %s62 = sphi 0, %s60
    %s63 = sphi 0, %s62
    %s77 = sphi 0, %s63
    %s81 = sphi 0, %s81
    %s83 = sphi 0, %s81
    %s84 = sphi 0, %s83
    %s98 = sphi 0, %s84
    %s106 = sphi 0, %s108
    %s109 = sphi 0, %s106
    %s110 = sphi 0, %s109
    %s126 = sphi 0, %s110
    %s132 = sphi 0, %s134
    %s135 = sphi 0, %s132
    %s136 = sphi 0, %s135
    %s152 = sphi 0, %s136
    %s158 = sphi 0, %s160
    %s161 = sphi 0, %s158
    %s162 = sphi 0, %s161
    %s178 = sphi 0, %s162
  $region4: #{downsampling_block_forward.3} parent=0 // loop_header_branch
    %15 = sbr.rel (%p13) target = $region8
  $region5: #{downsampling_block_forward.3} parent=0 // loop_body
    %s17 = ssub.s32 %s12, 1
    %s18 = ssub.s32 %s12, 2
    %s25 = sadd.s32 1, %s20
    %p26 = scmp.ge.s32.totalorder %s25, 1
    %s27 = scalar_select %p26, 0, %s25
    %s28 = sadd.s32 1, %s19
    %s29 = scalar_select %p26, %s28, %s19
    %p30 = scmp.ge.s32.totalorder %s29, 2
    %s31 = scalar_select %p30, 0, %s29
    %s32 = ssub.s32 %s19, %s31
    %s33 = ssub.s32 %s20, %s27
    %s34 = sor.u32 %s32, %s33
    %p35 = scmp.eq.s32.totalorder %s34, 0
    %s37 = sadd.s32 %s36, 1
    %s38 = scalar_select %p35, %s36, %s37
    %p41 = pneg %p35
    %p42 = scmp.eq.s32.totalorder %s12, 1
    %p43 = por %p41, %p42
    %p44 = scmp.ne.s32.totalorder %s36, %s39
    %p45 = scmp.eq.s32.totalorder %s12, 0
    %p46 = por %p44, %p45
    %p47 = scmp.ne.s32.totalorder %s36, %s39
    %p48 = scmp.eq.s32.totalorder %s17, 1
    %p49 = por %p47, %p48
    %p50 = scmp.ne.s32.totalorder %s39, %s40
    %p51 = scmp.eq.s32.totalorder %s17, 0
    %p52 = por %p50, %p51
    %p53 = scmp.ne.s32.totalorder %s39, %s40
    %p54 = scmp.eq.s32.totalorder %s18, 1
    %p55 = por %p53, %p54
    %p57 = scmp.ne.s32.totalorder %s40, %s56
    %p58 = scmp.eq.s32.totalorder %s18, 0
    %p59 = por %p57, %p58
    %s61 = sadd.s32 %s60, 1
    %p64 = scmp.eq.s32.totalorder %s12, 1
    %p65 = scmp.ne.s32.totalorder %s60, %s62
    %p66 = scmp.eq.s32.totalorder %s12, 0
    %p67 = por %p65, %p66
    %p68 = scmp.ne.s32.totalorder %s60, %s62
    %p69 = scmp.eq.s32.totalorder %s17, 1
    %p70 = por %p68, %p69
    %p71 = scmp.ne.s32.totalorder %s62, %s63
    %p72 = scmp.eq.s32.totalorder %s17, 0
    %p73 = por %p71, %p72
    %p74 = scmp.ne.s32.totalorder %s62, %s63
    %p75 = scmp.eq.s32.totalorder %s18, 1
    %p76 = por %p74, %p75
    %p78 = scmp.ne.s32.totalorder %s63, %s77
    %p79 = scmp.eq.s32.totalorder %s18, 0
    %p80 = por %p78, %p79
    %s82 = sadd.s32 %s81, 1
    %p85 = scmp.eq.s32.totalorder %s12, 1
    %p86 = scmp.ne.s32.totalorder %s81, %s83
    %p87 = scmp.eq.s32.totalorder %s12, 0
    %p88 = por %p86, %p87
    %p89 = scmp.ne.s32.totalorder %s81, %s83
    %p90 = scmp.eq.s32.totalorder %s17, 1
    %p91 = por %p89, %p90
    %p92 = scmp.ne.s32.totalorder %s83, %s84
    %p93 = scmp.eq.s32.totalorder %s17, 0
    %p94 = por %p92, %p93
    %p95 = scmp.ne.s32.totalorder %s83, %s84
    %p96 = scmp.eq.s32.totalorder %s18, 1
    %p97 = por %p95, %p96
    %p99 = scmp.ne.s32.totalorder %s84, %s98
    %p100 = scmp.eq.s32.totalorder %s18, 0
    %p101 = por %p99, %p100
    %s102 = ssub.s32 %s19, %s31
    %s103 = ssub.s32 %s20, %s27
    %s104 = sor.u32 %s102, %s103
    %p105 = scmp.eq.s32.totalorder %s104, 0
    %s107 = sadd.s32 %s106, 1
    %s108 = scalar_select %p105, %s106, %s107
    %p111 = pneg %p105
    %p112 = scmp.eq.s32.totalorder %s12, 1
    %p113 = por %p111, %p112
    %p114 = scmp.ne.s32.totalorder %s106, %s109
    %p115 = scmp.eq.s32.totalorder %s12, 0
    %p116 = por %p114, %p115
    %p117 = scmp.ne.s32.totalorder %s106, %s109
    %p118 = scmp.eq.s32.totalorder %s17, 1
    %p119 = por %p117, %p118
    %p120 = scmp.ne.s32.totalorder %s109, %s110
    %p121 = scmp.eq.s32.totalorder %s17, 0
    %p122 = por %p120, %p121
    %p123 = scmp.ne.s32.totalorder %s109, %s110
    %p124 = scmp.eq.s32.totalorder %s18, 1
    %p125 = por %p123, %p124
    %p127 = scmp.ne.s32.totalorder %s110, %s126
    %p128 = scmp.eq.s32.totalorder %s18, 0
    %p129 = por %p127, %p128
    %s130 = ssub.s32 %s19, %s31
    %p131 = scmp.eq.s32.totalorder %s130, 0
    %s133 = sadd.s32 %s132, 1
    %s134 = scalar_select %p131, %s132, %s133
    %p137 = pneg %p131
    %p138 = scmp.eq.s32.totalorder %s12, 1
    %p139 = por %p137, %p138
    %p140 = scmp.ne.s32.totalorder %s132, %s135
    %p141 = scmp.eq.s32.totalorder %s12, 0
    %p142 = por %p140, %p141
    %p143 = scmp.ne.s32.totalorder %s132, %s135
    %p144 = scmp.eq.s32.totalorder %s17, 1
    %p145 = por %p143, %p144
    %p146 = scmp.ne.s32.totalorder %s135, %s136
    %p147 = scmp.eq.s32.totalorder %s17, 0
    %p148 = por %p146, %p147
    %p149 = scmp.ne.s32.totalorder %s135, %s136
    %p150 = scmp.eq.s32.totalorder %s18, 1
    %p151 = por %p149, %p150
    %p153 = scmp.ne.s32.totalorder %s136, %s152
    %p154 = scmp.eq.s32.totalorder %s18, 0
    %p155 = por %p153, %p154
    %s156 = ssub.s32 %s19, %s31
    %p157 = scmp.eq.s32.totalorder %s156, 0
    %s159 = sadd.s32 %s158, 1
    %s160 = scalar_select %p157, %s158, %s159
    %p163 = pneg %p157
    %p164 = scmp.eq.s32.totalorder %s12, 1
    %p165 = por %p163, %p164
    %p166 = scmp.ne.s32.totalorder %s158, %s161
    %p167 = scmp.eq.s32.totalorder %s12, 0
    %p168 = por %p166, %p167
    %p169 = scmp.ne.s32.totalorder %s158, %s161
    %p170 = scmp.eq.s32.totalorder %s17, 1
    %p171 = por %p169, %p170
    %p172 = scmp.ne.s32.totalorder %s161, %s162
    %p173 = scmp.eq.s32.totalorder %s17, 0
    %p174 = por %p172, %p173
    %p175 = scmp.ne.s32.totalorder %s161, %s162
    %p176 = scmp.eq.s32.totalorder %s18, 1
    %p177 = por %p175, %p176
    %p179 = scmp.ne.s32.totalorder %s162, %s178
    %p180 = scmp.eq.s32.totalorder %s18, 0
    %p181 = por %p179, %p180
    %p182 = scmp.le.s32.totalorder 1, %s12
    %p183 = scmp.lt.s32.totalorder %s12, 3
    %p184 = pnand %p182, %p183
    %p185 = pneg %p184
    // Predicated region
    $region9: #{downsampling_block_forward.3} parent=5 // pred_check
      _
    $region10: #{downsampling_block_forward.3} parent=5 // pred_check_branch
      %187 = sbr.rel (%p184) target = $region12
    $region11: #{downsampling_block_forward.3} parent=5 // pred_region
      %s188 = ssub.s32 %s12, 1
      // Predicated region
      $region13: #{downsampling_block_forward.3} parent=11 // pred_check
        %p189 = pneg %p73
      $region14: #{downsampling_block_forward.3} parent=11 // pred_check_branch
        %191 = sbr.rel (%p189) target = $region16
      $region15: #{downsampling_block_forward.3} parent=11 // pred_region
        _
      $region16: #{downsampling_block_forward.3} parent=11 // pred_fallthru
        _
      // Predicated region
      $region17: #{downsampling_block_forward.3} parent=11 // pred_check
        %p192 = pneg %p94
      $region18: #{downsampling_block_forward.3} parent=11 // pred_check_branch
        %194 = sbr.rel (%p192) target = $region20
      $region19: #{downsampling_block_forward.3} parent=11 // pred_region
        _
      $region20: #{downsampling_block_forward.3} parent=11 // pred_fallthru
        _
    $region12: #{downsampling_block_forward.3} parent=5 // pred_fallthru
      _
    %p195 = scmp.lt.s32.totalorder %s12, 2
    // Predicated region
    $region21: #{downsampling_block_forward.3} parent=5 // pred_check
      %p196 = pneg %p195
    $region22: #{downsampling_block_forward.3} parent=5 // pred_check_branch
      %198 = sbr.rel (%p196) target = $region24
    $region23: #{downsampling_block_forward.3} parent=5 // pred_region
      // Predicated region
      $region25: #{downsampling_block_forward.3} parent=23 // pred_check
        %p199 = pneg %p46
      $region26: #{downsampling_block_forward.3} parent=23 // pred_check_branch
        %201 = sbr.rel (%p199) target = $region28
      $region27: #{downsampling_block_forward.3} parent=23 // pred_region
        %s202 = smul.u32 8, %s20
        %p203 = scmp.lt.s32.totalorder %s19, 1
        %s204 = scalar_select %p203, %s19, 1
        %p205 = scmp.lt.s32.totalorder %s202, 7
        %s206 = scalar_select %p205, %s202, 7
        %s207 = smul.addr %s204, 8
        %s208 = sadd.s32 %s206, %s207
        %s209 = smul.addr %s208, 4
        %s210 = scalar_lea.vmem %s0, %s209
        %s211 = smul.u32 8, %s20
      $region28: #{downsampling_block_forward.3} parent=23 // pred_fallthru
        _
    $region24: #{downsampling_block_forward.3} parent=5 // pred_fallthru
      _
    %p212 = scmp.le.s32.totalorder 1, %s12
    %p213 = scmp.lt.s32.totalorder %s12, 3
    %p214 = pnand %p212, %p213
    %p215 = pneg %p214
    // Predicated region
    $region29: #{downsampling_block_forward.3} parent=5 // pred_check
      _
    $region30: #{downsampling_block_forward.3} parent=5 // pred_check_branch
      %217 = sbr.rel (%p214) target = $region32
    $region31: #{downsampling_block_forward.3} parent=5 // pred_region
      %s218 = ssub.s32 %s12, 1
      %s219 = smul.u32 8, %s22
      %p220 = scmp.lt.s32.totalorder %s21, 1
      %s221 = scalar_select %p220, %s21, 1
      %p222 = scmp.lt.s32.totalorder %s219, 7
      %s223 = scalar_select %p222, %s219, 7
      %s224 = smul.addr %s221, 8
      %s225 = sadd.s32 %s223, %s224
      %s226 = smul.addr %s225, 4
      %s227 = scalar_lea.vmem %s0, %s226
      %p228 = pneg %p52
      %p229 = pneg %p49
      %p230 = pneg %p73
      %p231 = pneg %p70
      %p232 = pneg %p94
      %p233 = pneg %p91
      %p234 = pneg %p122
      %p235 = pneg %p119
      %s236 = smul.u32 8, %s22
      %p237 = scmp.lt.s32.totalorder %s21, 1
      %s238 = scalar_select %p237, %s21, 1
      %p239 = scmp.lt.s32.totalorder %s236, 7
      %s240 = scalar_select %p239, %s236, 7
      %s241 = smul.addr %s238, 8
      %s242 = sadd.s32 %s240, %s241
      %s243 = smul.addr %s242, 4
      %s244 = scalar_lea.vmem %s3, %s243
      %p245 = pneg %p148
      %p246 = pneg %p145
      %p247 = scmp.lt.s32.totalorder %s21, 1
      %s248 = scalar_select %p247, %s21, 1
      %s249 = scalar_lea.vmem %s4, %s248
      %p250 = pneg %p174
      %p251 = pneg %p171
      %p252 = scmp.lt.s32.totalorder %s21, 1
      %s253 = scalar_select %p252, %s21, 1
      %s254 = scalar_lea.vmem %s5, %s253
      %s255 = smul.u32 8, %s22
      %p256 = scmp.lt.s32.totalorder %s21, 1
      %s257 = scalar_select %p256, %s21, 1
      %p258 = scmp.lt.s32.totalorder %s255, 7
      %s259 = scalar_select %p258, %s255, 7
      %s260 = smul.addr %s257, 8
      %s261 = sadd.s32 %s259, %s260
      %s262 = smul.addr %s261, 4
      %s263 = scalar_lea.vmem %s0, %s262
      %s264 = smul.u32 8, %s22
      %s265 = smul.u32 8, %s22
      %p266 = scmp.lt.s32.totalorder %s21, 1
      %s267 = scalar_select %p266, %s21, 1
      %p268 = scmp.lt.s32.totalorder %s265, 7
      %s269 = scalar_select %p268, %s265, 7
      %s270 = smul.addr %s267, 8
      %s271 = sadd.s32 %s269, %s270
      %s272 = smul.addr %s271, 4
      %s273 = scalar_lea.vmem %s3, %s272
      %s274 = smul.u32 8, %s22
      %p275 = scmp.lt.s32.totalorder %s21, 1
      %s276 = scalar_select %p275, %s21, 1
      %s277 = scalar_lea.vmem %s4, %s276
      %p278 = scmp.lt.s32.totalorder %s21, 1
      %s279 = scalar_select %p278, %s21, 1
      %s280 = scalar_lea.vmem %s5, %s279
      %p282 = scmp.eq.s32.totalorder %s22, 0
      // Predicated region
      $region33: #{downsampling_block_forward.3} parent=31 // pred_check
        %p283 = pneg %p282
      $region34: #{downsampling_block_forward.3} parent=31 // pred_check_branch
        %285 = sbr.rel (%p283) target = $region36
      $region35: #{downsampling_block_forward.3} parent=31 // pred_region
        %286 = vst [vmem:[%s277] sm:$0x1] 0.0
        %287 = vst [vmem:[%s280] sm:$0x1] 0.0
      $region36: #{downsampling_block_forward.3} parent=31 // pred_fallthru
        _
      %v288 = vld [vmem:[%s263] sm:$0xf]
      %v289 = vld [vmem:[%s263 + $0x4] sm:$0xf]
      %v290 = vld [vmem:[%s263 + $0x8] sm:$0xf]
      %v291 = vld [vmem:[%s263 + $0xc] sm:$0xf]
      %v292 = vld [vmem:[%s263 + $0x10] sm:$0xf]
      %v293 = vld [vmem:[%s263 + $0x14] sm:$0xf]
      %v294 = vld [vmem:[%s263 + $0x18] sm:$0xf]
      %v295 = vld [vmem:[%s263 + $0x1c] sm:$0xf]
      %v296 = vld [vmem:[%s1] sm:$0xf]
      %v297 = vld [vmem:[%s1 + $0x4] sm:$0xf]
      %v298 = vld [vmem:[%s1 + $0x8] sm:$0xf]
      %v299 = vld [vmem:[%s1 + $0xc] sm:$0xf]
      %v300 = vld [vmem:[%s1 + $0x10] sm:$0xf]
      %v301 = vld [vmem:[%s1 + $0x14] sm:$0xf]
      %v302 = vld [vmem:[%s1 + $0x18] sm:$0xf]
      %v303 = vld [vmem:[%s1 + $0x1c] sm:$0xf]
      %v304 = vld [vmem:[%s1 + $0x20] sm:$0xf]
      %v305 = vld [vmem:[%s1 + $0x24] sm:$0xf]
      %v306 = vld [vmem:[%s1 + $0x28] sm:$0xf]
      %v307 = vld [vmem:[%s1 + $0x2c] sm:$0xf]
      %v308 = vld [vmem:[%s1 + $0x30] sm:$0xf]
      %v309 = vld [vmem:[%s1 + $0x34] sm:$0x3]
      %v318 = vunpack.c.l.b16 %v288
      %v319 = vunpack.c.l.b16 %v289
      %v320 = vunpack.c.l.b16 %v290
      %v321 = vunpack.c.l.b16 %v291
      %v322 = vunpack.c.l.b16 %v292
      %v323 = vunpack.c.l.b16 %v293
      %v324 = vunpack.c.l.b16 %v294
      %v325 = vunpack.c.l.b16 %v295
      %v326 = vpack.c.b16 %v319, %v318
      %v327 = vpack.c.b16 %v321, %v320
      %v328 = vpack.c.b16 %v323, %v322
      %v329 = vpack.c.b16 %v325, %v324
      %v344 = vunpack.c.l.b16 %v296
      %v345 = vunpack.c.l.b16 %v297
      %v346 = vunpack.c.l.b16 %v298
      %v347 = vunpack.c.l.b16 %v299
      %v348 = vunpack.c.l.b16 %v300
      %v349 = vunpack.c.l.b16 %v301
      %v350 = vunpack.c.l.b16 %v302
      %v351 = vunpack.c.l.b16 %v303
      %v352 = vunpack.c.l.b16 %v304
      %v353 = vunpack.c.l.b16 %v305
      %v354 = vunpack.c.l.b16 %v306
      %v355 = vunpack.c.l.b16 %v307
      %v356 = vunpack.c.l.b16 %v308
      %v357 = vunpack.c.l.b16 %v309
      %v358 = vpack.c.b16 %v345, %v344
      %v359 = vpack.c.b16 %v347, %v346
      %v360 = vpack.c.b16 %v349, %v348
      %v361 = vpack.c.b16 %v351, %v350
      %v362 = vpack.c.b16 %v353, %v352
      %v363 = vpack.c.b16 %v355, %v354
      %v364 = vpack.c.b16 %v357, %v356
      %vm371 = vcmask 883712
      %v373 = vsel %vm371, %v326, 0
      %v376 = vsel %vm371, %v327, 0
      %v379 = vsel %vm371, %v328, 0
      %v382 = vsel %vm371, %v329, 0
      %vm384 = vcmask 1045504
      %v386 = vsel %vm384, %v364, 0
      %388 = vmatpush.bf16.msra.mxu0 0
      %389 = vmatpush.bf16.msra.mxu0 %v386
      %390 = vmatpush.bf16.msra.mxu0 %v363
      %391 = vmatpush.bf16.msra.mxu0 %v362
      %392 = vmatpush.bf16.msra.mxu0 %v361
      %393 = vmatpush.bf16.msra.mxu0 %v360
      %394 = vmatpush.bf16.msra.mxu0 %v359
      %395 = vmatpush.bf16.msra.mxu0 %v358
      %396 = vmatmul.bf16.gmra.mxu0 %v373
      %v397 = vpop.f32.mrf.mxu0
      %v398 = vadd.f32 0.0, %v397
      %v399 = vpop.f32.mrf.mxu0
      %v400 = vadd.f32 0.0, %v399
      %401 = vmatmul.bf16.gmra.mxu0 %v376
      %v402 = vpop.f32.mrf.mxu0
      %v403 = vadd.f32 0.0, %v402
      %v404 = vpop.f32.mrf.mxu0
      %v405 = vadd.f32 0.0, %v404
      %406 = vmatmul.bf16.gmra.mxu0 %v379
      %v407 = vpop.f32.mrf.mxu0
      %v408 = vadd.f32 0.0, %v407
      %v409 = vpop.f32.mrf.mxu0
      %v410 = vadd.f32 0.0, %v409
      %411 = vmatmul.bf16.gmra.mxu0 %v382
      %v412 = vpop.f32.mrf.mxu0
      %v413 = vadd.f32 0.0, %v412
      %v414 = vpop.f32.mrf.mxu0
      %v415 = vadd.f32 0.0, %v414
      %416 = vdwg.mxu0
      %v417 = vld [vmem:[%s277] sm:$0x1]
      %v418 = vadd.f32 %v398, %v400
      %v419 = vadd.f32 %v418, %v403
      %v420 = vadd.f32 %v419, %v405
      %v421 = vadd.f32 %v420, %v408
      %v422 = vadd.f32 %v421, %v410
      %v423 = vadd.f32 %v422, %v413
      %v424 = vadd.f32 %v423, %v415
      %v425 = vrot.slane %v424, 4
      %v426 = vadd.f32 %v424, %v425
      %v427 = vrot.slane %v426, 2
      %v428 = vadd.f32 %v426, %v427
      %v429 = vrot.slane %v428, 1
      %v430 = vadd.f32 %v428, %v429
      %v431 = vadd.f32 %v417, %v430
      %432 = vst [vmem:[%s277] sm:$0x1] %v431
      %v433 = vld [vmem:[%s280] sm:$0x1]
      %v434 = vmul.f32 %v398, %v398
      %v435 = vmul.f32 %v400, %v400
      %v436 = vmul.f32 %v403, %v403
      %v437 = vmul.f32 %v405, %v405
      %v438 = vmul.f32 %v408, %v408
      %v439 = vmul.f32 %v410, %v410
      %v440 = vmul.f32 %v413, %v413
      %v441 = vmul.f32 %v415, %v415
      %v442 = vadd.f32 %v434, %v435
      %v443 = vadd.f32 %v442, %v436
      %v444 = vadd.f32 %v443, %v437
      %v445 = vadd.f32 %v444, %v438
      %v446 = vadd.f32 %v445, %v439
      %v447 = vadd.f32 %v446, %v440
      %v448 = vadd.f32 %v447, %v441
      %v449 = vrot.slane %v448, 4
      %v450 = vadd.f32 %v448, %v449
      %v451 = vrot.slane %v450, 2
      %v452 = vadd.f32 %v450, %v451
      %v453 = vrot.slane %v452, 1
      %v454 = vadd.f32 %v452, %v453
      %v455 = vadd.f32 %v433, %v454
      %456 = vst [vmem:[%s280] sm:$0x1] %v455
      %v457 = vld [vmem:[%s2] sm:$0x1]
      %v459 = vperm.slane %v457, 0
      %v461 = vadd.f32 %v398, %v459
      %v462 = vadd.f32 %v400, %v459
      %v463 = vadd.f32 %v403, %v459
      %v464 = vadd.f32 %v405, %v459
      %v465 = vadd.f32 %v408, %v459
      %v466 = vadd.f32 %v410, %v459
      %v467 = vadd.f32 %v413, %v459
      %v468 = vadd.f32 %v415, %v459
      %v469 = vpack.c.bf16 %v461, %v461
      %v470 = vpack.c.bf16 %v462, %v462
      %v471 = vpack.c.bf16 %v463, %v463
      %v472 = vpack.c.bf16 %v464, %v464
      %v473 = vpack.c.bf16 %v465, %v465
      %v474 = vpack.c.bf16 %v466, %v466
      %v475 = vpack.c.bf16 %v467, %v467
      %v476 = vpack.c.bf16 %v468, %v468
      %477 = vst [vmem:[%s273] sm:$0xf] %v469
      %478 = vst [vmem:[%s273 + $0x4] sm:$0xf] %v470
      %479 = vst [vmem:[%s273 + $0x8] sm:$0xf] %v471
      %480 = vst [vmem:[%s273 + $0xc] sm:$0xf] %v472
      %481 = vst [vmem:[%s273 + $0x10] sm:$0xf] %v473
      %482 = vst [vmem:[%s273 + $0x14] sm:$0xf] %v474
      %483 = vst [vmem:[%s273 + $0x18] sm:$0xf] %v475
      %484 = vst [vmem:[%s273 + $0x1c] sm:$0xf] %v476
      %s485 = smul.u32 8, %s22
      %p486 = scmp.lt.s32.totalorder %s21, 1
      %s487 = scalar_select %p486, %s21, 1
      %p488 = scmp.lt.s32.totalorder %s485, 7
      %s489 = scalar_select %p488, %s485, 7
      %s490 = smul.addr %s487, 8
      %s491 = sadd.s32 %s489, %s490
      %s492 = smul.addr %s491, 4
      %s493 = scalar_lea.vmem %s3, %s492
      %p494 = scmp.lt.s32.totalorder %s21, 1
      %s495 = scalar_select %p494, %s21, 1
      %s496 = scalar_lea.vmem %s4, %s495
      %p497 = scmp.lt.s32.totalorder %s21, 1
      %s498 = scalar_select %p497, %s21, 1
      %s499 = scalar_lea.vmem %s5, %s498
      // Predicated region
      $region37: #{downsampling_block_forward.3} parent=31 // pred_check
        %p500 = pneg %p119
      $region38: #{downsampling_block_forward.3} parent=31 // pred_check_branch
        %502 = sbr.rel (%p500) target = $region40
      $region39: #{downsampling_block_forward.3} parent=31 // pred_region
        %s503 = smul.u32 8, %s22
      $region40: #{downsampling_block_forward.3} parent=31 // pred_fallthru
        _
      // Predicated region
      $region41: #{downsampling_block_forward.3} parent=31 // pred_check
        %p504 = pneg %p145
      $region42: #{downsampling_block_forward.3} parent=31 // pred_check_branch
        %506 = sbr.rel (%p504) target = $region44
      $region43: #{downsampling_block_forward.3} parent=31 // pred_region
        _
      $region44: #{downsampling_block_forward.3} parent=31 // pred_fallthru
        _
      // Predicated region
      $region45: #{downsampling_block_forward.3} parent=31 // pred_check
        %p507 = pneg %p171
      $region46: #{downsampling_block_forward.3} parent=31 // pred_check_branch
        %509 = sbr.rel (%p507) target = $region48
      $region47: #{downsampling_block_forward.3} parent=31 // pred_region
        _
      $region48: #{downsampling_block_forward.3} parent=31 // pred_fallthru
        _
    $region32: #{downsampling_block_forward.3} parent=5 // pred_fallthru
      _
    %p510 = scmp.le.s32.totalorder 2, %s12
    // Predicated region
    $region49: #{downsampling_block_forward.3} parent=5 // pred_check
      %p511 = pneg %p510
    $region50: #{downsampling_block_forward.3} parent=5 // pred_check_branch
      %513 = sbr.rel (%p511) target = $region52
    $region51: #{downsampling_block_forward.3} parent=5 // pred_region
      %s514 = ssub.s32 %s12, 2
      // Predicated region
      $region53: #{downsampling_block_forward.3} parent=51 // pred_check
        %p515 = pneg %p125
      $region54: #{downsampling_block_forward.3} parent=51 // pred_check_branch
        %517 = sbr.rel (%p515) target = $region56
      $region55: #{downsampling_block_forward.3} parent=51 // pred_region
        %s518 = smul.u32 8, %s24
        %p519 = scmp.lt.s32.totalorder %s23, 1
        %s520 = scalar_select %p519, %s23, 1
        %p521 = scmp.lt.s32.totalorder %s518, 7
        %s522 = scalar_select %p521, %s518, 7
        %s523 = smul.addr %s520, 8
        %s524 = sadd.s32 %s522, %s523
        %s525 = smul.addr %s524, 4
        %s526 = scalar_lea.vmem %s3, %s525
      $region56: #{downsampling_block_forward.3} parent=51 // pred_fallthru
        _
      // Predicated region
      $region57: #{downsampling_block_forward.3} parent=51 // pred_check
        %p527 = pneg %p151
      $region58: #{downsampling_block_forward.3} parent=51 // pred_check_branch
        %529 = sbr.rel (%p527) target = $region60
      $region59: #{downsampling_block_forward.3} parent=51 // pred_region
        %p530 = scmp.lt.s32.totalorder %s23, 1
        %s531 = scalar_select %p530, %s23, 1
        %s532 = scalar_lea.vmem %s4, %s531
      $region60: #{downsampling_block_forward.3} parent=51 // pred_fallthru
        _
      // Predicated region
      $region61: #{downsampling_block_forward.3} parent=51 // pred_check
        %p533 = pneg %p177
      $region62: #{downsampling_block_forward.3} parent=51 // pred_check_branch
        %535 = sbr.rel (%p533) target = $region64
      $region63: #{downsampling_block_forward.3} parent=51 // pred_region
        %p536 = scmp.lt.s32.totalorder %s23, 1
        %s537 = scalar_select %p536, %s23, 1
        %s538 = scalar_lea.vmem %s5, %s537
      $region64: #{downsampling_block_forward.3} parent=51 // pred_fallthru
        _
    $region52: #{downsampling_block_forward.3} parent=5 // pred_fallthru
      _
  $region6: #{downsampling_block_forward.3} parent=0 // loop_footer
    %s16 = sadd.s32 1, %s12
  $region7: #{downsampling_block_forward.3} parent=0 // loop_footer_branch
    %11 = sbr.rel target = $region3
  $region8: #{downsampling_block_forward.3} parent=0 // loop_exit
    _

// kernel: downsampling_block_forward.5
$region0: #{downsampling_block_forward.5}
  #allocation0 [shape = 'u32[]', space=smem, size = 0x4, offset = 0x4, fixed_abs, tag = 'smem constant byte address 0x4 - core index']
  #allocation1 [shape = 'u32[72,128]{1,0:T(1,128)}', space=vmem, size = 0x9000, scoped, tag = 'internal scratch']
  %s0 = inlined_call_operand.vmem [shape: bf16[2,64,128], index: 0, kind: input, shape index: {}]
  %s1 = inlined_call_operand.vmem [shape: f32[2,1,128], index: 1, kind: input, shape index: {}]
  %s2 = inlined_call_operand.vmem [shape: f32[2,1,128], index: 2, kind: input, shape index: {}]
  %s3 = inlined_call_operand.vmem [shape: bf16[2,64,4], index: 3, kind: input, shape index: {}]
  %s4 = inlined_call_operand.vmem [shape: bf16[4,128], index: 4, kind: input, shape index: {}]
  %s5 = inlined_call_operand.hbm [shape: f32[2,64,128], index: 5, kind: output, shape index: {}]
  %s6 = sld [smem:[#allocation0]]
  $region53: #{downsampling_block_forward.5} parent=0
    _
  %s8 = ssub.s32 1, %s6
  %s9 = scalar_select 0, %s8, %s6
  $region1: #{downsampling_block_forward.5} parent=0
    #allocation2 [shape = 'u8[65536]{0}', space=vmem, size = 0x10000, scoped, tag = 'output window, operand 0']
    #allocation3 [shape = 's32[2]{0}', space=sflag, size = 0x8, scoped, tag = 'scoped memory for downsampling_block_forward.5']
    %10 = vsyncpa [#allocation3], 0
    %s11 = scalar_lea.sflag [#allocation3], 1
    %12 = vsyncpa %s11, 0
    loop: start=0, step=1, limit=4
    $region2: #{downsampling_block_forward.5} parent=1 // loop_pre_header
      _
    $region3: #{downsampling_block_forward.5} parent=1 // loop_header
      %s14 = sphi 0, %s18
      %p15 = scmp.ge.s32.totalorder %s14, 4
      %s21 = sphi 0, %s33
      %s22 = sphi 0, %s29
      %s23 = sphi 0, %s21
      %s24 = sphi 0, %s22
      %s25 = sphi 0, %s23
      %s26 = sphi 0, %s24
      %s38 = sphi 0, %s40
      %s41 = sphi 0, %s38
      %s42 = sphi 0, %s41
      %s58 = sphi 0, %s42
      %s64 = sphi 0, %s66
      %s67 = sphi 0, %s64
      %s68 = sphi 0, %s67
      %s84 = sphi 0, %s68
      %s90 = sphi 0, %s92
      %s93 = sphi 0, %s90
      %s94 = sphi 0, %s93
      %s110 = sphi 0, %s94
      %s118 = sphi 0, %s120
      %s121 = sphi 0, %s118
      %s122 = sphi 0, %s121
      %s138 = sphi 0, %s122
      %s142 = sphi 0, %s142
      %s144 = sphi 0, %s142
      %s145 = sphi 0, %s144
      %s159 = sphi 0, %s145
      %s167 = sphi 0, %s169
      %s170 = sphi 0, %s167
      %s171 = sphi 0, %s170
      %s187 = sphi 0, %s171
    $region4: #{downsampling_block_forward.5} parent=1 // loop_header_branch
      %17 = sbr.rel (%p15) target = $region8
    $region5: #{downsampling_block_forward.5} parent=1 // loop_body
      %s19 = ssub.s32 %s14, 1
      %s20 = ssub.s32 %s14, 2
      %s27 = sadd.s32 1, %s22
      %p28 = scmp.ge.s32.totalorder %s27, 1
      %s29 = scalar_select %p28, 0, %s27
      %s30 = sadd.s32 1, %s21
      %s31 = scalar_select %p28, %s30, %s21
      %p32 = scmp.ge.s32.totalorder %s31, 2
      %s33 = scalar_select %p32, 0, %s31
      %s34 = ssub.s32 %s21, %s33
      %s35 = ssub.s32 %s22, %s29
      %s36 = sor.u32 %s34, %s35
      %p37 = scmp.eq.s32.totalorder %s36, 0
      %s39 = sadd.s32 %s38, 1
      %s40 = scalar_select %p37, %s38, %s39
      %p43 = pneg %p37
      %p44 = scmp.eq.s32.totalorder %s14, 1
      %p45 = por %p43, %p44
      %p46 = scmp.ne.s32.totalorder %s38, %s41
      %p47 = scmp.eq.s32.totalorder %s14, 0
      %p48 = por %p46, %p47
      %p49 = scmp.ne.s32.totalorder %s38, %s41
      %p50 = scmp.eq.s32.totalorder %s19, 1
      %p51 = por %p49, %p50
      %p52 = scmp.ne.s32.totalorder %s41, %s42
      %p53 = scmp.eq.s32.totalorder %s19, 0
      %p54 = por %p52, %p53
      %p55 = scmp.ne.s32.totalorder %s41, %s42
      %p56 = scmp.eq.s32.totalorder %s20, 1
      %p57 = por %p55, %p56
      %p59 = scmp.ne.s32.totalorder %s42, %s58
      %p60 = scmp.eq.s32.totalorder %s20, 0
      %p61 = por %p59, %p60
      %s62 = ssub.s32 %s21, %s33
      %p63 = scmp.eq.s32.totalorder %s62, 0
      %s65 = sadd.s32 %s64, 1
      %s66 = scalar_select %p63, %s64, %s65
      %p69 = pneg %p63
      %p70 = scmp.eq.s32.totalorder %s14, 1
      %p71 = por %p69, %p70
      %p72 = scmp.ne.s32.totalorder %s64, %s67
      %p73 = scmp.eq.s32.totalorder %s14, 0
      %p74 = por %p72, %p73
      %p75 = scmp.ne.s32.totalorder %s64, %s67
      %p76 = scmp.eq.s32.totalorder %s19, 1
      %p77 = por %p75, %p76
      %p78 = scmp.ne.s32.totalorder %s67, %s68
      %p79 = scmp.eq.s32.totalorder %s19, 0
      %p80 = por %p78, %p79
      %p81 = scmp.ne.s32.totalorder %s67, %s68
      %p82 = scmp.eq.s32.totalorder %s20, 1
      %p83 = por %p81, %p82
      %p85 = scmp.ne.s32.totalorder %s68, %s84
      %p86 = scmp.eq.s32.totalorder %s20, 0
      %p87 = por %p85, %p86
      %s88 = ssub.s32 %s21, %s33
      %p89 = scmp.eq.s32.totalorder %s88, 0
      %s91 = sadd.s32 %s90, 1
      %s92 = scalar_select %p89, %s90, %s91
      %p95 = pneg %p89
      %p96 = scmp.eq.s32.totalorder %s14, 1
      %p97 = por %p95, %p96
      %p98 = scmp.ne.s32.totalorder %s90, %s93
      %p99 = scmp.eq.s32.totalorder %s14, 0
      %p100 = por %p98, %p99
      %p101 = scmp.ne.s32.totalorder %s90, %s93
      %p102 = scmp.eq.s32.totalorder %s19, 1
      %p103 = por %p101, %p102
      %p104 = scmp.ne.s32.totalorder %s93, %s94
      %p105 = scmp.eq.s32.totalorder %s19, 0
      %p106 = por %p104, %p105
      %p107 = scmp.ne.s32.totalorder %s93, %s94
      %p108 = scmp.eq.s32.totalorder %s20, 1
      %p109 = por %p107, %p108
      %p111 = scmp.ne.s32.totalorder %s94, %s110
      %p112 = scmp.eq.s32.totalorder %s20, 0
      %p113 = por %p111, %p112
      %s114 = ssub.s32 %s21, %s33
      %s115 = ssub.s32 %s22, %s29
      %s116 = sor.u32 %s114, %s115
      %p117 = scmp.eq.s32.totalorder %s116, 0
      %s119 = sadd.s32 %s118, 1
      %s120 = scalar_select %p117, %s118, %s119
      %p123 = pneg %p117
      %p124 = scmp.eq.s32.totalorder %s14, 1
      %p125 = por %p123, %p124
      %p126 = scmp.ne.s32.totalorder %s118, %s121
      %p127 = scmp.eq.s32.totalorder %s14, 0
      %p128 = por %p126, %p127
      %p129 = scmp.ne.s32.totalorder %s118, %s121
      %p130 = scmp.eq.s32.totalorder %s19, 1
      %p131 = por %p129, %p130
      %p132 = scmp.ne.s32.totalorder %s121, %s122
      %p133 = scmp.eq.s32.totalorder %s19, 0
      %p134 = por %p132, %p133
      %p135 = scmp.ne.s32.totalorder %s121, %s122
      %p136 = scmp.eq.s32.totalorder %s20, 1
      %p137 = por %p135, %p136
      %p139 = scmp.ne.s32.totalorder %s122, %s138
      %p140 = scmp.eq.s32.totalorder %s20, 0
      %p141 = por %p139, %p140
      %s143 = sadd.s32 %s142, 1
      %p146 = scmp.eq.s32.totalorder %s14, 1
      %p147 = scmp.ne.s32.totalorder %s142, %s144
      %p148 = scmp.eq.s32.totalorder %s14, 0
      %p149 = por %p147, %p148
      %p150 = scmp.ne.s32.totalorder %s142, %s144
      %p151 = scmp.eq.s32.totalorder %s19, 1
      %p152 = por %p150, %p151
      %p153 = scmp.ne.s32.totalorder %s144, %s145
      %p154 = scmp.eq.s32.totalorder %s19, 0
      %p155 = por %p153, %p154
      %p156 = scmp.ne.s32.totalorder %s144, %s145
      %p157 = scmp.eq.s32.totalorder %s20, 1
      %p158 = por %p156, %p157
      %p160 = scmp.ne.s32.totalorder %s145, %s159
      %p161 = scmp.eq.s32.totalorder %s20, 0
      %p162 = por %p160, %p161
      %s163 = ssub.s32 %s21, %s33
      %s164 = ssub.s32 %s22, %s29
      %s165 = sor.u32 %s163, %s164
      %p166 = scmp.eq.s32.totalorder %s165, 0
      %s168 = sadd.s32 %s167, 1
      %s169 = scalar_select %p166, %s167, %s168
      %p172 = pneg %p166
      %p173 = scmp.eq.s32.totalorder %s14, 1
      %p174 = por %p172, %p173
      %p175 = scmp.ne.s32.totalorder %s167, %s170
      %p176 = scmp.eq.s32.totalorder %s14, 0
      %p177 = por %p175, %p176
      %p178 = scmp.ne.s32.totalorder %s167, %s170
      %p179 = scmp.eq.s32.totalorder %s19, 1
      %p180 = por %p178, %p179
      %p181 = scmp.ne.s32.totalorder %s170, %s171
      %p182 = scmp.eq.s32.totalorder %s19, 0
      %p183 = por %p181, %p182
      %p184 = scmp.ne.s32.totalorder %s170, %s171
      %p185 = scmp.eq.s32.totalorder %s20, 1
      %p186 = por %p184, %p185
      %p188 = scmp.ne.s32.totalorder %s171, %s187
      %p189 = scmp.eq.s32.totalorder %s20, 0
      %p190 = por %p188, %p189
      %p191 = scmp.le.s32.totalorder 1, %s14
      %p192 = scmp.lt.s32.totalorder %s14, 3
      %p193 = pnand %p191, %p192
      %p194 = pneg %p193
      // Predicated region
      $region9: #{downsampling_block_forward.5} parent=5 // pred_check
        _
      $region10: #{downsampling_block_forward.5} parent=5 // pred_check_branch
        %196 = sbr.rel (%p193) target = $region12
      $region11: #{downsampling_block_forward.5} parent=5 // pred_region
        %s197 = ssub.s32 %s14, 1
        // Predicated region
        $region13: #{downsampling_block_forward.5} parent=11 // pred_check
          %p198 = pneg %p155
        $region14: #{downsampling_block_forward.5} parent=11 // pred_check_branch
          %200 = sbr.rel (%p198) target = $region16
        $region15: #{downsampling_block_forward.5} parent=11 // pred_region
          _
        $region16: #{downsampling_block_forward.5} parent=11 // pred_fallthru
          _
      $region12: #{downsampling_block_forward.5} parent=5 // pred_fallthru
        _
      %p201 = scmp.lt.s32.totalorder %s14, 2
      // Predicated region
      $region17: #{downsampling_block_forward.5} parent=5 // pred_check
        %p202 = pneg %p201
      $region18: #{downsampling_block_forward.5} parent=5 // pred_check_branch
        %204 = sbr.rel (%p202) target = $region20
      $region19: #{downsampling_block_forward.5} parent=5 // pred_region
        // Predicated region
        $region21: #{downsampling_block_forward.5} parent=19 // pred_check
          %p205 = pneg %p48
        $region22: #{downsampling_block_forward.5} parent=19 // pred_check_branch
          %207 = sbr.rel (%p205) target = $region24
        $region23: #{downsampling_block_forward.5} parent=19 // pred_region
          %s208 = smul.u32 8, %s22
          %p209 = scmp.lt.s32.totalorder %s21, 1
          %s210 = scalar_select %p209, %s21, 1
          %p211 = scmp.lt.s32.totalorder %s208, 7
          %s212 = scalar_select %p211, %s208, 7
          %s213 = smul.addr %s210, 8
          %s214 = sadd.s32 %s212, %s213
          %s215 = smul.addr %s214, 4
          %s216 = scalar_lea.vmem %s0, %s215
          %s217 = smul.u32 8, %s22
        $region24: #{downsampling_block_forward.5} parent=19 // pred_fallthru
          _
        // Predicated region
        $region25: #{downsampling_block_forward.5} parent=19 // pred_check
          %p218 = pneg %p74
        $region26: #{downsampling_block_forward.5} parent=19 // pred_check_branch
          %220 = sbr.rel (%p218) target = $region28
        $region27: #{downsampling_block_forward.5} parent=19 // pred_region
          %p221 = scmp.lt.s32.totalorder %s21, 1
          %s222 = scalar_select %p221, %s21, 1
          %s223 = scalar_lea.vmem %s1, %s222
        $region28: #{downsampling_block_forward.5} parent=19 // pred_fallthru
          _
        // Predicated region
        $region29: #{downsampling_block_forward.5} parent=19 // pred_check
          %p224 = pneg %p100
        $region30: #{downsampling_block_forward.5} parent=19 // pred_check_branch
          %226 = sbr.rel (%p224) target = $region32
        $region31: #{downsampling_block_forward.5} parent=19 // pred_region
          %p227 = scmp.lt.s32.totalorder %s21, 1
          %s228 = scalar_select %p227, %s21, 1
          %s229 = scalar_lea.vmem %s2, %s228
        $region32: #{downsampling_block_forward.5} parent=19 // pred_fallthru
          _
        // Predicated region
        $region33: #{downsampling_block_forward.5} parent=19 // pred_check
          %p230 = pneg %p128
        $region34: #{downsampling_block_forward.5} parent=19 // pred_check_branch
          %232 = sbr.rel (%p230) target = $region36
        $region35: #{downsampling_block_forward.5} parent=19 // pred_region
          %s233 = smul.u32 8, %s22
          %p234 = scmp.lt.s32.totalorder %s21, 1
          %s235 = scalar_select %p234, %s21, 1
          %p236 = scmp.lt.s32.totalorder %s233, 7
          %s237 = scalar_select %p236, %s233, 7
          %s238 = smul.addr %s235, 8
          %s239 = sadd.s32 %s237, %s238
          %s240 = smul.addr %s239, 4
          %s241 = scalar_lea.vmem %s3, %s240
          %s242 = smul.u32 8, %s22
        $region36: #{downsampling_block_forward.5} parent=19 // pred_fallthru
          _
      $region20: #{downsampling_block_forward.5} parent=5 // pred_fallthru
        _
      %p243 = scmp.le.s32.totalorder 1, %s14
      %p244 = scmp.lt.s32.totalorder %s14, 3
      %p245 = pnand %p243, %p244
      %p246 = pneg %p245
      // Predicated region
      $region37: #{downsampling_block_forward.5} parent=5 // pred_check
        _
      $region38: #{downsampling_block_forward.5} parent=5 // pred_check_branch
        %248 = sbr.rel (%p245) target = $region40
      $region39: #{downsampling_block_forward.5} parent=5 // pred_region
        %s249 = ssub.s32 %s14, 1
        %s250 = smul.u32 8, %s24
        %p251 = scmp.lt.s32.totalorder %s23, 1
        %s252 = scalar_select %p251, %s23, 1
        %p253 = scmp.lt.s32.totalorder %s250, 7
        %s254 = scalar_select %p253, %s250, 7
        %s255 = smul.addr %s252, 8
        %s256 = sadd.s32 %s254, %s255
        %s257 = smul.addr %s256, 4
        %s258 = scalar_lea.vmem %s0, %s257
        %p259 = pneg %p54
        %p260 = pneg %p51
        %p261 = scmp.lt.s32.totalorder %s23, 1
        %s262 = scalar_select %p261, %s23, 1
        %s263 = scalar_lea.vmem %s1, %s262
        %p264 = pneg %p80
        %p265 = pneg %p77
        %p266 = scmp.lt.s32.totalorder %s23, 1
        %s267 = scalar_select %p266, %s23, 1
        %s268 = scalar_lea.vmem %s2, %s267
        %p269 = pneg %p106
        %p270 = pneg %p103
        %s271 = smul.u32 8, %s24
        %p272 = scmp.lt.s32.totalorder %s23, 1
        %s273 = scalar_select %p272, %s23, 1
        %p274 = scmp.lt.s32.totalorder %s271, 7
        %s275 = scalar_select %p274, %s271, 7
        %s276 = smul.addr %s273, 8
        %s277 = sadd.s32 %s275, %s276
        %s278 = smul.addr %s277, 4
        %s279 = scalar_lea.vmem %s3, %s278
        %p280 = pneg %p134
        %p281 = pneg %p131
        %p282 = pneg %p155
        %p283 = pneg %p152
        %p284 = pneg %p183
        %p285 = pneg %p180
        %s286 = sand.u32 %s170, 1
        %s287 = scalar_lea.sflag [#allocation3], %s286
        %s288 = sand.u32 %s170, 1
        %s289 = smul.addr %s288, 64
        %s290 = scalar_lea.vmem [#allocation2], %s289
        %s291 = smul.u32 8, %s24
        %p292 = scmp.lt.s32.totalorder %s23, 1
        %s293 = scalar_select %p292, %s23, 1
        %p294 = scmp.lt.s32.totalorder %s291, 7
        %s295 = scalar_select %p294, %s291, 7
        %s296 = smul.addr %s293, 8
        %s297 = sadd.s32 %s295, %s296
        %s298 = smul.addr %s297, 4
        %s299 = scalar_lea.vmem %s0, %s298
        %s300 = smul.u32 8, %s24
        %p301 = scmp.lt.s32.totalorder %s23, 1
        %s302 = scalar_select %p301, %s23, 1
        %s303 = scalar_lea.vmem %s1, %s302
        %p304 = scmp.lt.s32.totalorder %s23, 1
        %s305 = scalar_select %p304, %s23, 1
        %s306 = scalar_lea.vmem %s2, %s305
        %s307 = smul.u32 8, %s24
        %p308 = scmp.lt.s32.totalorder %s23, 1
        %s309 = scalar_select %p308, %s23, 1
        %p310 = scmp.lt.s32.totalorder %s307, 7
        %s311 = scalar_select %p310, %s307, 7
        %s312 = smul.addr %s309, 8
        %s313 = sadd.s32 %s311, %s312
        %s314 = smul.addr %s313, 4
        %s315 = scalar_lea.vmem %s3, %s314
        %s316 = smul.u32 8, %s24
        %s317 = smul.u32 8, %s24
        %v319 = vld [vmem:[%s299] sm:$0xf]
        %v320 = vld [vmem:[%s299 + $0x4] sm:$0xf]
        %v321 = vld [vmem:[%s299 + $0x8] sm:$0xf]
        %v322 = vld [vmem:[%s299 + $0xc] sm:$0xf]
        %v323 = vld [vmem:[%s299 + $0x10] sm:$0xf]
        %v324 = vld [vmem:[%s299 + $0x14] sm:$0xf]
        %v325 = vld [vmem:[%s299 + $0x18] sm:$0xf]
        %v326 = vld [vmem:[%s299 + $0x1c] sm:$0xf]
        %v327 = vunpack.c.l.bf16 %v319
        %v328 = vunpack.c.l.bf16 %v320
        %v329 = vunpack.c.l.bf16 %v321
        %v330 = vunpack.c.l.bf16 %v322
        %v331 = vunpack.c.l.bf16 %v323
        %v332 = vunpack.c.l.bf16 %v324
        %v333 = vunpack.c.l.bf16 %v325
        %v334 = vunpack.c.l.bf16 %v326
        %v335 = vld [vmem:[%s303] sm:$0x1]
        %v337 = vperm.slane %v335, 0
        %v339 = vsub.f32 %v327, %v337
        %v340 = vsub.f32 %v328, %v337
        %v341 = vsub.f32 %v329, %v337
        %v342 = vsub.f32 %v330, %v337
        %v343 = vsub.f32 %v331, %v337
        %v344 = vsub.f32 %v332, %v337
        %v345 = vsub.f32 %v333, %v337
        %v346 = vsub.f32 %v334, %v337
        %v347 = vld [vmem:[%s306] sm:$0x1]
        %v349 = vperm.slane %v347, 0
        %v351 = vmul.f32 %v339, %v349
        %v352 = vmul.f32 %v340, %v349
        %v353 = vmul.f32 %v341, %v349
        %v354 = vmul.f32 %v342, %v349
        %v355 = vmul.f32 %v343, %v349
        %v356 = vmul.f32 %v344, %v349
        %v357 = vmul.f32 %v345, %v349
        %v358 = vmul.f32 %v346, %v349
        %vm359 = vcmp.ge.f32.partialorder %v351, 0.0
        %vm360 = vcmp.ge.f32.partialorder %v352, 0.0
        %vm361 = vcmp.ge.f32.partialorder %v353, 0.0
        %vm362 = vcmp.ge.f32.partialorder %v354, 0.0
        %vm363 = vcmp.ge.f32.partialorder %v355, 0.0
        %vm364 = vcmp.ge.f32.partialorder %v356, 0.0
        %vm365 = vcmp.ge.f32.partialorder %v357, 0.0
        %vm366 = vcmp.ge.f32.partialorder %v358, 0.0
        %v367 = vmul.f32 %v351, 0.01
        %v368 = vmul.f32 %v352, 0.01
        %v369 = vmul.f32 %v353, 0.01
        %v370 = vmul.f32 %v354, 0.01
        %v371 = vmul.f32 %v355, 0.01
        %v372 = vmul.f32 %v356, 0.01
        %v373 = vmul.f32 %v357, 0.01
        %v374 = vmul.f32 %v358, 0.01
        %v375 = vsel %vm359, %v351, %v367
        %v376 = vsel %vm360, %v352, %v368
        %v377 = vsel %vm361, %v353, %v369
        %v378 = vsel %vm362, %v354, %v370
        %v379 = vsel %vm363, %v355, %v371
        %v380 = vsel %vm364, %v356, %v372
        %v381 = vsel %vm365, %v357, %v373
        %v382 = vsel %vm366, %v358, %v374
        %v383 = vld [vmem:[%s315] sm:$0xf]
        %v384 = vld [vmem:[%s315 + $0x4] sm:$0xf]
        %v385 = vld [vmem:[%s315 + $0x8] sm:$0xf]
        %v386 = vld [vmem:[%s315 + $0xc] sm:$0xf]
        %v387 = vld [vmem:[%s315 + $0x10] sm:$0xf]
        %v388 = vld [vmem:[%s315 + $0x14] sm:$0xf]
        %v389 = vld [vmem:[%s315 + $0x18] sm:$0xf]
        %v390 = vld [vmem:[%s315 + $0x1c] sm:$0xf]
        %v391 = vld [vmem:[%s4] sm:$0x3]
        %v400 = vunpack.c.l.b16 %v383
        %v401 = vunpack.c.l.b16 %v384
        %v402 = vunpack.c.l.b16 %v385
        %v403 = vunpack.c.l.b16 %v386
        %v404 = vunpack.c.l.b16 %v387
        %v405 = vunpack.c.l.b16 %v388
        %v406 = vunpack.c.l.b16 %v389
        %v407 = vunpack.c.l.b16 %v390
        %v408 = vpack.c.b16 %v401, %v400
        %v409 = vpack.c.b16 %v403, %v402
        %v410 = vpack.c.b16 %v405, %v404
        %v411 = vpack.c.b16 %v407, %v406
        %vm412 = vcmask 31744
        %v414 = vsel %vm412, %v408, 0
        %v417 = vsel %vm412, %v409, 0
        %v420 = vsel %vm412, %v410, 0
        %v423 = vsel %vm412, %v411, 0
        %vm425 = vcmask 1041408
        %v427 = vsel %vm425, %v391, 0
        %429 = vmatpush.bf16.msra.mxu0 0
        %430 = vmatpush.bf16.msra.mxu0 0
        %431 = vmatpush.bf16.msra.mxu0 0
        %432 = vmatpush.bf16.msra.mxu0 0
        %433 = vmatpush.bf16.msra.mxu0 0
        %434 = vmatpush.bf16.msra.mxu0 0
        %435 = vmatpush.bf16.msra.mxu0 0
        %436 = vmatpush.bf16.msra.mxu0 %v427
        %437 = vmatmul.bf16.gmra.mxu0 %v414
        %v438 = vpop.f32.mrf.mxu0
        %v439 = vadd.f32 0.0, %v438
        %v440 = vpop.f32.mrf.mxu0
        %v441 = vadd.f32 0.0, %v440
        %442 = vmatmul.bf16.gmra.mxu0 %v417
        %v443 = vpop.f32.mrf.mxu0
        %v444 = vadd.f32 0.0, %v443
        %v445 = vpop.f32.mrf.mxu0
        %v446 = vadd.f32 0.0, %v445
        %447 = vmatmul.bf16.gmra.mxu0 %v420
        %v448 = vpop.f32.mrf.mxu0
        %v449 = vadd.f32 0.0, %v448
        %v450 = vpop.f32.mrf.mxu0
        %v451 = vadd.f32 0.0, %v450
        %452 = vmatmul.bf16.gmra.mxu0 %v423
        %v453 = vpop.f32.mrf.mxu0
        %v454 = vadd.f32 0.0, %v453
        %v455 = vpop.f32.mrf.mxu0
        %v456 = vadd.f32 0.0, %v455
        %457 = vdwg.mxu0
        %v458 = vadd.f32 %v375, %v439
        %v459 = vadd.f32 %v376, %v441
        %v460 = vadd.f32 %v377, %v444
        %v461 = vadd.f32 %v378, %v446
        %v462 = vadd.f32 %v379, %v449
        %v463 = vadd.f32 %v380, %v451
        %v464 = vadd.f32 %v381, %v454
        %v465 = vadd.f32 %v382, %v456
        %466 = vst [vmem:[%s290] sm:$0xff] %v458
        %467 = vst [vmem:[%s290 + $0x8] sm:$0xff] %v459
        %468 = vst [vmem:[%s290 + $0x10] sm:$0xff] %v460
        %469 = vst [vmem:[%s290 + $0x18] sm:$0xff] %v461
        %470 = vst [vmem:[%s290 + $0x20] sm:$0xff] %v462
        %471 = vst [vmem:[%s290 + $0x28] sm:$0xff] %v463
        %472 = vst [vmem:[%s290 + $0x30] sm:$0xff] %v464
        %473 = vst [vmem:[%s290 + $0x38] sm:$0xff] %v465
        %s474 = sand.u32 %s170, 1
        %s475 = scalar_lea.sflag [#allocation3], %s474
        %s476 = sand.u32 %s170, 1
        %s477 = smul.addr %s476, 64
        %s478 = scalar_lea.vmem [#allocation2], %s477
        // Predicated region
        $region41: #{downsampling_block_forward.5} parent=39 // pred_check
          %p479 = pneg %p180
        $region42: #{downsampling_block_forward.5} parent=39 // pred_check_branch
          %481 = sbr.rel (%p479) target = $region44
        $region43: #{downsampling_block_forward.5} parent=39 // pred_region
          %s482 = smul.u32 8, %s24
          %484 = vsyncadd %s475, 0
          %s485 = smul.addr %s23, 8
          %s486 = sadd.s32 %s482, %s485
          %s487 = smul.addr %s486, 8
          %s488 = scalar_lea.hbm %s5, %s487
          %s489 = sshll.u32 %s478, 4
          %s490 = int_to_ptr.vmem [resolvable:$true] %s489
          %s491 = sshll.u32 %s488, 4
          %s492 = int_to_ptr.hbm [resolvable:$true] %s491
          %497 = dma.vmem_to_hbm [thread:$0]  %s490, 1024, %s492, %s475, 128, 128, 8
        $region44: #{downsampling_block_forward.5} parent=39 // pred_fallthru
          _
      $region40: #{downsampling_block_forward.5} parent=5 // pred_fallthru
        _
      %p498 = scmp.le.s32.totalorder 2, %s14
      // Predicated region
      $region45: #{downsampling_block_forward.5} parent=5 // pred_check
        %p499 = pneg %p498
      $region46: #{downsampling_block_forward.5} parent=5 // pred_check_branch
        %501 = sbr.rel (%p499) target = $region48
      $region47: #{downsampling_block_forward.5} parent=5 // pred_region
        %s502 = ssub.s32 %s14, 2
        // Predicated region
        $region49: #{downsampling_block_forward.5} parent=47 // pred_check
          %p503 = pneg %p186
        $region50: #{downsampling_block_forward.5} parent=47 // pred_check_branch
          %505 = sbr.rel (%p503) target = $region52
        $region51: #{downsampling_block_forward.5} parent=47 // pred_region
          %s506 = sand.u32 %s171, 1
          %s507 = scalar_lea.sflag [#allocation3], %s506
          %s508 = sand.u32 %s171, 1
          %s509 = smul.addr %s508, 64
          %s510 = scalar_lea.vmem [#allocation2], %s509
          %512 = dma.done %s507, 1024
        $region52: #{downsampling_block_forward.5} parent=47 // pred_fallthru
          _
      $region48: #{downsampling_block_forward.5} parent=5 // pred_fallthru
        _
    $region6: #{downsampling_block_forward.5} parent=1 // loop_footer
      %s18 = sadd.s32 1, %s14
    $region7: #{downsampling_block_forward.5} parent=1 // loop_footer_branch
      %13 = sbr.rel target = $region3
    $region8: #{downsampling_block_forward.5} parent=1 // loop_exit
      _
    %513 = vsyncpa [#allocation3], 1
    %s514 = scalar_lea.sflag [#allocation3], 1
    %515 = vsyncpa %s514, 1

// kernel: downsampling_block_forward.4
$region0: #{downsampling_block_forward.4}
  #allocation0 [shape = 'u32[]', space=smem, size = 0x4, offset = 0x4, fixed_abs, tag = 'smem constant byte address 0x4 - core index']
  #allocation1 [shape = 'u32[72,128]{1,0:T(1,128)}', space=vmem, size = 0x9000, scoped, tag = 'internal scratch']
  %s0 = inlined_call_operand.vmem [shape: bf16[2,6,24,384], index: 0, kind: input, shape index: {}, may-alias: {0,1,2}]
  %s1 = inlined_call_operand.vmem [shape: bf16[2,6,24,384], index: 1, kind: input, shape index: {}, may-alias: {0,1,2}]
  %s2 = inlined_call_operand.vmem [shape: bf16[2,6,24,384], index: 2, kind: input, shape index: {}, may-alias: {0,1,2}]
  %s3 = inlined_call_operand.vmem [shape: bf16[3,3,384,128], index: 3, kind: input, shape index: {}]
  %s4 = inlined_call_operand.vmem [shape: f32[1,128], index: 4, kind: input, shape index: {}]
  %s5 = inlined_call_operand.vmem [shape: bf16[2,4,16,128], index: 5, kind: output, shape index: {0}]
  %s6 = inlined_call_operand.vmem [shape: f32[2,1,128], index: 6, kind: output, shape index: {1}]
  %s7 = inlined_call_operand.vmem [shape: f32[2,1,128], index: 7, kind: output, shape index: {2}]
  %8 = xla_tuple %s5, %s6, %s7
  %s9 = sld [smem:[#allocation0]]
  $region73: #{downsampling_block_forward.4} parent=0
    _
  %s11 = ssub.s32 1, %s9
  %s12 = scalar_select 0, %s11, %s9
  loop: start=0, step=1, limit=10
  $region2: #{downsampling_block_forward.4} parent=0 // loop_pre_header
    _
  $region3: #{downsampling_block_forward.4} parent=0 // loop_header
    %s14 = sphi 0, %s18
    %p15 = scmp.ge.s32.totalorder %s14, 10
    %s21 = sphi 0, %s33
    %s22 = sphi 0, %s29
    %s23 = sphi 0, %s21
    %s24 = sphi 0, %s22
    %s25 = sphi 0, %s23
    %s26 = sphi 0, %s24
    %s38 = sphi 0, %s40
    %s41 = sphi 0, %s38
    %s42 = sphi 0, %s41
    %s58 = sphi 0, %s42
    %s68 = sphi 0, %s70
    %s71 = sphi 0, %s68
    %s72 = sphi 0, %s71
    %s88 = sphi 0, %s72
    %s98 = sphi 0, %s100
    %s101 = sphi 0, %s98
    %s102 = sphi 0, %s101
    %s118 = sphi 0, %s102
    %s122 = sphi 0, %s122
    %s124 = sphi 0, %s122
    %s125 = sphi 0, %s124
    %s139 = sphi 0, %s125
    %s143 = sphi 0, %s143
    %s145 = sphi 0, %s143
    %s146 = sphi 0, %s145
    %s160 = sphi 0, %s146
    %s168 = sphi 0, %s170
    %s171 = sphi 0, %s168
    %s172 = sphi 0, %s171
    %s188 = sphi 0, %s172
    %s194 = sphi 0, %s196
    %s197 = sphi 0, %s194
    %s198 = sphi 0, %s197
    %s214 = sphi 0, %s198
    %s220 = sphi 0, %s222
    %s223 = sphi 0, %s220
    %s224 = sphi 0, %s223
    %s240 = sphi 0, %s224
  $region4: #{downsampling_block_forward.4} parent=0 // loop_header_branch
    %17 = sbr.rel (%p15) target = $region8
  $region5: #{downsampling_block_forward.4} parent=0 // loop_body
    %s19 = ssub.s32 %s14, 1
    %s20 = ssub.s32 %s14, 2
    %s27 = sadd.s32 1, %s22
    %p28 = scmp.ge.s32.totalorder %s27, 4
    %s29 = scalar_select %p28, 0, %s27
    %s30 = sadd.s32 1, %s21
    %s31 = scalar_select %p28, %s30, %s21
    %p32 = scmp.ge.s32.totalorder %s31, 2
    %s33 = scalar_select %p32, 0, %s31
    %s34 = ssub.s32 %s21, %s33
    %s35 = ssub.s32 %s22, %s29
    %s36 = sor.u32 %s34, %s35
    %p37 = scmp.eq.s32.totalorder %s36, 0
    %s39 = sadd.s32 %s38, 1
    %s40 = scalar_select %p37, %s38, %s39
    %p43 = pneg %p37
    %p44 = scmp.eq.s32.totalorder %s14, 7
    %p45 = por %p43, %p44
    %p46 = scmp.ne.s32.totalorder %s38, %s41
    %p47 = scmp.eq.s32.totalorder %s14, 0
    %p48 = por %p46, %p47
    %p49 = scmp.ne.s32.totalorder %s38, %s41
    %p50 = scmp.eq.s32.totalorder %s19, 7
    %p51 = por %p49, %p50
    %p52 = scmp.ne.s32.totalorder %s41, %s42
    %p53 = scmp.eq.s32.totalorder %s19, 0
    %p54 = por %p52, %p53
    %p55 = scmp.ne.s32.totalorder %s41, %s42
    %p56 = scmp.eq.s32.totalorder %s20, 7
    %p57 = por %p55, %p56
    %p59 = scmp.ne.s32.totalorder %s42, %s58
    %p60 = scmp.eq.s32.totalorder %s20, 0
    %p61 = por %p59, %p60
    %s62 = sadd.s32 %s22, 1
    %s63 = sadd.s32 %s29, 1
    %s64 = ssub.s32 %s21, %s33
    %s65 = ssub.s32 %s62, %s63
    %s66 = sor.u32 %s64, %s65
    %p67 = scmp.eq.s32.totalorder %s66, 0
    %s69 = sadd.s32 %s68, 1
    %s70 = scalar_select %p67, %s68, %s69
    %p73 = pneg %p67
    %p74 = scmp.eq.s32.totalorder %s14, 7
    %p75 = por %p73, %p74
    %p76 = scmp.ne.s32.totalorder %s68, %s71
    %p77 = scmp.eq.s32.totalorder %s14, 0
    %p78 = por %p76, %p77
    %p79 = scmp.ne.s32.totalorder %s68, %s71
    %p80 = scmp.eq.s32.totalorder %s19, 7
    %p81 = por %p79, %p80
    %p82 = scmp.ne.s32.totalorder %s71, %s72
    %p83 = scmp.eq.s32.totalorder %s19, 0
    %p84 = por %p82, %p83
    %p85 = scmp.ne.s32.totalorder %s71, %s72
    %p86 = scmp.eq.s32.totalorder %s20, 7
    %p87 = por %p85, %p86
    %p89 = scmp.ne.s32.totalorder %s72, %s88
    %p90 = scmp.eq.s32.totalorder %s20, 0
    %p91 = por %p89, %p90
    %s92 = sadd.s32 %s22, 2
    %s93 = sadd.s32 %s29, 2
    %s94 = ssub.s32 %s21, %s33
    %s95 = ssub.s32 %s92, %s93
    %s96 = sor.u32 %s94, %s95
    %p97 = scmp.eq.s32.totalorder %s96, 0
    %s99 = sadd.s32 %s98, 1
    %s100 = scalar_select %p97, %s98, %s99
    %p103 = pneg %p97
    %p104 = scmp.eq.s32.totalorder %s14, 7
    %p105 = por %p103, %p104
    %p106 = scmp.ne.s32.totalorder %s98, %s101
    %p107 = scmp.eq.s32.totalorder %s14, 0
    %p108 = por %p106, %p107
    %p109 = scmp.ne.s32.totalorder %s98, %s101
    %p110 = scmp.eq.s32.totalorder %s19, 7
    %p111 = por %p109, %p110
    %p112 = scmp.ne.s32.totalorder %s101, %s102
    %p113 = scmp.eq.s32.totalorder %s19, 0
    %p114 = por %p112, %p113
    %p115 = scmp.ne.s32.totalorder %s101, %s102
    %p116 = scmp.eq.s32.totalorder %s20, 7
    %p117 = por %p115, %p116
    %p119 = scmp.ne.s32.totalorder %s102, %s118
    %p120 = scmp.eq.s32.totalorder %s20, 0
    %p121 = por %p119, %p120
    %s123 = sadd.s32 %s122, 1
    %p126 = scmp.eq.s32.totalorder %s14, 7
    %p127 = scmp.ne.s32.totalorder %s122, %s124
    %p128 = scmp.eq.s32.totalorder %s14, 0
    %p129 = por %p127, %p128
    %p130 = scmp.ne.s32.totalorder %s122, %s124
    %p131 = scmp.eq.s32.totalorder %s19, 7
    %p132 = por %p130, %p131
    %p133 = scmp.ne.s32.totalorder %s124, %s125
    %p134 = scmp.eq.s32.totalorder %s19, 0
    %p135 = por %p133, %p134
    %p136 = scmp.ne.s32.totalorder %s124, %s125
    %p137 = scmp.eq.s32.totalorder %s20, 7
    %p138 = por %p136, %p137
    %p140 = scmp.ne.s32.totalorder %s125, %s139
    %p141 = scmp.eq.s32.totalorder %s20, 0
    %p142 = por %p140, %p141
    %s144 = sadd.s32 %s143, 1
    %p147 = scmp.eq.s32.totalorder %s14, 7
    %p148 = scmp.ne.s32.totalorder %s143, %s145
    %p149 = scmp.eq.s32.totalorder %s14, 0
    %p150 = por %p148, %p149
    %p151 = scmp.ne.s32.totalorder %s143, %s145
    %p152 = scmp.eq.s32.totalorder %s19, 7
    %p153 = por %p151, %p152
    %p154 = scmp.ne.s32.totalorder %s145, %s146
    %p155 = scmp.eq.s32.totalorder %s19, 0
    %p156 = por %p154, %p155
    %p157 = scmp.ne.s32.totalorder %s145, %s146
    %p158 = scmp.eq.s32.totalorder %s20, 7
    %p159 = por %p157, %p158
    %p161 = scmp.ne.s32.totalorder %s146, %s160
    %p162 = scmp.eq.s32.totalorder %s20, 0
    %p163 = por %p161, %p162
    %s164 = ssub.s32 %s21, %s33
    %s165 = ssub.s32 %s22, %s29
    %s166 = sor.u32 %s164, %s165
    %p167 = scmp.eq.s32.totalorder %s166, 0
    %s169 = sadd.s32 %s168, 1
    %s170 = scalar_select %p167, %s168, %s169
    %p173 = pneg %p167
    %p174 = scmp.eq.s32.totalorder %s14, 7
    %p175 = por %p173, %p174
    %p176 = scmp.ne.s32.totalorder %s168, %s171
    %p177 = scmp.eq.s32.totalorder %s14, 0
    %p178 = por %p176, %p177
    %p179 = scmp.ne.s32.totalorder %s168, %s171
    %p180 = scmp.eq.s32.totalorder %s19, 7
    %p181 = por %p179, %p180
    %p182 = scmp.ne.s32.totalorder %s171, %s172
    %p183 = scmp.eq.s32.totalorder %s19, 0
    %p184 = por %p182, %p183
    %p185 = scmp.ne.s32.totalorder %s171, %s172
    %p186 = scmp.eq.s32.totalorder %s20, 7
    %p187 = por %p185, %p186
    %p189 = scmp.ne.s32.totalorder %s172, %s188
    %p190 = scmp.eq.s32.totalorder %s20, 0
    %p191 = por %p189, %p190
    %s192 = ssub.s32 %s21, %s33
    %p193 = scmp.eq.s32.totalorder %s192, 0
    %s195 = sadd.s32 %s194, 1
    %s196 = scalar_select %p193, %s194, %s195
    %p199 = pneg %p193
    %p200 = scmp.eq.s32.totalorder %s14, 7
    %p201 = por %p199, %p200
    %p202 = scmp.ne.s32.totalorder %s194, %s197
    %p203 = scmp.eq.s32.totalorder %s14, 0
    %p204 = por %p202, %p203
    %p205 = scmp.ne.s32.totalorder %s194, %s197
    %p206 = scmp.eq.s32.totalorder %s19, 7
    %p207 = por %p205, %p206
    %p208 = scmp.ne.s32.totalorder %s197, %s198
    %p209 = scmp.eq.s32.totalorder %s19, 0
    %p210 = por %p208, %p209
    %p211 = scmp.ne.s32.totalorder %s197, %s198
    %p212 = scmp.eq.s32.totalorder %s20, 7
    %p213 = por %p211, %p212
    %p215 = scmp.ne.s32.totalorder %s198, %s214
    %p216 = scmp.eq.s32.totalorder %s20, 0
    %p217 = por %p215, %p216
    %s218 = ssub.s32 %s21, %s33
    %p219 = scmp.eq.s32.totalorder %s218, 0
    %s221 = sadd.s32 %s220, 1
    %s222 = scalar_select %p219, %s220, %s221
    %p225 = pneg %p219
    %p226 = scmp.eq.s32.totalorder %s14, 7
    %p227 = por %p225, %p226
    %p228 = scmp.ne.s32.totalorder %s220, %s223
    %p229 = scmp.eq.s32.totalorder %s14, 0
    %p230 = por %p228, %p229
    %p231 = scmp.ne.s32.totalorder %s220, %s223
    %p232 = scmp.eq.s32.totalorder %s19, 7
    %p233 = por %p231, %p232
    %p234 = scmp.ne.s32.totalorder %s223, %s224
    %p235 = scmp.eq.s32.totalorder %s19, 0
    %p236 = por %p234, %p235
    %p237 = scmp.ne.s32.totalorder %s223, %s224
    %p238 = scmp.eq.s32.totalorder %s20, 7
    %p239 = por %p237, %p238
    %p241 = scmp.ne.s32.totalorder %s224, %s240
    %p242 = scmp.eq.s32.totalorder %s20, 0
    %p243 = por %p241, %p242
    %p244 = scmp.le.s32.totalorder 1, %s14
    %p245 = scmp.lt.s32.totalorder %s14, 9
    %p246 = pnand %p244, %p245
    %p247 = pneg %p246
    // Predicated region
    $region9: #{downsampling_block_forward.4} parent=5 // pred_check
      _
    $region10: #{downsampling_block_forward.4} parent=5 // pred_check_branch
      %249 = sbr.rel (%p246) target = $region12
    $region11: #{downsampling_block_forward.4} parent=5 // pred_region
      %s250 = ssub.s32 %s14, 1
      // Predicated region
      $region13: #{downsampling_block_forward.4} parent=11 // pred_check
        %p251 = pneg %p135
      $region14: #{downsampling_block_forward.4} parent=11 // pred_check_branch
        %253 = sbr.rel (%p251) target = $region16
      $region15: #{downsampling_block_forward.4} parent=11 // pred_region
        _
      $region16: #{downsampling_block_forward.4} parent=11 // pred_fallthru
        _
      // Predicated region
      $region17: #{downsampling_block_forward.4} parent=11 // pred_check
        %p254 = pneg %p156
      $region18: #{downsampling_block_forward.4} parent=11 // pred_check_branch
        %256 = sbr.rel (%p254) target = $region20
      $region19: #{downsampling_block_forward.4} parent=11 // pred_region
        _
      $region20: #{downsampling_block_forward.4} parent=11 // pred_fallthru
        _
    $region12: #{downsampling_block_forward.4} parent=5 // pred_fallthru
      _
    %p257 = scmp.lt.s32.totalorder %s14, 8
    // Predicated region
    $region21: #{downsampling_block_forward.4} parent=5 // pred_check
      %p258 = pneg %p257
    $region22: #{downsampling_block_forward.4} parent=5 // pred_check_branch
      %260 = sbr.rel (%p258) target = $region24
    $region23: #{downsampling_block_forward.4} parent=5 // pred_region
      // Predicated region
      $region25: #{downsampling_block_forward.4} parent=23 // pred_check
        %p261 = pneg %p48
      $region26: #{downsampling_block_forward.4} parent=23 // pred_check_branch
        %263 = sbr.rel (%p261) target = $region28
      $region27: #{downsampling_block_forward.4} parent=23 // pred_region
        %p264 = scmp.lt.s32.totalorder %s21, 1
        %s265 = scalar_select %p264, %s21, 1
        %p266 = scmp.lt.s32.totalorder %s22, 5
        %s267 = scalar_select %p266, %s22, 5
        %s268 = smul.addr %s267, 9
        %s269 = smul.addr %s265, 54
        %s270 = sadd.s32 %s268, %s269
        %s271 = smul.addr %s270, 4
        %s272 = scalar_lea.vmem %s0, %s271
      $region28: #{downsampling_block_forward.4} parent=23 // pred_fallthru
        _
      // Predicated region
      $region29: #{downsampling_block_forward.4} parent=23 // pred_check
        %p273 = pneg %p78
      $region30: #{downsampling_block_forward.4} parent=23 // pred_check_branch
        %275 = sbr.rel (%p273) target = $region32
      $region31: #{downsampling_block_forward.4} parent=23 // pred_region
        %s276 = sadd.s32 %s22, 1
        %p277 = scmp.lt.s32.totalorder %s21, 1
        %s278 = scalar_select %p277, %s21, 1
        %p279 = scmp.lt.s32.totalorder %s276, 5
        %s280 = scalar_select %p279, %s276, 5
        %s281 = smul.addr %s280, 9
        %s282 = smul.addr %s278, 54
        %s283 = sadd.s32 %s281, %s282
        %s284 = smul.addr %s283, 4
        %s285 = scalar_lea.vmem %s1, %s284
        %s286 = sadd.s32 %s22, 1
      $region32: #{downsampling_block_forward.4} parent=23 // pred_fallthru
        _
      // Predicated region
      $region33: #{downsampling_block_forward.4} parent=23 // pred_check
        %p287 = pneg %p108
      $region34: #{downsampling_block_forward.4} parent=23 // pred_check_branch
        %289 = sbr.rel (%p287) target = $region36
      $region35: #{downsampling_block_forward.4} parent=23 // pred_region
        %s290 = sadd.s32 %s22, 2
        %p291 = scmp.lt.s32.totalorder %s21, 1
        %s292 = scalar_select %p291, %s21, 1
        %p293 = scmp.lt.s32.totalorder %s290, 5
        %s294 = scalar_select %p293, %s290, 5
        %s295 = smul.addr %s294, 9
        %s296 = smul.addr %s292, 54
        %s297 = sadd.s32 %s295, %s296
        %s298 = smul.addr %s297, 4
        %s299 = scalar_lea.vmem %s2, %s298
        %s300 = sadd.s32 %s22, 2
      $region36: #{downsampling_block_forward.4} parent=23 // pred_fallthru
        _
    $region24: #{downsampling_block_forward.4} parent=5 // pred_fallthru
      _
    %p301 = scmp.le.s32.totalorder 1, %s14
    %p302 = scmp.lt.s32.totalorder %s14, 9
    %p303 = pnand %p301, %p302
    %p304 = pneg %p303
    // Predicated region
    $region37: #{downsampling_block_forward.4} parent=5 // pred_check
      _
    $region38: #{downsampling_block_forward.4} parent=5 // pred_check_branch
      %306 = sbr.rel (%p303) target = $region40
    $region39: #{downsampling_block_forward.4} parent=5 // pred_region
      %s307 = ssub.s32 %s14, 1
      %p308 = scmp.lt.s32.totalorder %s23, 1
      %s309 = scalar_select %p308, %s23, 1
      %p310 = scmp.lt.s32.totalorder %s24, 5
      %s311 = scalar_select %p310, %s24, 5
      %s312 = smul.addr %s311, 9
      %s313 = smul.addr %s309, 54
      %s314 = sadd.s32 %s312, %s313
      %s315 = smul.addr %s314, 4
      %s316 = scalar_lea.vmem %s0, %s315
      %p317 = pneg %p54
      %p318 = pneg %p51
      %s319 = sadd.s32 %s24, 1
      %p320 = scmp.lt.s32.totalorder %s23, 1
      %s321 = scalar_select %p320, %s23, 1
      %p322 = scmp.lt.s32.totalorder %s319, 5
      %s323 = scalar_select %p322, %s319, 5
      %s324 = smul.addr %s323, 9
      %s325 = smul.addr %s321, 54
      %s326 = sadd.s32 %s324, %s325
      %s327 = smul.addr %s326, 4
      %s328 = scalar_lea.vmem %s1, %s327
      %p329 = pneg %p84
      %p330 = pneg %p81
      %s331 = sadd.s32 %s24, 2
      %p332 = scmp.lt.s32.totalorder %s23, 1
      %s333 = scalar_select %p332, %s23, 1
      %p334 = scmp.lt.s32.totalorder %s331, 5
      %s335 = scalar_select %p334, %s331, 5
      %s336 = smul.addr %s335, 9
      %s337 = smul.addr %s333, 54
      %s338 = sadd.s32 %s336, %s337
      %s339 = smul.addr %s338, 4
      %s340 = scalar_lea.vmem %s2, %s339
      %p341 = pneg %p114
      %p342 = pneg %p111
      %p343 = pneg %p135
      %p344 = pneg %p132
      %p345 = pneg %p156
      %p346 = pneg %p153
      %p347 = pneg %p184
      %p348 = pneg %p181
      %p349 = scmp.lt.s32.totalorder %s23, 1
      %s350 = scalar_select %p349, %s23, 1
      %p351 = scmp.lt.s32.totalorder %s24, 3
      %s352 = scalar_select %p351, %s24, 3
      %s353 = smul.addr %s352, 2
      %s354 = smul.addr %s350, 8
      %s355 = sadd.s32 %s353, %s354
      %s356 = smul.addr %s355, 4
      %s357 = scalar_lea.vmem %s5, %s356
      %p358 = pneg %p210
      %p359 = pneg %p207
      %p360 = scmp.lt.s32.totalorder %s23, 1
      %s361 = scalar_select %p360, %s23, 1
      %s362 = scalar_lea.vmem %s6, %s361
      %p363 = pneg %p236
      %p364 = pneg %p233
      %p365 = scmp.lt.s32.totalorder %s23, 1
      %s366 = scalar_select %p365, %s23, 1
      %s367 = scalar_lea.vmem %s7, %s366
      %p368 = scmp.lt.s32.totalorder %s23, 1
      %s369 = scalar_select %p368, %s23, 1
      %p370 = scmp.lt.s32.totalorder %s24, 5
      %s371 = scalar_select %p370, %s24, 5
      %s372 = smul.addr %s371, 9
      %s373 = smul.addr %s369, 54
      %s374 = sadd.s32 %s372, %s373
      %s375 = smul.addr %s374, 4
      %s376 = scalar_lea.vmem %s0, %s375
      %s377 = sadd.s32 %s24, 1
      %p378 = scmp.lt.s32.totalorder %s23, 1
      %s379 = scalar_select %p378, %s23, 1
      %p380 = scmp.lt.s32.totalorder %s377, 5
      %s381 = scalar_select %p380, %s377, 5
      %s382 = smul.addr %s381, 9
      %s383 = smul.addr %s379, 54
      %s384 = sadd.s32 %s382, %s383
      %s385 = smul.addr %s384, 4
      %s386 = scalar_lea.vmem %s1, %s385
      %s387 = sadd.s32 %s24, 1
      %s388 = sadd.s32 %s24, 2
      %p389 = scmp.lt.s32.totalorder %s23, 1
      %s390 = scalar_select %p389, %s23, 1
      %p391 = scmp.lt.s32.totalorder %s388, 5
      %s392 = scalar_select %p391, %s388, 5
      %s393 = smul.addr %s392, 9
      %s394 = smul.addr %s390, 54
      %s395 = sadd.s32 %s393, %s394
      %s396 = smul.addr %s395, 4
      %s397 = scalar_lea.vmem %s2, %s396
      %s398 = sadd.s32 %s24, 2
      %p399 = scmp.lt.s32.totalorder %s23, 1
      %s400 = scalar_select %p399, %s23, 1
      %p401 = scmp.lt.s32.totalorder %s24, 3
      %s402 = scalar_select %p401, %s24, 3
      %s403 = smul.addr %s402, 2
      %s404 = smul.addr %s400, 8
      %s405 = sadd.s32 %s403, %s404
      %s406 = smul.addr %s405, 4
      %s407 = scalar_lea.vmem %s5, %s406
      %p408 = scmp.lt.s32.totalorder %s23, 1
      %s409 = scalar_select %p408, %s23, 1
      %s410 = scalar_lea.vmem %s6, %s409
      %p411 = scmp.lt.s32.totalorder %s23, 1
      %s412 = scalar_select %p411, %s23, 1
      %s413 = scalar_lea.vmem %s7, %s412
      %p414 = scmp.eq.s32.totalorder %s24, 0
      // Predicated region
      $region41: #{downsampling_block_forward.4} parent=39 // pred_check
        %p415 = pneg %p414
      $region42: #{downsampling_block_forward.4} parent=39 // pred_check_branch
        %417 = sbr.rel (%p415) target = $region44
      $region43: #{downsampling_block_forward.4} parent=39 // pred_region
        %418 = vst [vmem:[%s410] sm:$0x1] 0.0
        %419 = vst [vmem:[%s413] sm:$0x1] 0.0
      $region44: #{downsampling_block_forward.4} parent=39 // pred_fallthru
        _
      %v420 = vld [vmem:[%s376] sm:$0xff]
      %v421 = vld [vmem:[%s376 + $0x8] sm:$0xf]
      %v422 = vld [vmem:[%s376 + $0xc] sm:$0xff]
      %v423 = vld [vmem:[%s376 + $0x14] sm:$0xf]
      %v424 = vld [vmem:[%s3] sm:$0xf]
      %v425 = vld [vmem:[%s3 + $0x4] sm:$0xf]
      %v426 = vld [vmem:[%s3 + $0x8] sm:$0xf]
      %v427 = vld [vmem:[%s3 + $0xc] sm:$0xf]
      %v428 = vld [vmem:[%s3 + $0x10] sm:$0xf]
      %v429 = vld [vmem:[%s3 + $0x14] sm:$0xf]
      %v430 = vld [vmem:[%s3 + $0x18] sm:$0xf]
      %v431 = vld [vmem:[%s3 + $0x1c] sm:$0xf]
      %v432 = vld [vmem:[%s3 + $0x20] sm:$0xf]
      %v433 = vld [vmem:[%s3 + $0x24] sm:$0xf]
      %v434 = vld [vmem:[%s3 + $0x28] sm:$0xf]
      %v435 = vld [vmem:[%s3 + $0x2c] sm:$0xf]
      %v436 = vld [vmem:[%s3 + $0x30] sm:$0xf]
      %v437 = vld [vmem:[%s3 + $0x34] sm:$0xf]
      %v438 = vld [vmem:[%s3 + $0x38] sm:$0xf]
      %v439 = vld [vmem:[%s3 + $0x3c] sm:$0xf]
      %v440 = vld [vmem:[%s3 + $0x40] sm:$0xf]
      %v441 = vld [vmem:[%s3 + $0x44] sm:$0xf]
      %v442 = vld [vmem:[%s3 + $0x48] sm:$0xf]
      %v443 = vld [vmem:[%s3 + $0x4c] sm:$0xf]
      %v444 = vld [vmem:[%s3 + $0x50] sm:$0xf]
      %v445 = vld [vmem:[%s3 + $0x54] sm:$0xf]
      %v446 = vld [vmem:[%s3 + $0x58] sm:$0xf]
      %v447 = vld [vmem:[%s3 + $0x5c] sm:$0xf]
      %v448 = vld [vmem:[%s3 + $0x60] sm:$0xf]
      %v449 = vld [vmem:[%s3 + $0x64] sm:$0xf]
      %v450 = vld [vmem:[%s3 + $0x68] sm:$0xf]
      %v451 = vld [vmem:[%s3 + $0x6c] sm:$0xf]
      %v452 = vld [vmem:[%s3 + $0x70] sm:$0xf]
      %v453 = vld [vmem:[%s3 + $0x74] sm:$0xf]
      %v454 = vld [vmem:[%s3 + $0x78] sm:$0xf]
      %v455 = vld [vmem:[%s3 + $0x7c] sm:$0xf]
      %v456 = vld [vmem:[%s3 + $0x80] sm:$0xf]
      %v457 = vld [vmem:[%s3 + $0x84] sm:$0xf]
      %v458 = vld [vmem:[%s3 + $0x88] sm:$0xf]
      %v459 = vld [vmem:[%s3 + $0x8c] sm:$0xf]
      %v460 = vld [vmem:[%s3 + $0x90] sm:$0xf]
      %v461 = vld [vmem:[%s3 + $0x94] sm:$0xf]
      %v462 = vld [vmem:[%s3 + $0x98] sm:$0xf]
      %v463 = vld [vmem:[%s3 + $0x9c] sm:$0xf]
      %v464 = vld [vmem:[%s3 + $0xa0] sm:$0xf]
      %v465 = vld [vmem:[%s3 + $0xa4] sm:$0xf]
      %v466 = vld [vmem:[%s3 + $0xa8] sm:$0xf]
      %v467 = vld [vmem:[%s3 + $0xac] sm:$0xf]
      %v468 = vld [vmem:[%s3 + $0xb0] sm:$0xf]
      %v469 = vld [vmem:[%s3 + $0xb4] sm:$0xf]
      %v470 = vld [vmem:[%s3 + $0xb8] sm:$0xf]
      %v471 = vld [vmem:[%s3 + $0xbc] sm:$0xf]
      %v472 = vld [vmem:[%s376] sm:$0xcc]
      %v473 = vld [vmem:[%s376 + $0x8] sm:$0xc]
      %v474 = vld [vmem:[%s376 + $0xc] sm:$0xff]
      %v475 = vld [vmem:[%s376 + $0x14] sm:$0xf]
      %v476 = vld [vmem:[%s376 + $0x18] sm:$0x33]
      %v477 = vld [vmem:[%s376 + $0x20] sm:$0x3]
      %s478 = scalar_lea.vmem %s3, 192
      %v479 = vld [vmem:[%s478] sm:$0xf]
      %v480 = vld [vmem:[%s478 + $0x4] sm:$0xf]
      %v481 = vld [vmem:[%s478 + $0x8] sm:$0xf]
      %v482 = vld [vmem:[%s478 + $0xc] sm:$0xf]
      %v483 = vld [vmem:[%s478 + $0x10] sm:$0xf]
      %v484 = vld [vmem:[%s478 + $0x14] sm:$0xf]
      %v485 = vld [vmem:[%s478 + $0x18] sm:$0xf]
      %v486 = vld [vmem:[%s478 + $0x1c] sm:$0xf]
      %v487 = vld [vmem:[%s478 + $0x20] sm:$0xf]
      %v488 = vld [vmem:[%s478 + $0x24] sm:$0xf]
      %v489 = vld [vmem:[%s478 + $0x28] sm:$0xf]
      %v490 = vld [vmem:[%s478 + $0x2c] sm:$0xf]
      %v491 = vld [vmem:[%s478 + $0x30] sm:$0xf]
      %v492 = vld [vmem:[%s478 + $0x34] sm:$0xf]
      %v493 = vld [vmem:[%s478 + $0x38] sm:$0xf]
      %v494 = vld [vmem:[%s478 + $0x3c] sm:$0xf]
      %v495 = vld [vmem:[%s478 + $0x40] sm:$0xf]
      %v496 = vld [vmem:[%s478 + $0x44] sm:$0xf]
      %v497 = vld [vmem:[%s478 + $0x48] sm:$0xf]
      %v498 = vld [vmem:[%s478 + $0x4c] sm:$0xf]
      %v499 = vld [vmem:[%s478 + $0x50] sm:$0xf]
      %v500 = vld [vmem:[%s478 + $0x54] sm:$0xf]
      %v501 = vld [vmem:[%s478 + $0x58] sm:$0xf]
      %v502 = vld [vmem:[%s478 + $0x5c] sm:$0xf]
      %v503 = vld [vmem:[%s478 + $0x60] sm:$0xf]
      %v504 = vld [vmem:[%s478 + $0x64] sm:$0xf]
      %v505 = vld [vmem:[%s478 + $0x68] sm:$0xf]
      %v506 = vld [vmem:[%s478 + $0x6c] sm:$0xf]
      %v507 = vld [vmem:[%s478 + $0x70] sm:$0xf]
      %v508 = vld [vmem:[%s478 + $0x74] sm:$0xf]
      %v509 = vld [vmem:[%s478 + $0x78] sm:$0xf]
      %v510 = vld [vmem:[%s478 + $0x7c] sm:$0xf]
      %v511 = vld [vmem:[%s478 + $0x80] sm:$0xf]
      %v512 = vld [vmem:[%s478 + $0x84] sm:$0xf]
      %v513 = vld [vmem:[%s478 + $0x88] sm:$0xf]
      %v514 = vld [vmem:[%s478 + $0x8c] sm:$0xf]
      %v515 = vld [vmem:[%s478 + $0x90] sm:$0xf]
      %v516 = vld [vmem:[%s478 + $0x94] sm:$0xf]
      %v517 = vld [vmem:[%s478 + $0x98] sm:$0xf]
      %v518 = vld [vmem:[%s478 + $0x9c] sm:$0xf]
      %v519 = vld [vmem:[%s478 + $0xa0] sm:$0xf]
      %v520 = vld [vmem:[%s478 + $0xa4] sm:$0xf]
      %v521 = vld [vmem:[%s478 + $0xa8] sm:$0xf]
      %v522 = vld [vmem:[%s478 + $0xac] sm:$0xf]
      %v523 = vld [vmem:[%s478 + $0xb0] sm:$0xf]
      %v524 = vld [vmem:[%s478 + $0xb4] sm:$0xf]
      %v525 = vld [vmem:[%s478 + $0xb8] sm:$0xf]
      %v526 = vld [vmem:[%s478 + $0xbc] sm:$0xf]
      %v533 = vunpack.c.l.b16 %v472
      %v534 = vunpack.c.h.b16 %v472
      %v535 = vunpack.c.l.b16 %v473
      %v536 = vunpack.c.l.b16 %v474
      %v537 = vunpack.c.h.b16 %v474
      %v538 = vunpack.c.l.b16 %v475
      %v539 = vunpack.c.l.b16 %v476
      %v540 = vunpack.c.h.b16 %v476
      %v541 = vunpack.c.l.b16 %v477
      %v542 = vpack.c.b16 %v536, %v533
      %v543 = vpack.c.b16 %v537, %v534
      %v544 = vpack.c.b16 %v538, %v535
      %v545 = vpack.c.b16 %v539, %v539
      %v546 = vpack.c.b16 %v540, %v540
      %v547 = vpack.c.b16 %v541, %v541
      %vm548 = vcmask 1045504
      %v549 = vrot.slane %v542, 2
      %v550 = vrot.slane %v545, 2
      %v551 = vsel %vm548, %v549, %v550
      %v552 = vrot.slane %v543, 2
      %v553 = vrot.slane %v546, 2
      %v554 = vsel %vm548, %v552, %v553
      %v555 = vrot.slane %v544, 2
      %v556 = vrot.slane %v547, 2
      %v557 = vsel %vm548, %v555, %v556
      %v609 = vunpack.c.l.b16 %v479
      %v610 = vunpack.c.l.b16 %v480
      %v611 = vunpack.c.l.b16 %v481
      %v612 = vunpack.c.l.b16 %v482
      %v613 = vunpack.c.l.b16 %v483
      %v614 = vunpack.c.l.b16 %v484
      %v615 = vunpack.c.l.b16 %v485
      %v616 = vunpack.c.l.b16 %v486
      %v617 = vunpack.c.l.b16 %v487
      %v618 = vunpack.c.l.b16 %v488
      %v619 = vunpack.c.l.b16 %v489
      %v620 = vunpack.c.l.b16 %v490
      %v621 = vunpack.c.l.b16 %v491
      %v622 = vunpack.c.l.b16 %v492
      %v623 = vunpack.c.l.b16 %v493
      %v624 = vunpack.c.l.b16 %v494
      %v625 = vunpack.c.l.b16 %v495
      %v626 = vunpack.c.l.b16 %v496
      %v627 = vunpack.c.l.b16 %v497
      %v628 = vunpack.c.l.b16 %v498
      %v629 = vunpack.c.l.b16 %v499
      %v630 = vunpack.c.l.b16 %v500
      %v631 = vunpack.c.l.b16 %v501
      %v632 = vunpack.c.l.b16 %v502
      %v633 = vunpack.c.l.b16 %v503
      %v634 = vunpack.c.l.b16 %v504
      %v635 = vunpack.c.l.b16 %v505
      %v636 = vunpack.c.l.b16 %v506
      %v637 = vunpack.c.l.b16 %v507
      %v638 = vunpack.c.l.b16 %v508
      %v639 = vunpack.c.l.b16 %v509
      %v640 = vunpack.c.l.b16 %v510
      %v641 = vunpack.c.l.b16 %v511
      %v642 = vunpack.c.l.b16 %v512
      %v643 = vunpack.c.l.b16 %v513
      %v644 = vunpack.c.l.b16 %v514
      %v645 = vunpack.c.l.b16 %v515
      %v646 = vunpack.c.l.b16 %v516
      %v647 = vunpack.c.l.b16 %v517
      %v648 = vunpack.c.l.b16 %v518
      %v649 = vunpack.c.l.b16 %v519
      %v650 = vunpack.c.l.b16 %v520
      %v651 = vunpack.c.l.b16 %v521
      %v652 = vunpack.c.l.b16 %v522
      %v653 = vunpack.c.l.b16 %v523
      %v654 = vunpack.c.l.b16 %v524
      %v655 = vunpack.c.l.b16 %v525
      %v656 = vunpack.c.l.b16 %v526
      %v657 = vpack.c.b16 %v610, %v609
      %v658 = vpack.c.b16 %v612, %v611
      %v659 = vpack.c.b16 %v614, %v613
      %v660 = vpack.c.b16 %v616, %v615
      %v661 = vpack.c.b16 %v618, %v617
      %v662 = vpack.c.b16 %v620, %v619
      %v663 = vpack.c.b16 %v622, %v621
      %v664 = vpack.c.b16 %v624, %v623
      %v665 = vpack.c.b16 %v626, %v625
      %v666 = vpack.c.b16 %v628, %v627
      %v667 = vpack.c.b16 %v630, %v629
      %v668 = vpack.c.b16 %v632, %v631
      %v669 = vpack.c.b16 %v634, %v633
      %v670 = vpack.c.b16 %v636, %v635
      %v671 = vpack.c.b16 %v638, %v637
      %v672 = vpack.c.b16 %v640, %v639
      %v673 = vpack.c.b16 %v642, %v641
      %v674 = vpack.c.b16 %v644, %v643
      %v675 = vpack.c.b16 %v646, %v645
      %v676 = vpack.c.b16 %v648, %v647
      %v677 = vpack.c.b16 %v650, %v649
      %v678 = vpack.c.b16 %v652, %v651
      %v679 = vpack.c.b16 %v654, %v653
      %v680 = vpack.c.b16 %v656, %v655
      %705 = vmatpush.bf16.msra.mxu0 %v664
      %706 = vmatpush.bf16.msra.mxu0 %v663
      %707 = vmatpush.bf16.msra.mxu0 %v662
      %708 = vmatpush.bf16.msra.mxu0 %v661
      %709 = vmatpush.bf16.msra.mxu0 %v660
      %710 = vmatpush.bf16.msra.mxu0 %v659
      %711 = vmatpush.bf16.msra.mxu0 %v658
      %712 = vmatpush.bf16.msra.mxu0 %v657
      %713 = vmatmul.bf16.gmra.mxu0 %v551
      %v714 = vpop.f32.mrf.mxu0
      %v715 = vadd.f32 0.0, %v714
      %v716 = vpop.f32.mrf.mxu0
      %v717 = vadd.f32 0.0, %v716
      %718 = vdwg.mxu0
      %719 = vmatpush.bf16.msra.mxu0 %v672
      %720 = vmatpush.bf16.msra.mxu0 %v671
      %721 = vmatpush.bf16.msra.mxu0 %v670
      %722 = vmatpush.bf16.msra.mxu0 %v669
      %723 = vmatpush.bf16.msra.mxu0 %v668
      %724 = vmatpush.bf16.msra.mxu0 %v667
      %725 = vmatpush.bf16.msra.mxu0 %v666
      %726 = vmatpush.bf16.msra.mxu0 %v665
      %727 = vmatmul.bf16.gmra.mxu0 %v554
      %v728 = vpop.f32.mrf.mxu0
      %v729 = vadd.f32 %v715, %v728
      %v730 = vpop.f32.mrf.mxu0
      %v731 = vadd.f32 %v717, %v730
      %732 = vdwg.mxu0
      %733 = vmatpush.bf16.msra.mxu0 %v680
      %734 = vmatpush.bf16.msra.mxu0 %v679
      %735 = vmatpush.bf16.msra.mxu0 %v678
      %736 = vmatpush.bf16.msra.mxu0 %v677
      %737 = vmatpush.bf16.msra.mxu0 %v676
      %738 = vmatpush.bf16.msra.mxu0 %v675
      %739 = vmatpush.bf16.msra.mxu0 %v674
      %740 = vmatpush.bf16.msra.mxu0 %v673
      %741 = vmatmul.bf16.gmra.mxu0 %v557
      %v742 = vpop.f32.mrf.mxu0
      %v743 = vadd.f32 %v729, %v742
      %v744 = vpop.f32.mrf.mxu0
      %v745 = vadd.f32 %v731, %v744
      %746 = vdwg.mxu0
      %v751 = vunpack.c.l.b16 %v420
      %v752 = vunpack.c.h.b16 %v420
      %v753 = vunpack.c.l.b16 %v421
      %v754 = vunpack.c.l.b16 %v422
      %v755 = vunpack.c.h.b16 %v422
      %v756 = vunpack.c.l.b16 %v423
      %v757 = vpack.c.b16 %v754, %v751
      %v758 = vpack.c.b16 %v755, %v752
      %v759 = vpack.c.b16 %v756, %v753
      %v811 = vunpack.c.l.b16 %v424
      %v812 = vunpack.c.l.b16 %v425
      %v813 = vunpack.c.l.b16 %v426
      %v814 = vunpack.c.l.b16 %v427
      %v815 = vunpack.c.l.b16 %v428
      %v816 = vunpack.c.l.b16 %v429
      %v817 = vunpack.c.l.b16 %v430
      %v818 = vunpack.c.l.b16 %v431
      %v819 = vunpack.c.l.b16 %v432
      %v820 = vunpack.c.l.b16 %v433
      %v821 = vunpack.c.l.b16 %v434
      %v822 = vunpack.c.l.b16 %v435
      %v823 = vunpack.c.l.b16 %v436
      %v824 = vunpack.c.l.b16 %v437
      %v825 = vunpack.c.l.b16 %v438
      %v826 = vunpack.c.l.b16 %v439
      %v827 = vunpack.c.l.b16 %v440
      %v828 = vunpack.c.l.b16 %v441
      %v829 = vunpack.c.l.b16 %v442
      %v830 = vunpack.c.l.b16 %v443
      %v831 = vunpack.c.l.b16 %v444
      %v832 = vunpack.c.l.b16 %v445
      %v833 = vunpack.c.l.b16 %v446
      %v834 = vunpack.c.l.b16 %v447
      %v835 = vunpack.c.l.b16 %v448
      %v836 = vunpack.c.l.b16 %v449
      %v837 = vunpack.c.l.b16 %v450
      %v838 = vunpack.c.l.b16 %v451
      %v839 = vunpack.c.l.b16 %v452
      %v840 = vunpack.c.l.b16 %v453
      %v841 = vunpack.c.l.b16 %v454
      %v842 = vunpack.c.l.b16 %v455
      %v843 = vunpack.c.l.b16 %v456
      %v844 = vunpack.c.l.b16 %v457
      %v845 = vunpack.c.l.b16 %v458
      %v846 = vunpack.c.l.b16 %v459
      %v847 = vunpack.c.l.b16 %v460
      %v848 = vunpack.c.l.b16 %v461
      %v849 = vunpack.c.l.b16 %v462
      %v850 = vunpack.c.l.b16 %v463
      %v851 = vunpack.c.l.b16 %v464
      %v852 = vunpack.c.l.b16 %v465
      %v853 = vunpack.c.l.b16 %v466
      %v854 = vunpack.c.l.b16 %v467
      %v855 = vunpack.c.l.b16 %v468
      %v856 = vunpack.c.l.b16 %v469
      %v857 = vunpack.c.l.b16 %v470
      %v858 = vunpack.c.l.b16 %v471
      %v859 = vpack.c.b16 %v812, %v811
      %v860 = vpack.c.b16 %v814, %v813
      %v861 = vpack.c.b16 %v816, %v815
      %v862 = vpack.c.b16 %v818, %v817
      %v863 = vpack.c.b16 %v820, %v819
      %v864 = vpack.c.b16 %v822, %v821
      %v865 = vpack.c.b16 %v824, %v823
      %v866 = vpack.c.b16 %v826, %v825
      %v867 = vpack.c.b16 %v828, %v827
      %v868 = vpack.c.b16 %v830, %v829
      %v869 = vpack.c.b16 %v832, %v831
      %v870 = vpack.c.b16 %v834, %v833
      %v871 = vpack.c.b16 %v836, %v835
      %v872 = vpack.c.b16 %v838, %v837
      %v873 = vpack.c.b16 %v840, %v839
      %v874 = vpack.c.b16 %v842, %v841
      %v875 = vpack.c.b16 %v844, %v843
      %v876 = vpack.c.b16 %v846, %v845
      %v877 = vpack.c.b16 %v848, %v847
      %v878 = vpack.c.b16 %v850, %v849
      %v879 = vpack.c.b16 %v852, %v851
      %v880 = vpack.c.b16 %v854, %v853
      %v881 = vpack.c.b16 %v856, %v855
      %v882 = vpack.c.b16 %v858, %v857
      %907 = vmatpush.bf16.msra.mxu0 %v866
      %908 = vmatpush.bf16.msra.mxu0 %v865
      %909 = vmatpush.bf16.msra.mxu0 %v864
      %910 = vmatpush.bf16.msra.mxu0 %v863
      %911 = vmatpush.bf16.msra.mxu0 %v862
      %912 = vmatpush.bf16.msra.mxu0 %v861
      %913 = vmatpush.bf16.msra.mxu0 %v860
      %914 = vmatpush.bf16.msra.mxu0 %v859
      %915 = vmatmul.bf16.gmra.mxu0 %v757
      %v916 = vpop.f32.mrf.mxu0
      %v917 = vadd.f32 %v743, %v916
      %v918 = vpop.f32.mrf.mxu0
      %v919 = vadd.f32 %v745, %v918
      %920 = vdwg.mxu0
      %921 = vmatpush.bf16.msra.mxu0 %v874
      %922 = vmatpush.bf16.msra.mxu0 %v873
      %923 = vmatpush.bf16.msra.mxu0 %v872
      %924 = vmatpush.bf16.msra.mxu0 %v871
      %925 = vmatpush.bf16.msra.mxu0 %v870
      %926 = vmatpush.bf16.msra.mxu0 %v869
      %927 = vmatpush.bf16.msra.mxu0 %v868
      %928 = vmatpush.bf16.msra.mxu0 %v867
      %929 = vmatmul.bf16.gmra.mxu0 %v758
      %v930 = vpop.f32.mrf.mxu0
      %v931 = vadd.f32 %v917, %v930
      %v932 = vpop.f32.mrf.mxu0
      %v933 = vadd.f32 %v919, %v932
      %934 = vdwg.mxu0
      %935 = vmatpush.bf16.msra.mxu0 %v882
      %936 = vmatpush.bf16.msra.mxu0 %v881
      %937 = vmatpush.bf16.msra.mxu0 %v880
      %938 = vmatpush.bf16.msra.mxu0 %v879
      %939 = vmatpush.bf16.msra.mxu0 %v878
      %940 = vmatpush.bf16.msra.mxu0 %v877
      %941 = vmatpush.bf16.msra.mxu0 %v876
      %942 = vmatpush.bf16.msra.mxu0 %v875
      %943 = vmatmul.bf16.gmra.mxu0 %v759
      %v944 = vpop.f32.mrf.mxu0
      %v945 = vadd.f32 %v931, %v944
      %v946 = vpop.f32.mrf.mxu0
      %v947 = vadd.f32 %v933, %v946
      %948 = vdwg.mxu0
      %v949 = vld [vmem:[%s376 + $0x18] sm:$0xff]
      %v950 = vld [vmem:[%s376 + $0x20] sm:$0xf]
      %s951 = scalar_lea.vmem %s3, 384
      %v952 = vld [vmem:[%s951] sm:$0xf]
      %v953 = vld [vmem:[%s951 + $0x4] sm:$0xf]
      %v954 = vld [vmem:[%s951 + $0x8] sm:$0xf]
      %v955 = vld [vmem:[%s951 + $0xc] sm:$0xf]
      %v956 = vld [vmem:[%s951 + $0x10] sm:$0xf]
      %v957 = vld [vmem:[%s951 + $0x14] sm:$0xf]
      %v958 = vld [vmem:[%s951 + $0x18] sm:$0xf]
      %v959 = vld [vmem:[%s951 + $0x1c] sm:$0xf]
      %v960 = vld [vmem:[%s951 + $0x20] sm:$0xf]
      %v961 = vld [vmem:[%s951 + $0x24] sm:$0xf]
      %v962 = vld [vmem:[%s951 + $0x28] sm:$0xf]
      %v963 = vld [vmem:[%s951 + $0x2c] sm:$0xf]
      %v964 = vld [vmem:[%s951 + $0x30] sm:$0xf]
      %v965 = vld [vmem:[%s951 + $0x34] sm:$0xf]
      %v966 = vld [vmem:[%s951 + $0x38] sm:$0xf]
      %v967 = vld [vmem:[%s951 + $0x3c] sm:$0xf]
      %v968 = vld [vmem:[%s951 + $0x40] sm:$0xf]
      %v969 = vld [vmem:[%s951 + $0x44] sm:$0xf]
      %v970 = vld [vmem:[%s951 + $0x48] sm:$0xf]
      %v971 = vld [vmem:[%s951 + $0x4c] sm:$0xf]
      %v972 = vld [vmem:[%s951 + $0x50] sm:$0xf]
      %v973 = vld [vmem:[%s951 + $0x54] sm:$0xf]
      %v974 = vld [vmem:[%s951 + $0x58] sm:$0xf]
      %v975 = vld [vmem:[%s951 + $0x5c] sm:$0xf]
      %v976 = vld [vmem:[%s951 + $0x60] sm:$0xf]
      %v977 = vld [vmem:[%s951 + $0x64] sm:$0xf]
      %v978 = vld [vmem:[%s951 + $0x68] sm:$0xf]
      %v979 = vld [vmem:[%s951 + $0x6c] sm:$0xf]
      %v980 = vld [vmem:[%s951 + $0x70] sm:$0xf]
      %v981 = vld [vmem:[%s951 + $0x74] sm:$0xf]
      %v982 = vld [vmem:[%s951 + $0x78] sm:$0xf]
      %v983 = vld [vmem:[%s951 + $0x7c] sm:$0xf]
      %v984 = vld [vmem:[%s951 + $0x80] sm:$0xf]
      %v985 = vld [vmem:[%s951 + $0x84] sm:$0xf]
      %v986 = vld [vmem:[%s951 + $0x88] sm:$0xf]
      %v987 = vld [vmem:[%s951 + $0x8c] sm:$0xf]
      %v988 = vld [vmem:[%s951 + $0x90] sm:$0xf]
      %v989 = vld [vmem:[%s951 + $0x94] sm:$0xf]
      %v990 = vld [vmem:[%s951 + $0x98] sm:$0xf]
      %v991 = vld [vmem:[%s951 + $0x9c] sm:$0xf]
      %v992 = vld [vmem:[%s951 + $0xa0] sm:$0xf]
      %v993 = vld [vmem:[%s951 + $0xa4] sm:$0xf]
      %v994 = vld [vmem:[%s951 + $0xa8] sm:$0xf]
      %v995 = vld [vmem:[%s951 + $0xac] sm:$0xf]
      %v996 = vld [vmem:[%s951 + $0xb0] sm:$0xf]
      %v997 = vld [vmem:[%s951 + $0xb4] sm:$0xf]
      %v998 = vld [vmem:[%s951 + $0xb8] sm:$0xf]
      %v999 = vld [vmem:[%s951 + $0xbc] sm:$0xf]
      %v1002 = vunpack.c.l.b16 %v949
      %v1003 = vunpack.c.h.b16 %v949
      %v1004 = vunpack.c.l.b16 %v950
      %v1005 = vpack.c.b16 %v1002, %v536
      %v1006 = vpack.c.b16 %v1003, %v537
      %v1007 = vpack.c.b16 %v1004, %v538
      %v1059 = vunpack.c.l.b16 %v952
      %v1060 = vunpack.c.l.b16 %v953
      %v1061 = vunpack.c.l.b16 %v954
      %v1062 = vunpack.c.l.b16 %v955
      %v1063 = vunpack.c.l.b16 %v956
      %v1064 = vunpack.c.l.b16 %v957
      %v1065 = vunpack.c.l.b16 %v958
      %v1066 = vunpack.c.l.b16 %v959
      %v1067 = vunpack.c.l.b16 %v960
      %v1068 = vunpack.c.l.b16 %v961
      %v1069 = vunpack.c.l.b16 %v962
      %v1070 = vunpack.c.l.b16 %v963
      %v1071 = vunpack.c.l.b16 %v964
      %v1072 = vunpack.c.l.b16 %v965
      %v1073 = vunpack.c.l.b16 %v966
      %v1074 = vunpack.c.l.b16 %v967
      %v1075 = vunpack.c.l.b16 %v968
      %v1076 = vunpack.c.l.b16 %v969
      %v1077 = vunpack.c.l.b16 %v970
      %v1078 = vunpack.c.l.b16 %v971
      %v1079 = vunpack.c.l.b16 %v972
      %v1080 = vunpack.c.l.b16 %v973
      %v1081 = vunpack.c.l.b16 %v974
      %v1082 = vunpack.c.l.b16 %v975
      %v1083 = vunpack.c.l.b16 %v976
      %v1084 = vunpack.c.l.b16 %v977
      %v1085 = vunpack.c.l.b16 %v978
      %v1086 = vunpack.c.l.b16 %v979
      %v1087 = vunpack.c.l.b16 %v980
      %v1088 = vunpack.c.l.b16 %v981
      %v1089 = vunpack.c.l.b16 %v982
      %v1090 = vunpack.c.l.b16 %v983
      %v1091 = vunpack.c.l.b16 %v984
      %v1092 = vunpack.c.l.b16 %v985
      %v1093 = vunpack.c.l.b16 %v986
      %v1094 = vunpack.c.l.b16 %v987
      %v1095 = vunpack.c.l.b16 %v988
      %v1096 = vunpack.c.l.b16 %v989
      %v1097 = vunpack.c.l.b16 %v990
      %v1098 = vunpack.c.l.b16 %v991
      %v1099 = vunpack.c.l.b16 %v992
      %v1100 = vunpack.c.l.b16 %v993
      %v1101 = vunpack.c.l.b16 %v994
      %v1102 = vunpack.c.l.b16 %v995
      %v1103 = vunpack.c.l.b16 %v996
      %v1104 = vunpack.c.l.b16 %v997
      %v1105 = vunpack.c.l.b16 %v998
      %v1106 = vunpack.c.l.b16 %v999
      %v1107 = vpack.c.b16 %v1060, %v1059
      %v1108 = vpack.c.b16 %v1062, %v1061
      %v1109 = vpack.c.b16 %v1064, %v1063
      %v1110 = vpack.c.b16 %v1066, %v1065
      %v1111 = vpack.c.b16 %v1068, %v1067
      %v1112 = vpack.c.b16 %v1070, %v1069
      %v1113 = vpack.c.b16 %v1072, %v1071
      %v1114 = vpack.c.b16 %v1074, %v1073
      %v1115 = vpack.c.b16 %v1076, %v1075
      %v1116 = vpack.c.b16 %v1078, %v1077
      %v1117 = vpack.c.b16 %v1080, %v1079
      %v1118 = vpack.c.b16 %v1082, %v1081
      %v1119 = vpack.c.b16 %v1084, %v1083
      %v1120 = vpack.c.b16 %v1086, %v1085
      %v1121 = vpack.c.b16 %v1088, %v1087
      %v1122 = vpack.c.b16 %v1090, %v1089
      %v1123 = vpack.c.b16 %v1092, %v1091
      %v1124 = vpack.c.b16 %v1094, %v1093
      %v1125 = vpack.c.b16 %v1096, %v1095
      %v1126 = vpack.c.b16 %v1098, %v1097
      %v1127 = vpack.c.b16 %v1100, %v1099
      %v1128 = vpack.c.b16 %v1102, %v1101
      %v1129 = vpack.c.b16 %v1104, %v1103
      %v1130 = vpack.c.b16 %v1106, %v1105
      %1155 = vmatpush.bf16.msra.mxu0 %v1114
      %1156 = vmatpush.bf16.msra.mxu0 %v1113
      %1157 = vmatpush.bf16.msra.mxu0 %v1112
      %1158 = vmatpush.bf16.msra.mxu0 %v1111
      %1159 = vmatpush.bf16.msra.mxu0 %v1110
      %1160 = vmatpush.bf16.msra.mxu0 %v1109
      %1161 = vmatpush.bf16.msra.mxu0 %v1108
      %1162 = vmatpush.bf16.msra.mxu0 %v1107
      %1163 = vmatmul.bf16.gmra.mxu0 %v1005
      %v1164 = vpop.f32.mrf.mxu0
      %v1165 = vadd.f32 0.0, %v1164
      %v1166 = vpop.f32.mrf.mxu0
      %v1167 = vadd.f32 0.0, %v1166
      %1168 = vdwg.mxu0
      %1169 = vmatpush.bf16.msra.mxu0 %v1122
      %1170 = vmatpush.bf16.msra.mxu0 %v1121
      %1171 = vmatpush.bf16.msra.mxu0 %v1120
      %1172 = vmatpush.bf16.msra.mxu0 %v1119
      %1173 = vmatpush.bf16.msra.mxu0 %v1118
      %1174 = vmatpush.bf16.msra.mxu0 %v1117
      %1175 = vmatpush.bf16.msra.mxu0 %v1116
      %1176 = vmatpush.bf16.msra.mxu0 %v1115
      %1177 = vmatmul.bf16.gmra.mxu0 %v1006
      %v1178 = vpop.f32.mrf.mxu0
      %v1179 = vadd.f32 %v1165, %v1178
      %v1180 = vpop.f32.mrf.mxu0
      %v1181 = vadd.f32 %v1167, %v1180
      %1182 = vdwg.mxu0
      %1183 = vmatpush.bf16.msra.mxu0 %v1130
      %1184 = vmatpush.bf16.msra.mxu0 %v1129
      %1185 = vmatpush.bf16.msra.mxu0 %v1128
      %1186 = vmatpush.bf16.msra.mxu0 %v1127
      %1187 = vmatpush.bf16.msra.mxu0 %v1126
      %1188 = vmatpush.bf16.msra.mxu0 %v1125
      %1189 = vmatpush.bf16.msra.mxu0 %v1124
      %1190 = vmatpush.bf16.msra.mxu0 %v1123
      %1191 = vmatmul.bf16.gmra.mxu0 %v1007
      %v1192 = vpop.f32.mrf.mxu0
      %v1193 = vadd.f32 %v1179, %v1192
      %v1194 = vpop.f32.mrf.mxu0
      %v1195 = vadd.f32 %v1181, %v1194
      %1196 = vdwg.mxu0
      %v1197 = vadd.f32 %v945, %v1193
      %v1198 = vadd.f32 %v947, %v1195
      %v1199 = vld [vmem:[%s386] sm:$0xff]
      %v1200 = vld [vmem:[%s386 + $0x8] sm:$0xf]
      %v1201 = vld [vmem:[%s386 + $0xc] sm:$0xff]
      %v1202 = vld [vmem:[%s386 + $0x14] sm:$0xf]
      %s1203 = scalar_lea.vmem %s3, 576
      %v1204 = vld [vmem:[%s1203] sm:$0xf]
      %v1205 = vld [vmem:[%s1203 + $0x4] sm:$0xf]
      %v1206 = vld [vmem:[%s1203 + $0x8] sm:$0xf]
      %v1207 = vld [vmem:[%s1203 + $0xc] sm:$0xf]
      %v1208 = vld [vmem:[%s1203 + $0x10] sm:$0xf]
      %v1209 = vld [vmem:[%s1203 + $0x14] sm:$0xf]
      %v1210 = vld [vmem:[%s1203 + $0x18] sm:$0xf]
      %v1211 = vld [vmem:[%s1203 + $0x1c] sm:$0xf]
      %v1212 = vld [vmem:[%s1203 + $0x20] sm:$0xf]
      %v1213 = vld [vmem:[%s1203 + $0x24] sm:$0xf]
      %v1214 = vld [vmem:[%s1203 + $0x28] sm:$0xf]
      %v1215 = vld [vmem:[%s1203 + $0x2c] sm:$0xf]
      %v1216 = vld [vmem:[%s1203 + $0x30] sm:$0xf]
      %v1217 = vld [vmem:[%s1203 + $0x34] sm:$0xf]
      %v1218 = vld [vmem:[%s1203 + $0x38] sm:$0xf]
      %v1219 = vld [vmem:[%s1203 + $0x3c] sm:$0xf]
      %v1220 = vld [vmem:[%s1203 + $0x40] sm:$0xf]
      %v1221 = vld [vmem:[%s1203 + $0x44] sm:$0xf]
      %v1222 = vld [vmem:[%s1203 + $0x48] sm:$0xf]
      %v1223 = vld [vmem:[%s1203 + $0x4c] sm:$0xf]
      %v1224 = vld [vmem:[%s1203 + $0x50] sm:$0xf]
      %v1225 = vld [vmem:[%s1203 + $0x54] sm:$0xf]
      %v1226 = vld [vmem:[%s1203 + $0x58] sm:$0xf]
      %v1227 = vld [vmem:[%s1203 + $0x5c] sm:$0xf]
      %v1228 = vld [vmem:[%s1203 + $0x60] sm:$0xf]
      %v1229 = vld [vmem:[%s1203 + $0x64] sm:$0xf]
      %v1230 = vld [vmem:[%s1203 + $0x68] sm:$0xf]
      %v1231 = vld [vmem:[%s1203 + $0x6c] sm:$0xf]
      %v1232 = vld [vmem:[%s1203 + $0x70] sm:$0xf]
      %v1233 = vld [vmem:[%s1203 + $0x74] sm:$0xf]
      %v1234 = vld [vmem:[%s1203 + $0x78] sm:$0xf]
      %v1235 = vld [vmem:[%s1203 + $0x7c] sm:$0xf]
      %v1236 = vld [vmem:[%s1203 + $0x80] sm:$0xf]
      %v1237 = vld [vmem:[%s1203 + $0x84] sm:$0xf]
      %v1238 = vld [vmem:[%s1203 + $0x88] sm:$0xf]
      %v1239 = vld [vmem:[%s1203 + $0x8c] sm:$0xf]
      %v1240 = vld [vmem:[%s1203 + $0x90] sm:$0xf]
      %v1241 = vld [vmem:[%s1203 + $0x94] sm:$0xf]
      %v1242 = vld [vmem:[%s1203 + $0x98] sm:$0xf]
      %v1243 = vld [vmem:[%s1203 + $0x9c] sm:$0xf]
      %v1244 = vld [vmem:[%s1203 + $0xa0] sm:$0xf]
      %v1245 = vld [vmem:[%s1203 + $0xa4] sm:$0xf]
      %v1246 = vld [vmem:[%s1203 + $0xa8] sm:$0xf]
      %v1247 = vld [vmem:[%s1203 + $0xac] sm:$0xf]
      %v1248 = vld [vmem:[%s1203 + $0xb0] sm:$0xf]
      %v1249 = vld [vmem:[%s1203 + $0xb4] sm:$0xf]
      %v1250 = vld [vmem:[%s1203 + $0xb8] sm:$0xf]
      %v1251 = vld [vmem:[%s1203 + $0xbc] sm:$0xf]
      %v1256 = vunpack.c.l.b16 %v1199
      %v1257 = vunpack.c.h.b16 %v1199
      %v1258 = vunpack.c.l.b16 %v1200
      %v1259 = vunpack.c.l.b16 %v1201
      %v1260 = vunpack.c.h.b16 %v1201
      %v1261 = vunpack.c.l.b16 %v1202
      %v1262 = vpack.c.b16 %v1259, %v1256
      %v1263 = vpack.c.b16 %v1260, %v1257
      %v1264 = vpack.c.b16 %v1261, %v1258
      %v1316 = vunpack.c.l.b16 %v1204
      %v1317 = vunpack.c.l.b16 %v1205
      %v1318 = vunpack.c.l.b16 %v1206
      %v1319 = vunpack.c.l.b16 %v1207
      %v1320 = vunpack.c.l.b16 %v1208
      %v1321 = vunpack.c.l.b16 %v1209
      %v1322 = vunpack.c.l.b16 %v1210
      %v1323 = vunpack.c.l.b16 %v1211
      %v1324 = vunpack.c.l.b16 %v1212
      %v1325 = vunpack.c.l.b16 %v1213
      %v1326 = vunpack.c.l.b16 %v1214
      %v1327 = vunpack.c.l.b16 %v1215
      %v1328 = vunpack.c.l.b16 %v1216
      %v1329 = vunpack.c.l.b16 %v1217
      %v1330 = vunpack.c.l.b16 %v1218
      %v1331 = vunpack.c.l.b16 %v1219
      %v1332 = vunpack.c.l.b16 %v1220
      %v1333 = vunpack.c.l.b16 %v1221
      %v1334 = vunpack.c.l.b16 %v1222
      %v1335 = vunpack.c.l.b16 %v1223
      %v1336 = vunpack.c.l.b16 %v1224
      %v1337 = vunpack.c.l.b16 %v1225
      %v1338 = vunpack.c.l.b16 %v1226
      %v1339 = vunpack.c.l.b16 %v1227
      %v1340 = vunpack.c.l.b16 %v1228
      %v1341 = vunpack.c.l.b16 %v1229
      %v1342 = vunpack.c.l.b16 %v1230
      %v1343 = vunpack.c.l.b16 %v1231
      %v1344 = vunpack.c.l.b16 %v1232
      %v1345 = vunpack.c.l.b16 %v1233
      %v1346 = vunpack.c.l.b16 %v1234
      %v1347 = vunpack.c.l.b16 %v1235
      %v1348 = vunpack.c.l.b16 %v1236
      %v1349 = vunpack.c.l.b16 %v1237
      %v1350 = vunpack.c.l.b16 %v1238
      %v1351 = vunpack.c.l.b16 %v1239
      %v1352 = vunpack.c.l.b16 %v1240
      %v1353 = vunpack.c.l.b16 %v1241
      %v1354 = vunpack.c.l.b16 %v1242
      %v1355 = vunpack.c.l.b16 %v1243
      %v1356 = vunpack.c.l.b16 %v1244
      %v1357 = vunpack.c.l.b16 %v1245
      %v1358 = vunpack.c.l.b16 %v1246
      %v1359 = vunpack.c.l.b16 %v1247
      %v1360 = vunpack.c.l.b16 %v1248
      %v1361 = vunpack.c.l.b16 %v1249
      %v1362 = vunpack.c.l.b16 %v1250
      %v1363 = vunpack.c.l.b16 %v1251
      %v1364 = vpack.c.b16 %v1317, %v1316
      %v1365 = vpack.c.b16 %v1319, %v1318
      %v1366 = vpack.c.b16 %v1321, %v1320
      %v1367 = vpack.c.b16 %v1323, %v1322
      %v1368 = vpack.c.b16 %v1325, %v1324
      %v1369 = vpack.c.b16 %v1327, %v1326
      %v1370 = vpack.c.b16 %v1329, %v1328
      %v1371 = vpack.c.b16 %v1331, %v1330
      %v1372 = vpack.c.b16 %v1333, %v1332
      %v1373 = vpack.c.b16 %v1335, %v1334
      %v1374 = vpack.c.b16 %v1337, %v1336
      %v1375 = vpack.c.b16 %v1339, %v1338
      %v1376 = vpack.c.b16 %v1341, %v1340
      %v1377 = vpack.c.b16 %v1343, %v1342
      %v1378 = vpack.c.b16 %v1345, %v1344
      %v1379 = vpack.c.b16 %v1347, %v1346
      %v1380 = vpack.c.b16 %v1349, %v1348
      %v1381 = vpack.c.b16 %v1351, %v1350
      %v1382 = vpack.c.b16 %v1353, %v1352
      %v1383 = vpack.c.b16 %v1355, %v1354
      %v1384 = vpack.c.b16 %v1357, %v1356
      %v1385 = vpack.c.b16 %v1359, %v1358
      %v1386 = vpack.c.b16 %v1361, %v1360
      %v1387 = vpack.c.b16 %v1363, %v1362
      %1412 = vmatpush.bf16.msra.mxu0 %v1371
      %1413 = vmatpush.bf16.msra.mxu0 %v1370
      %1414 = vmatpush.bf16.msra.mxu0 %v1369
      %1415 = vmatpush.bf16.msra.mxu0 %v1368
      %1416 = vmatpush.bf16.msra.mxu0 %v1367
      %1417 = vmatpush.bf16.msra.mxu0 %v1366
      %1418 = vmatpush.bf16.msra.mxu0 %v1365
      %1419 = vmatpush.bf16.msra.mxu0 %v1364
      %1420 = vmatmul.bf16.gmra.mxu0 %v1262
      %v1421 = vpop.f32.mrf.mxu0
      %v1422 = vadd.f32 0.0, %v1421
      %v1423 = vpop.f32.mrf.mxu0
      %v1424 = vadd.f32 0.0, %v1423
      %1425 = vdwg.mxu0
      %1426 = vmatpush.bf16.msra.mxu0 %v1379
      %1427 = vmatpush.bf16.msra.mxu0 %v1378
      %1428 = vmatpush.bf16.msra.mxu0 %v1377
      %1429 = vmatpush.bf16.msra.mxu0 %v1376
      %1430 = vmatpush.bf16.msra.mxu0 %v1375
      %1431 = vmatpush.bf16.msra.mxu0 %v1374
      %1432 = vmatpush.bf16.msra.mxu0 %v1373
      %1433 = vmatpush.bf16.msra.mxu0 %v1372
      %1434 = vmatmul.bf16.gmra.mxu0 %v1263
      %v1435 = vpop.f32.mrf.mxu0
      %v1436 = vadd.f32 %v1422, %v1435
      %v1437 = vpop.f32.mrf.mxu0
      %v1438 = vadd.f32 %v1424, %v1437
      %1439 = vdwg.mxu0
      %1440 = vmatpush.bf16.msra.mxu0 %v1387
      %1441 = vmatpush.bf16.msra.mxu0 %v1386
      %1442 = vmatpush.bf16.msra.mxu0 %v1385
      %1443 = vmatpush.bf16.msra.mxu0 %v1384
      %1444 = vmatpush.bf16.msra.mxu0 %v1383
      %1445 = vmatpush.bf16.msra.mxu0 %v1382
      %1446 = vmatpush.bf16.msra.mxu0 %v1381
      %1447 = vmatpush.bf16.msra.mxu0 %v1380
      %1448 = vmatmul.bf16.gmra.mxu0 %v1264
      %v1449 = vpop.f32.mrf.mxu0
      %v1450 = vadd.f32 %v1436, %v1449
      %v1451 = vpop.f32.mrf.mxu0
      %v1452 = vadd.f32 %v1438, %v1451
      %1453 = vdwg.mxu0
      %v1454 = vadd.f32 %v1197, %v1450
      %v1455 = vadd.f32 %v1198, %v1452
      %v1456 = vld [vmem:[%s386] sm:$0xcc]
      %v1457 = vld [vmem:[%s386 + $0x8] sm:$0xc]
      %v1458 = vld [vmem:[%s386 + $0xc] sm:$0xff]
      %v1459 = vld [vmem:[%s386 + $0x14] sm:$0xf]
      %v1460 = vld [vmem:[%s386 + $0x18] sm:$0x33]
      %v1461 = vld [vmem:[%s386 + $0x20] sm:$0x3]
      %s1462 = scalar_lea.vmem %s3, 768
      %v1463 = vld [vmem:[%s1462] sm:$0xf]
      %v1464 = vld [vmem:[%s1462 + $0x4] sm:$0xf]
      %v1465 = vld [vmem:[%s1462 + $0x8] sm:$0xf]
      %v1466 = vld [vmem:[%s1462 + $0xc] sm:$0xf]
      %v1467 = vld [vmem:[%s1462 + $0x10] sm:$0xf]
      %v1468 = vld [vmem:[%s1462 + $0x14] sm:$0xf]
      %v1469 = vld [vmem:[%s1462 + $0x18] sm:$0xf]
      %v1470 = vld [vmem:[%s1462 + $0x1c] sm:$0xf]
      %v1471 = vld [vmem:[%s1462 + $0x20] sm:$0xf]
      %v1472 = vld [vmem:[%s1462 + $0x24] sm:$0xf]
      %v1473 = vld [vmem:[%s1462 + $0x28] sm:$0xf]
      %v1474 = vld [vmem:[%s1462 + $0x2c] sm:$0xf]
      %v1475 = vld [vmem:[%s1462 + $0x30] sm:$0xf]
      %v1476 = vld [vmem:[%s1462 + $0x34] sm:$0xf]
      %v1477 = vld [vmem:[%s1462 + $0x38] sm:$0xf]
      %v1478 = vld [vmem:[%s1462 + $0x3c] sm:$0xf]
      %v1479 = vld [vmem:[%s1462 + $0x40] sm:$0xf]
      %v1480 = vld [vmem:[%s1462 + $0x44] sm:$0xf]
      %v1481 = vld [vmem:[%s1462 + $0x48] sm:$0xf]
      %v1482 = vld [vmem:[%s1462 + $0x4c] sm:$0xf]
      %v1483 = vld [vmem:[%s1462 + $0x50] sm:$0xf]
      %v1484 = vld [vmem:[%s1462 + $0x54] sm:$0xf]
      %v1485 = vld [vmem:[%s1462 + $0x58] sm:$0xf]
      %v1486 = vld [vmem:[%s1462 + $0x5c] sm:$0xf]
      %v1487 = vld [vmem:[%s1462 + $0x60] sm:$0xf]
      %v1488 = vld [vmem:[%s1462 + $0x64] sm:$0xf]
      %v1489 = vld [vmem:[%s1462 + $0x68] sm:$0xf]
      %v1490 = vld [vmem:[%s1462 + $0x6c] sm:$0xf]
      %v1491 = vld [vmem:[%s1462 + $0x70] sm:$0xf]
      %v1492 = vld [vmem:[%s1462 + $0x74] sm:$0xf]
      %v1493 = vld [vmem:[%s1462 + $0x78] sm:$0xf]
      %v1494 = vld [vmem:[%s1462 + $0x7c] sm:$0xf]
      %v1495 = vld [vmem:[%s1462 + $0x80] sm:$0xf]
      %v1496 = vld [vmem:[%s1462 + $0x84] sm:$0xf]
      %v1497 = vld [vmem:[%s1462 + $0x88] sm:$0xf]
      %v1498 = vld [vmem:[%s1462 + $0x8c] sm:$0xf]
      %v1499 = vld [vmem:[%s1462 + $0x90] sm:$0xf]
      %v1500 = vld [vmem:[%s1462 + $0x94] sm:$0xf]
      %v1501 = vld [vmem:[%s1462 + $0x98] sm:$0xf]
      %v1502 = vld [vmem:[%s1462 + $0x9c] sm:$0xf]
      %v1503 = vld [vmem:[%s1462 + $0xa0] sm:$0xf]
      %v1504 = vld [vmem:[%s1462 + $0xa4] sm:$0xf]
      %v1505 = vld [vmem:[%s1462 + $0xa8] sm:$0xf]
      %v1506 = vld [vmem:[%s1462 + $0xac] sm:$0xf]
      %v1507 = vld [vmem:[%s1462 + $0xb0] sm:$0xf]
      %v1508 = vld [vmem:[%s1462 + $0xb4] sm:$0xf]
      %v1509 = vld [vmem:[%s1462 + $0xb8] sm:$0xf]
      %v1510 = vld [vmem:[%s1462 + $0xbc] sm:$0xf]
      %v1517 = vunpack.c.l.b16 %v1456
      %v1518 = vunpack.c.h.b16 %v1456
      %v1519 = vunpack.c.l.b16 %v1457
      %v1520 = vunpack.c.l.b16 %v1458
      %v1521 = vunpack.c.h.b16 %v1458
      %v1522 = vunpack.c.l.b16 %v1459
      %v1523 = vunpack.c.l.b16 %v1460
      %v1524 = vunpack.c.h.b16 %v1460
      %v1525 = vunpack.c.l.b16 %v1461
      %v1526 = vpack.c.b16 %v1520, %v1517
      %v1527 = vpack.c.b16 %v1521, %v1518
      %v1528 = vpack.c.b16 %v1522, %v1519
      %v1529 = vpack.c.b16 %v1523, %v1523
      %v1530 = vpack.c.b16 %v1524, %v1524
      %v1531 = vpack.c.b16 %v1525, %v1525
      %v1532 = vrot.slane %v1526, 2
      %v1533 = vrot.slane %v1529, 2
      %v1534 = vsel %vm548, %v1532, %v1533
      %v1535 = vrot.slane %v1527, 2
      %v1536 = vrot.slane %v1530, 2
      %v1537 = vsel %vm548, %v1535, %v1536
      %v1538 = vrot.slane %v1528, 2
      %v1539 = vrot.slane %v1531, 2
      %v1540 = vsel %vm548, %v1538, %v1539
      %v1592 = vunpack.c.l.b16 %v1463
      %v1593 = vunpack.c.l.b16 %v1464
      %v1594 = vunpack.c.l.b16 %v1465
      %v1595 = vunpack.c.l.b16 %v1466
      %v1596 = vunpack.c.l.b16 %v1467
      %v1597 = vunpack.c.l.b16 %v1468
      %v1598 = vunpack.c.l.b16 %v1469
      %v1599 = vunpack.c.l.b16 %v1470
      %v1600 = vunpack.c.l.b16 %v1471
      %v1601 = vunpack.c.l.b16 %v1472
      %v1602 = vunpack.c.l.b16 %v1473
      %v1603 = vunpack.c.l.b16 %v1474
      %v1604 = vunpack.c.l.b16 %v1475
      %v1605 = vunpack.c.l.b16 %v1476
      %v1606 = vunpack.c.l.b16 %v1477
      %v1607 = vunpack.c.l.b16 %v1478
      %v1608 = vunpack.c.l.b16 %v1479
      %v1609 = vunpack.c.l.b16 %v1480
      %v1610 = vunpack.c.l.b16 %v1481
      %v1611 = vunpack.c.l.b16 %v1482
      %v1612 = vunpack.c.l.b16 %v1483
      %v1613 = vunpack.c.l.b16 %v1484
      %v1614 = vunpack.c.l.b16 %v1485
      %v1615 = vunpack.c.l.b16 %v1486
      %v1616 = vunpack.c.l.b16 %v1487
      %v1617 = vunpack.c.l.b16 %v1488
      %v1618 = vunpack.c.l.b16 %v1489
      %v1619 = vunpack.c.l.b16 %v1490
      %v1620 = vunpack.c.l.b16 %v1491
      %v1621 = vunpack.c.l.b16 %v1492
      %v1622 = vunpack.c.l.b16 %v1493
      %v1623 = vunpack.c.l.b16 %v1494
      %v1624 = vunpack.c.l.b16 %v1495
      %v1625 = vunpack.c.l.b16 %v1496
      %v1626 = vunpack.c.l.b16 %v1497
      %v1627 = vunpack.c.l.b16 %v1498
      %v1628 = vunpack.c.l.b16 %v1499
      %v1629 = vunpack.c.l.b16 %v1500
      %v1630 = vunpack.c.l.b16 %v1501
      %v1631 = vunpack.c.l.b16 %v1502
      %v1632 = vunpack.c.l.b16 %v1503
      %v1633 = vunpack.c.l.b16 %v1504
      %v1634 = vunpack.c.l.b16 %v1505
      %v1635 = vunpack.c.l.b16 %v1506
      %v1636 = vunpack.c.l.b16 %v1507
      %v1637 = vunpack.c.l.b16 %v1508
      %v1638 = vunpack.c.l.b16 %v1509
      %v1639 = vunpack.c.l.b16 %v1510
      %v1640 = vpack.c.b16 %v1593, %v1592
      %v1641 = vpack.c.b16 %v1595, %v1594
      %v1642 = vpack.c.b16 %v1597, %v1596
      %v1643 = vpack.c.b16 %v1599, %v1598
      %v1644 = vpack.c.b16 %v1601, %v1600
      %v1645 = vpack.c.b16 %v1603, %v1602
      %v1646 = vpack.c.b16 %v1605, %v1604
      %v1647 = vpack.c.b16 %v1607, %v1606
      %v1648 = vpack.c.b16 %v1609, %v1608
      %v1649 = vpack.c.b16 %v1611, %v1610
      %v1650 = vpack.c.b16 %v1613, %v1612
      %v1651 = vpack.c.b16 %v1615, %v1614
      %v1652 = vpack.c.b16 %v1617, %v1616
      %v1653 = vpack.c.b16 %v1619, %v1618
      %v1654 = vpack.c.b16 %v1621, %v1620
      %v1655 = vpack.c.b16 %v1623, %v1622
      %v1656 = vpack.c.b16 %v1625, %v1624
      %v1657 = vpack.c.b16 %v1627, %v1626
      %v1658 = vpack.c.b16 %v1629, %v1628
      %v1659 = vpack.c.b16 %v1631, %v1630
      %v1660 = vpack.c.b16 %v1633, %v1632
      %v1661 = vpack.c.b16 %v1635, %v1634
      %v1662 = vpack.c.b16 %v1637, %v1636
      %v1663 = vpack.c.b16 %v1639, %v1638
      %1688 = vmatpush.bf16.msra.mxu0 %v1647
      %1689 = vmatpush.bf16.msra.mxu0 %v1646
      %1690 = vmatpush.bf16.msra.mxu0 %v1645
      %1691 = vmatpush.bf16.msra.mxu0 %v1644
      %1692 = vmatpush.bf16.msra.mxu0 %v1643
      %1693 = vmatpush.bf16.msra.mxu0 %v1642
      %1694 = vmatpush.bf16.msra.mxu0 %v1641
      %1695 = vmatpush.bf16.msra.mxu0 %v1640
      %1696 = vmatmul.bf16.gmra.mxu0 %v1534
      %v1697 = vpop.f32.mrf.mxu0
      %v1698 = vadd.f32 0.0, %v1697
      %v1699 = vpop.f32.mrf.mxu0
      %v1700 = vadd.f32 0.0, %v1699
      %1701 = vdwg.mxu0
      %1702 = vmatpush.bf16.msra.mxu0 %v1655
      %1703 = vmatpush.bf16.msra.mxu0 %v1654
      %1704 = vmatpush.bf16.msra.mxu0 %v1653
      %1705 = vmatpush.bf16.msra.mxu0 %v1652
      %1706 = vmatpush.bf16.msra.mxu0 %v1651
      %1707 = vmatpush.bf16.msra.mxu0 %v1650
      %1708 = vmatpush.bf16.msra.mxu0 %v1649
      %1709 = vmatpush.bf16.msra.mxu0 %v1648
      %1710 = vmatmul.bf16.gmra.mxu0 %v1537
      %v1711 = vpop.f32.mrf.mxu0
      %v1712 = vadd.f32 %v1698, %v1711
      %v1713 = vpop.f32.mrf.mxu0
      %v1714 = vadd.f32 %v1700, %v1713
      %1715 = vdwg.mxu0
      %1716 = vmatpush.bf16.msra.mxu0 %v1663
      %1717 = vmatpush.bf16.msra.mxu0 %v1662
      %1718 = vmatpush.bf16.msra.mxu0 %v1661
      %1719 = vmatpush.bf16.msra.mxu0 %v1660
      %1720 = vmatpush.bf16.msra.mxu0 %v1659
      %1721 = vmatpush.bf16.msra.mxu0 %v1658
      %1722 = vmatpush.bf16.msra.mxu0 %v1657
      %1723 = vmatpush.bf16.msra.mxu0 %v1656
      %1724 = vmatmul.bf16.gmra.mxu0 %v1540
      %v1725 = vpop.f32.mrf.mxu0
      %v1726 = vadd.f32 %v1712, %v1725
      %v1727 = vpop.f32.mrf.mxu0
      %v1728 = vadd.f32 %v1714, %v1727
      %1729 = vdwg.mxu0
      %v1730 = vadd.f32 %v1454, %v1726
      %v1731 = vadd.f32 %v1455, %v1728
      %v1732 = vld [vmem:[%s386 + $0x18] sm:$0xff]
      %v1733 = vld [vmem:[%s386 + $0x20] sm:$0xf]
      %s1734 = scalar_lea.vmem %s3, 960
      %v1735 = vld [vmem:[%s1734] sm:$0xf]
      %v1736 = vld [vmem:[%s1734 + $0x4] sm:$0xf]
      %v1737 = vld [vmem:[%s1734 + $0x8] sm:$0xf]
      %v1738 = vld [vmem:[%s1734 + $0xc] sm:$0xf]
      %v1739 = vld [vmem:[%s1734 + $0x10] sm:$0xf]
      %v1740 = vld [vmem:[%s1734 + $0x14] sm:$0xf]
      %v1741 = vld [vmem:[%s1734 + $0x18] sm:$0xf]
      %v1742 = vld [vmem:[%s1734 + $0x1c] sm:$0xf]
      %v1743 = vld [vmem:[%s1734 + $0x20] sm:$0xf]
      %v1744 = vld [vmem:[%s1734 + $0x24] sm:$0xf]
      %v1745 = vld [vmem:[%s1734 + $0x28] sm:$0xf]
      %v1746 = vld [vmem:[%s1734 + $0x2c] sm:$0xf]
      %v1747 = vld [vmem:[%s1734 + $0x30] sm:$0xf]
      %v1748 = vld [vmem:[%s1734 + $0x34] sm:$0xf]
      %v1749 = vld [vmem:[%s1734 + $0x38] sm:$0xf]
      %v1750 = vld [vmem:[%s1734 + $0x3c] sm:$0xf]
      %v1751 = vld [vmem:[%s1734 + $0x40] sm:$0xf]
      %v1752 = vld [vmem:[%s1734 + $0x44] sm:$0xf]
      %v1753 = vld [vmem:[%s1734 + $0x48] sm:$0xf]
      %v1754 = vld [vmem:[%s1734 + $0x4c] sm:$0xf]
      %v1755 = vld [vmem:[%s1734 + $0x50] sm:$0xf]
      %v1756 = vld [vmem:[%s1734 + $0x54] sm:$0xf]
      %v1757 = vld [vmem:[%s1734 + $0x58] sm:$0xf]
      %v1758 = vld [vmem:[%s1734 + $0x5c] sm:$0xf]
      %v1759 = vld [vmem:[%s1734 + $0x60] sm:$0xf]
      %v1760 = vld [vmem:[%s1734 + $0x64] sm:$0xf]
      %v1761 = vld [vmem:[%s1734 + $0x68] sm:$0xf]
      %v1762 = vld [vmem:[%s1734 + $0x6c] sm:$0xf]
      %v1763 = vld [vmem:[%s1734 + $0x70] sm:$0xf]
      %v1764 = vld [vmem:[%s1734 + $0x74] sm:$0xf]
      %v1765 = vld [vmem:[%s1734 + $0x78] sm:$0xf]
      %v1766 = vld [vmem:[%s1734 + $0x7c] sm:$0xf]
      %v1767 = vld [vmem:[%s1734 + $0x80] sm:$0xf]
      %v1768 = vld [vmem:[%s1734 + $0x84] sm:$0xf]
      %v1769 = vld [vmem:[%s1734 + $0x88] sm:$0xf]
      %v1770 = vld [vmem:[%s1734 + $0x8c] sm:$0xf]
      %v1771 = vld [vmem:[%s1734 + $0x90] sm:$0xf]
      %v1772 = vld [vmem:[%s1734 + $0x94] sm:$0xf]
      %v1773 = vld [vmem:[%s1734 + $0x98] sm:$0xf]
      %v1774 = vld [vmem:[%s1734 + $0x9c] sm:$0xf]
      %v1775 = vld [vmem:[%s1734 + $0xa0] sm:$0xf]
      %v1776 = vld [vmem:[%s1734 + $0xa4] sm:$0xf]
      %v1777 = vld [vmem:[%s1734 + $0xa8] sm:$0xf]
      %v1778 = vld [vmem:[%s1734 + $0xac] sm:$0xf]
      %v1779 = vld [vmem:[%s1734 + $0xb0] sm:$0xf]
      %v1780 = vld [vmem:[%s1734 + $0xb4] sm:$0xf]
      %v1781 = vld [vmem:[%s1734 + $0xb8] sm:$0xf]
      %v1782 = vld [vmem:[%s1734 + $0xbc] sm:$0xf]
      %v1785 = vunpack.c.l.b16 %v1732
      %v1786 = vunpack.c.h.b16 %v1732
      %v1787 = vunpack.c.l.b16 %v1733
      %v1788 = vpack.c.b16 %v1785, %v1520
      %v1789 = vpack.c.b16 %v1786, %v1521
      %v1790 = vpack.c.b16 %v1787, %v1522
      %v1842 = vunpack.c.l.b16 %v1735
      %v1843 = vunpack.c.l.b16 %v1736
      %v1844 = vunpack.c.l.b16 %v1737
      %v1845 = vunpack.c.l.b16 %v1738
      %v1846 = vunpack.c.l.b16 %v1739
      %v1847 = vunpack.c.l.b16 %v1740
      %v1848 = vunpack.c.l.b16 %v1741
      %v1849 = vunpack.c.l.b16 %v1742
      %v1850 = vunpack.c.l.b16 %v1743
      %v1851 = vunpack.c.l.b16 %v1744
      %v1852 = vunpack.c.l.b16 %v1745
      %v1853 = vunpack.c.l.b16 %v1746
      %v1854 = vunpack.c.l.b16 %v1747
      %v1855 = vunpack.c.l.b16 %v1748
      %v1856 = vunpack.c.l.b16 %v1749
      %v1857 = vunpack.c.l.b16 %v1750
      %v1858 = vunpack.c.l.b16 %v1751
      %v1859 = vunpack.c.l.b16 %v1752
      %v1860 = vunpack.c.l.b16 %v1753
      %v1861 = vunpack.c.l.b16 %v1754
      %v1862 = vunpack.c.l.b16 %v1755
      %v1863 = vunpack.c.l.b16 %v1756
      %v1864 = vunpack.c.l.b16 %v1757
      %v1865 = vunpack.c.l.b16 %v1758
      %v1866 = vunpack.c.l.b16 %v1759
      %v1867 = vunpack.c.l.b16 %v1760
      %v1868 = vunpack.c.l.b16 %v1761
      %v1869 = vunpack.c.l.b16 %v1762
      %v1870 = vunpack.c.l.b16 %v1763
      %v1871 = vunpack.c.l.b16 %v1764
      %v1872 = vunpack.c.l.b16 %v1765
      %v1873 = vunpack.c.l.b16 %v1766
      %v1874 = vunpack.c.l.b16 %v1767
      %v1875 = vunpack.c.l.b16 %v1768
      %v1876 = vunpack.c.l.b16 %v1769
      %v1877 = vunpack.c.l.b16 %v1770
      %v1878 = vunpack.c.l.b16 %v1771
      %v1879 = vunpack.c.l.b16 %v1772
      %v1880 = vunpack.c.l.b16 %v1773
      %v1881 = vunpack.c.l.b16 %v1774
      %v1882 = vunpack.c.l.b16 %v1775
      %v1883 = vunpack.c.l.b16 %v1776
      %v1884 = vunpack.c.l.b16 %v1777
      %v1885 = vunpack.c.l.b16 %v1778
      %v1886 = vunpack.c.l.b16 %v1779
      %v1887 = vunpack.c.l.b16 %v1780
      %v1888 = vunpack.c.l.b16 %v1781
      %v1889 = vunpack.c.l.b16 %v1782
      %v1890 = vpack.c.b16 %v1843, %v1842
      %v1891 = vpack.c.b16 %v1845, %v1844
      %v1892 = vpack.c.b16 %v1847, %v1846
      %v1893 = vpack.c.b16 %v1849, %v1848
      %v1894 = vpack.c.b16 %v1851, %v1850
      %v1895 = vpack.c.b16 %v1853, %v1852
      %v1896 = vpack.c.b16 %v1855, %v1854
      %v1897 = vpack.c.b16 %v1857, %v1856
      %v1898 = vpack.c.b16 %v1859, %v1858
      %v1899 = vpack.c.b16 %v1861, %v1860
      %v1900 = vpack.c.b16 %v1863, %v1862
      %v1901 = vpack.c.b16 %v1865, %v1864
      %v1902 = vpack.c.b16 %v1867, %v1866
      %v1903 = vpack.c.b16 %v1869, %v1868
      %v1904 = vpack.c.b16 %v1871, %v1870
      %v1905 = vpack.c.b16 %v1873, %v1872
      %v1906 = vpack.c.b16 %v1875, %v1874
      %v1907 = vpack.c.b16 %v1877, %v1876
      %v1908 = vpack.c.b16 %v1879, %v1878
      %v1909 = vpack.c.b16 %v1881, %v1880
      %v1910 = vpack.c.b16 %v1883, %v1882
      %v1911 = vpack.c.b16 %v1885, %v1884
      %v1912 = vpack.c.b16 %v1887, %v1886
      %v1913 = vpack.c.b16 %v1889, %v1888
      %1938 = vmatpush.bf16.msra.mxu0 %v1897
      %1939 = vmatpush.bf16.msra.mxu0 %v1896
      %1940 = vmatpush.bf16.msra.mxu0 %v1895
      %1941 = vmatpush.bf16.msra.mxu0 %v1894
      %1942 = vmatpush.bf16.msra.mxu0 %v1893
      %1943 = vmatpush.bf16.msra.mxu0 %v1892
      %1944 = vmatpush.bf16.msra.mxu0 %v1891
      %1945 = vmatpush.bf16.msra.mxu0 %v1890
      %1946 = vmatmul.bf16.gmra.mxu0 %v1788
      %v1947 = vpop.f32.mrf.mxu0
      %v1948 = vadd.f32 0.0, %v1947
      %v1949 = vpop.f32.mrf.mxu0
      %v1950 = vadd.f32 0.0, %v1949
      %1951 = vdwg.mxu0
      %1952 = vmatpush.bf16.msra.mxu0 %v1905
      %1953 = vmatpush.bf16.msra.mxu0 %v1904
      %1954 = vmatpush.bf16.msra.mxu0 %v1903
      %1955 = vmatpush.bf16.msra.mxu0 %v1902
      %1956 = vmatpush.bf16.msra.mxu0 %v1901
      %1957 = vmatpush.bf16.msra.mxu0 %v1900
      %1958 = vmatpush.bf16.msra.mxu0 %v1899
      %1959 = vmatpush.bf16.msra.mxu0 %v1898
      %1960 = vmatmul.bf16.gmra.mxu0 %v1789
      %v1961 = vpop.f32.mrf.mxu0
      %v1962 = vadd.f32 %v1948, %v1961
      %v1963 = vpop.f32.mrf.mxu0
      %v1964 = vadd.f32 %v1950, %v1963
      %1965 = vdwg.mxu0
      %1966 = vmatpush.bf16.msra.mxu0 %v1913
      %1967 = vmatpush.bf16.msra.mxu0 %v1912
      %1968 = vmatpush.bf16.msra.mxu0 %v1911
      %1969 = vmatpush.bf16.msra.mxu0 %v1910
      %1970 = vmatpush.bf16.msra.mxu0 %v1909
      %1971 = vmatpush.bf16.msra.mxu0 %v1908
      %1972 = vmatpush.bf16.msra.mxu0 %v1907
      %1973 = vmatpush.bf16.msra.mxu0 %v1906
      %1974 = vmatmul.bf16.gmra.mxu0 %v1790
      %v1975 = vpop.f32.mrf.mxu0
      %v1976 = vadd.f32 %v1962, %v1975
      %v1977 = vpop.f32.mrf.mxu0
      %v1978 = vadd.f32 %v1964, %v1977
      %1979 = vdwg.mxu0
      %v1980 = vadd.f32 %v1730, %v1976
      %v1981 = vadd.f32 %v1731, %v1978
      %v1982 = vld [vmem:[%s397] sm:$0xff]
      %v1983 = vld [vmem:[%s397 + $0x8] sm:$0xf]
      %v1984 = vld [vmem:[%s397 + $0xc] sm:$0xff]
      %v1985 = vld [vmem:[%s397 + $0x14] sm:$0xf]
      %s1986 = scalar_lea.vmem %s3, 1152
      %v1987 = vld [vmem:[%s1986] sm:$0xf]
      %v1988 = vld [vmem:[%s1986 + $0x4] sm:$0xf]
      %v1989 = vld [vmem:[%s1986 + $0x8] sm:$0xf]
      %v1990 = vld [vmem:[%s1986 + $0xc] sm:$0xf]
      %v1991 = vld [vmem:[%s1986 + $0x10] sm:$0xf]
      %v1992 = vld [vmem:[%s1986 + $0x14] sm:$0xf]
      %v1993 = vld [vmem:[%s1986 + $0x18] sm:$0xf]
      %v1994 = vld [vmem:[%s1986 + $0x1c] sm:$0xf]
      %v1995 = vld [vmem:[%s1986 + $0x20] sm:$0xf]
      %v1996 = vld [vmem:[%s1986 + $0x24] sm:$0xf]
      %v1997 = vld [vmem:[%s1986 + $0x28] sm:$0xf]
      %v1998 = vld [vmem:[%s1986 + $0x2c] sm:$0xf]
      %v1999 = vld [vmem:[%s1986 + $0x30] sm:$0xf]
      %v2000 = vld [vmem:[%s1986 + $0x34] sm:$0xf]
      %v2001 = vld [vmem:[%s1986 + $0x38] sm:$0xf]
      %v2002 = vld [vmem:[%s1986 + $0x3c] sm:$0xf]
      %v2003 = vld [vmem:[%s1986 + $0x40] sm:$0xf]
      %v2004 = vld [vmem:[%s1986 + $0x44] sm:$0xf]
      %v2005 = vld [vmem:[%s1986 + $0x48] sm:$0xf]
      %v2006 = vld [vmem:[%s1986 + $0x4c] sm:$0xf]
      %v2007 = vld [vmem:[%s1986 + $0x50] sm:$0xf]
      %v2008 = vld [vmem:[%s1986 + $0x54] sm:$0xf]
      %v2009 = vld [vmem:[%s1986 + $0x58] sm:$0xf]
      %v2010 = vld [vmem:[%s1986 + $0x5c] sm:$0xf]
      %v2011 = vld [vmem:[%s1986 + $0x60] sm:$0xf]
      %v2012 = vld [vmem:[%s1986 + $0x64] sm:$0xf]
      %v2013 = vld [vmem:[%s1986 + $0x68] sm:$0xf]
      %v2014 = vld [vmem:[%s1986 + $0x6c] sm:$0xf]
      %v2015 = vld [vmem:[%s1986 + $0x70] sm:$0xf]
      %v2016 = vld [vmem:[%s1986 + $0x74] sm:$0xf]
      %v2017 = vld [vmem:[%s1986 + $0x78] sm:$0xf]
      %v2018 = vld [vmem:[%s1986 + $0x7c] sm:$0xf]
      %v2019 = vld [vmem:[%s1986 + $0x80] sm:$0xf]
      %v2020 = vld [vmem:[%s1986 + $0x84] sm:$0xf]
      %v2021 = vld [vmem:[%s1986 + $0x88] sm:$0xf]
      %v2022 = vld [vmem:[%s1986 + $0x8c] sm:$0xf]
      %v2023 = vld [vmem:[%s1986 + $0x90] sm:$0xf]
      %v2024 = vld [vmem:[%s1986 + $0x94] sm:$0xf]
      %v2025 = vld [vmem:[%s1986 + $0x98] sm:$0xf]
      %v2026 = vld [vmem:[%s1986 + $0x9c] sm:$0xf]
      %v2027 = vld [vmem:[%s1986 + $0xa0] sm:$0xf]
      %v2028 = vld [vmem:[%s1986 + $0xa4] sm:$0xf]
      %v2029 = vld [vmem:[%s1986 + $0xa8] sm:$0xf]
      %v2030 = vld [vmem:[%s1986 + $0xac] sm:$0xf]
      %v2031 = vld [vmem:[%s1986 + $0xb0] sm:$0xf]
      %v2032 = vld [vmem:[%s1986 + $0xb4] sm:$0xf]
      %v2033 = vld [vmem:[%s1986 + $0xb8] sm:$0xf]
      %v2034 = vld [vmem:[%s1986 + $0xbc] sm:$0xf]
      %v2039 = vunpack.c.l.b16 %v1982
      %v2040 = vunpack.c.h.b16 %v1982
      %v2041 = vunpack.c.l.b16 %v1983
      %v2042 = vunpack.c.l.b16 %v1984
      %v2043 = vunpack.c.h.b16 %v1984
      %v2044 = vunpack.c.l.b16 %v1985
      %v2045 = vpack.c.b16 %v2042, %v2039
      %v2046 = vpack.c.b16 %v2043, %v2040
      %v2047 = vpack.c.b16 %v2044, %v2041
      %v2099 = vunpack.c.l.b16 %v1987
      %v2100 = vunpack.c.l.b16 %v1988
      %v2101 = vunpack.c.l.b16 %v1989
      %v2102 = vunpack.c.l.b16 %v1990
      %v2103 = vunpack.c.l.b16 %v1991
      %v2104 = vunpack.c.l.b16 %v1992
      %v2105 = vunpack.c.l.b16 %v1993
      %v2106 = vunpack.c.l.b16 %v1994
      %v2107 = vunpack.c.l.b16 %v1995
      %v2108 = vunpack.c.l.b16 %v1996
      %v2109 = vunpack.c.l.b16 %v1997
      %v2110 = vunpack.c.l.b16 %v1998
      %v2111 = vunpack.c.l.b16 %v1999
      %v2112 = vunpack.c.l.b16 %v2000
      %v2113 = vunpack.c.l.b16 %v2001
      %v2114 = vunpack.c.l.b16 %v2002
      %v2115 = vunpack.c.l.b16 %v2003
      %v2116 = vunpack.c.l.b16 %v2004
      %v2117 = vunpack.c.l.b16 %v2005
      %v2118 = vunpack.c.l.b16 %v2006
      %v2119 = vunpack.c.l.b16 %v2007
      %v2120 = vunpack.c.l.b16 %v2008
      %v2121 = vunpack.c.l.b16 %v2009
      %v2122 = vunpack.c.l.b16 %v2010
      %v2123 = vunpack.c.l.b16 %v2011
      %v2124 = vunpack.c.l.b16 %v2012
      %v2125 = vunpack.c.l.b16 %v2013
      %v2126 = vunpack.c.l.b16 %v2014
      %v2127 = vunpack.c.l.b16 %v2015
      %v2128 = vunpack.c.l.b16 %v2016
      %v2129 = vunpack.c.l.b16 %v2017
      %v2130 = vunpack.c.l.b16 %v2018
      %v2131 = vunpack.c.l.b16 %v2019
      %v2132 = vunpack.c.l.b16 %v2020
      %v2133 = vunpack.c.l.b16 %v2021
      %v2134 = vunpack.c.l.b16 %v2022
      %v2135 = vunpack.c.l.b16 %v2023
      %v2136 = vunpack.c.l.b16 %v2024
      %v2137 = vunpack.c.l.b16 %v2025
      %v2138 = vunpack.c.l.b16 %v2026
      %v2139 = vunpack.c.l.b16 %v2027
      %v2140 = vunpack.c.l.b16 %v2028
      %v2141 = vunpack.c.l.b16 %v2029
      %v2142 = vunpack.c.l.b16 %v2030
      %v2143 = vunpack.c.l.b16 %v2031
      %v2144 = vunpack.c.l.b16 %v2032
      %v2145 = vunpack.c.l.b16 %v2033
      %v2146 = vunpack.c.l.b16 %v2034
      %v2147 = vpack.c.b16 %v2100, %v2099
      %v2148 = vpack.c.b16 %v2102, %v2101
      %v2149 = vpack.c.b16 %v2104, %v2103
      %v2150 = vpack.c.b16 %v2106, %v2105
      %v2151 = vpack.c.b16 %v2108, %v2107
      %v2152 = vpack.c.b16 %v2110, %v2109
      %v2153 = vpack.c.b16 %v2112, %v2111
      %v2154 = vpack.c.b16 %v2114, %v2113
      %v2155 = vpack.c.b16 %v2116, %v2115
      %v2156 = vpack.c.b16 %v2118, %v2117
      %v2157 = vpack.c.b16 %v2120, %v2119
      %v2158 = vpack.c.b16 %v2122, %v2121
      %v2159 = vpack.c.b16 %v2124, %v2123
      %v2160 = vpack.c.b16 %v2126, %v2125
      %v2161 = vpack.c.b16 %v2128, %v2127
      %v2162 = vpack.c.b16 %v2130, %v2129
      %v2163 = vpack.c.b16 %v2132, %v2131
      %v2164 = vpack.c.b16 %v2134, %v2133
      %v2165 = vpack.c.b16 %v2136, %v2135
      %v2166 = vpack.c.b16 %v2138, %v2137
      %v2167 = vpack.c.b16 %v2140, %v2139
      %v2168 = vpack.c.b16 %v2142, %v2141
      %v2169 = vpack.c.b16 %v2144, %v2143
      %v2170 = vpack.c.b16 %v2146, %v2145
      %2195 = vmatpush.bf16.msra.mxu0 %v2154
      %2196 = vmatpush.bf16.msra.mxu0 %v2153
      %2197 = vmatpush.bf16.msra.mxu0 %v2152
      %2198 = vmatpush.bf16.msra.mxu0 %v2151
      %2199 = vmatpush.bf16.msra.mxu0 %v2150
      %2200 = vmatpush.bf16.msra.mxu0 %v2149
      %2201 = vmatpush.bf16.msra.mxu0 %v2148
      %2202 = vmatpush.bf16.msra.mxu0 %v2147
      %2203 = vmatmul.bf16.gmra.mxu0 %v2045
      %v2204 = vpop.f32.mrf.mxu0
      %v2205 = vadd.f32 0.0, %v2204
      %v2206 = vpop.f32.mrf.mxu0
      %v2207 = vadd.f32 0.0, %v2206
      %2208 = vdwg.mxu0
      %2209 = vmatpush.bf16.msra.mxu0 %v2162
      %2210 = vmatpush.bf16.msra.mxu0 %v2161
      %2211 = vmatpush.bf16.msra.mxu0 %v2160
      %2212 = vmatpush.bf16.msra.mxu0 %v2159
      %2213 = vmatpush.bf16.msra.mxu0 %v2158
      %2214 = vmatpush.bf16.msra.mxu0 %v2157
      %2215 = vmatpush.bf16.msra.mxu0 %v2156
      %2216 = vmatpush.bf16.msra.mxu0 %v2155
      %2217 = vmatmul.bf16.gmra.mxu0 %v2046
      %v2218 = vpop.f32.mrf.mxu0
      %v2219 = vadd.f32 %v2205, %v2218
      %v2220 = vpop.f32.mrf.mxu0
      %v2221 = vadd.f32 %v2207, %v2220
      %2222 = vdwg.mxu0
      %2223 = vmatpush.bf16.msra.mxu0 %v2170
      %2224 = vmatpush.bf16.msra.mxu0 %v2169
      %2225 = vmatpush.bf16.msra.mxu0 %v2168
      %2226 = vmatpush.bf16.msra.mxu0 %v2167
      %2227 = vmatpush.bf16.msra.mxu0 %v2166
      %2228 = vmatpush.bf16.msra.mxu0 %v2165
      %2229 = vmatpush.bf16.msra.mxu0 %v2164
      %2230 = vmatpush.bf16.msra.mxu0 %v2163
      %2231 = vmatmul.bf16.gmra.mxu0 %v2047
      %v2232 = vpop.f32.mrf.mxu0
      %v2233 = vadd.f32 %v2219, %v2232
      %v2234 = vpop.f32.mrf.mxu0
      %v2235 = vadd.f32 %v2221, %v2234
      %2236 = vdwg.mxu0
      %v2237 = vadd.f32 %v1980, %v2233
      %v2238 = vadd.f32 %v1981, %v2235
      %v2239 = vld [vmem:[%s397] sm:$0xcc]
      %v2240 = vld [vmem:[%s397 + $0x8] sm:$0xc]
      %v2241 = vld [vmem:[%s397 + $0xc] sm:$0xff]
      %v2242 = vld [vmem:[%s397 + $0x14] sm:$0xf]
      %v2243 = vld [vmem:[%s397 + $0x18] sm:$0x33]
      %v2244 = vld [vmem:[%s397 + $0x20] sm:$0x3]
      %s2245 = scalar_lea.vmem %s3, 1344
      %v2246 = vld [vmem:[%s2245] sm:$0xf]
      %v2247 = vld [vmem:[%s2245 + $0x4] sm:$0xf]
      %v2248 = vld [vmem:[%s2245 + $0x8] sm:$0xf]
      %v2249 = vld [vmem:[%s2245 + $0xc] sm:$0xf]
      %v2250 = vld [vmem:[%s2245 + $0x10] sm:$0xf]
      %v2251 = vld [vmem:[%s2245 + $0x14] sm:$0xf]
      %v2252 = vld [vmem:[%s2245 + $0x18] sm:$0xf]
      %v2253 = vld [vmem:[%s2245 + $0x1c] sm:$0xf]
      %v2254 = vld [vmem:[%s2245 + $0x20] sm:$0xf]
      %v2255 = vld [vmem:[%s2245 + $0x24] sm:$0xf]
      %v2256 = vld [vmem:[%s2245 + $0x28] sm:$0xf]
      %v2257 = vld [vmem:[%s2245 + $0x2c] sm:$0xf]
      %v2258 = vld [vmem:[%s2245 + $0x30] sm:$0xf]
      %v2259 = vld [vmem:[%s2245 + $0x34] sm:$0xf]
      %v2260 = vld [vmem:[%s2245 + $0x38] sm:$0xf]
      %v2261 = vld [vmem:[%s2245 + $0x3c] sm:$0xf]
      %v2262 = vld [vmem:[%s2245 + $0x40] sm:$0xf]
      %v2263 = vld [vmem:[%s2245 + $0x44] sm:$0xf]
      %v2264 = vld [vmem:[%s2245 + $0x48] sm:$0xf]
      %v2265 = vld [vmem:[%s2245 + $0x4c] sm:$0xf]
      %v2266 = vld [vmem:[%s2245 + $0x50] sm:$0xf]
      %v2267 = vld [vmem:[%s2245 + $0x54] sm:$0xf]
      %v2268 = vld [vmem:[%s2245 + $0x58] sm:$0xf]
      %v2269 = vld [vmem:[%s2245 + $0x5c] sm:$0xf]
      %v2270 = vld [vmem:[%s2245 + $0x60] sm:$0xf]
      %v2271 = vld [vmem:[%s2245 + $0x64] sm:$0xf]
      %v2272 = vld [vmem:[%s2245 + $0x68] sm:$0xf]
      %v2273 = vld [vmem:[%s2245 + $0x6c] sm:$0xf]
      %v2274 = vld [vmem:[%s2245 + $0x70] sm:$0xf]
      %v2275 = vld [vmem:[%s2245 + $0x74] sm:$0xf]
      %v2276 = vld [vmem:[%s2245 + $0x78] sm:$0xf]
      %v2277 = vld [vmem:[%s2245 + $0x7c] sm:$0xf]
      %v2278 = vld [vmem:[%s2245 + $0x80] sm:$0xf]
      %v2279 = vld [vmem:[%s2245 + $0x84] sm:$0xf]
      %v2280 = vld [vmem:[%s2245 + $0x88] sm:$0xf]
      %v2281 = vld [vmem:[%s2245 + $0x8c] sm:$0xf]
      %v2282 = vld [vmem:[%s2245 + $0x90] sm:$0xf]
      %v2283 = vld [vmem:[%s2245 + $0x94] sm:$0xf]
      %v2284 = vld [vmem:[%s2245 + $0x98] sm:$0xf]
      %v2285 = vld [vmem:[%s2245 + $0x9c] sm:$0xf]
      %v2286 = vld [vmem:[%s2245 + $0xa0] sm:$0xf]
      %v2287 = vld [vmem:[%s2245 + $0xa4] sm:$0xf]
      %v2288 = vld [vmem:[%s2245 + $0xa8] sm:$0xf]
      %v2289 = vld [vmem:[%s2245 + $0xac] sm:$0xf]
      %v2290 = vld [vmem:[%s2245 + $0xb0] sm:$0xf]
      %v2291 = vld [vmem:[%s2245 + $0xb4] sm:$0xf]
      %v2292 = vld [vmem:[%s2245 + $0xb8] sm:$0xf]
      %v2293 = vld [vmem:[%s2245 + $0xbc] sm:$0xf]
      %v2300 = vunpack.c.l.b16 %v2239
      %v2301 = vunpack.c.h.b16 %v2239
      %v2302 = vunpack.c.l.b16 %v2240
      %v2303 = vunpack.c.l.b16 %v2241
      %v2304 = vunpack.c.h.b16 %v2241
      %v2305 = vunpack.c.l.b16 %v2242
      %v2306 = vunpack.c.l.b16 %v2243
      %v2307 = vunpack.c.h.b16 %v2243
      %v2308 = vunpack.c.l.b16 %v2244
      %v2309 = vpack.c.b16 %v2303, %v2300
      %v2310 = vpack.c.b16 %v2304, %v2301
      %v2311 = vpack.c.b16 %v2305, %v2302
      %v2312 = vpack.c.b16 %v2306, %v2306
      %v2313 = vpack.c.b16 %v2307, %v2307
      %v2314 = vpack.c.b16 %v2308, %v2308
      %v2315 = vrot.slane %v2309, 2
      %v2316 = vrot.slane %v2312, 2
      %v2317 = vsel %vm548, %v2315, %v2316
      %v2318 = vrot.slane %v2310, 2
      %v2319 = vrot.slane %v2313, 2
      %v2320 = vsel %vm548, %v2318, %v2319
      %v2321 = vrot.slane %v2311, 2
      %v2322 = vrot.slane %v2314, 2
      %v2323 = vsel %vm548, %v2321, %v2322
      %v2375 = vunpack.c.l.b16 %v2246
      %v2376 = vunpack.c.l.b16 %v2247
      %v2377 = vunpack.c.l.b16 %v2248
      %v2378 = vunpack.c.l.b16 %v2249
      %v2379 = vunpack.c.l.b16 %v2250
      %v2380 = vunpack.c.l.b16 %v2251
      %v2381 = vunpack.c.l.b16 %v2252
      %v2382 = vunpack.c.l.b16 %v2253
      %v2383 = vunpack.c.l.b16 %v2254
      %v2384 = vunpack.c.l.b16 %v2255
      %v2385 = vunpack.c.l.b16 %v2256
      %v2386 = vunpack.c.l.b16 %v2257
      %v2387 = vunpack.c.l.b16 %v2258
      %v2388 = vunpack.c.l.b16 %v2259
      %v2389 = vunpack.c.l.b16 %v2260
      %v2390 = vunpack.c.l.b16 %v2261
      %v2391 = vunpack.c.l.b16 %v2262
      %v2392 = vunpack.c.l.b16 %v2263
      %v2393 = vunpack.c.l.b16 %v2264
      %v2394 = vunpack.c.l.b16 %v2265
      %v2395 = vunpack.c.l.b16 %v2266
      %v2396 = vunpack.c.l.b16 %v2267
      %v2397 = vunpack.c.l.b16 %v2268
      %v2398 = vunpack.c.l.b16 %v2269
      %v2399 = vunpack.c.l.b16 %v2270
      %v2400 = vunpack.c.l.b16 %v2271
      %v2401 = vunpack.c.l.b16 %v2272
      %v2402 = vunpack.c.l.b16 %v2273
      %v2403 = vunpack.c.l.b16 %v2274
      %v2404 = vunpack.c.l.b16 %v2275
      %v2405 = vunpack.c.l.b16 %v2276
      %v2406 = vunpack.c.l.b16 %v2277
      %v2407 = vunpack.c.l.b16 %v2278
      %v2408 = vunpack.c.l.b16 %v2279
      %v2409 = vunpack.c.l.b16 %v2280
      %v2410 = vunpack.c.l.b16 %v2281
      %v2411 = vunpack.c.l.b16 %v2282
      %v2412 = vunpack.c.l.b16 %v2283
      %v2413 = vunpack.c.l.b16 %v2284
      %v2414 = vunpack.c.l.b16 %v2285
      %v2415 = vunpack.c.l.b16 %v2286
      %v2416 = vunpack.c.l.b16 %v2287
      %v2417 = vunpack.c.l.b16 %v2288
      %v2418 = vunpack.c.l.b16 %v2289
      %v2419 = vunpack.c.l.b16 %v2290
      %v2420 = vunpack.c.l.b16 %v2291
      %v2421 = vunpack.c.l.b16 %v2292
      %v2422 = vunpack.c.l.b16 %v2293
      %v2423 = vpack.c.b16 %v2376, %v2375
      %v2424 = vpack.c.b16 %v2378, %v2377
      %v2425 = vpack.c.b16 %v2380, %v2379
      %v2426 = vpack.c.b16 %v2382, %v2381
      %v2427 = vpack.c.b16 %v2384, %v2383
      %v2428 = vpack.c.b16 %v2386, %v2385
      %v2429 = vpack.c.b16 %v2388, %v2387
      %v2430 = vpack.c.b16 %v2390, %v2389
      %v2431 = vpack.c.b16 %v2392, %v2391
      %v2432 = vpack.c.b16 %v2394, %v2393
      %v2433 = vpack.c.b16 %v2396, %v2395
      %v2434 = vpack.c.b16 %v2398, %v2397
      %v2435 = vpack.c.b16 %v2400, %v2399
      %v2436 = vpack.c.b16 %v2402, %v2401
      %v2437 = vpack.c.b16 %v2404, %v2403
      %v2438 = vpack.c.b16 %v2406, %v2405
      %v2439 = vpack.c.b16 %v2408, %v2407
      %v2440 = vpack.c.b16 %v2410, %v2409
      %v2441 = vpack.c.b16 %v2412, %v2411
      %v2442 = vpack.c.b16 %v2414, %v2413
      %v2443 = vpack.c.b16 %v2416, %v2415
      %v2444 = vpack.c.b16 %v2418, %v2417
      %v2445 = vpack.c.b16 %v2420, %v2419
      %v2446 = vpack.c.b16 %v2422, %v2421
      %2471 = vmatpush.bf16.msra.mxu0 %v2430
      %2472 = vmatpush.bf16.msra.mxu0 %v2429
      %2473 = vmatpush.bf16.msra.mxu0 %v2428
      %2474 = vmatpush.bf16.msra.mxu0 %v2427
      %2475 = vmatpush.bf16.msra.mxu0 %v2426
      %2476 = vmatpush.bf16.msra.mxu0 %v2425
      %2477 = vmatpush.bf16.msra.mxu0 %v2424
      %2478 = vmatpush.bf16.msra.mxu0 %v2423
      %2479 = vmatmul.bf16.gmra.mxu0 %v2317
      %v2480 = vpop.f32.mrf.mxu0
      %v2481 = vadd.f32 0.0, %v2480
      %v2482 = vpop.f32.mrf.mxu0
      %v2483 = vadd.f32 0.0, %v2482
      %2484 = vdwg.mxu0
      %2485 = vmatpush.bf16.msra.mxu0 %v2438
      %2486 = vmatpush.bf16.msra.mxu0 %v2437
      %2487 = vmatpush.bf16.msra.mxu0 %v2436
      %2488 = vmatpush.bf16.msra.mxu0 %v2435
      %2489 = vmatpush.bf16.msra.mxu0 %v2434
      %2490 = vmatpush.bf16.msra.mxu0 %v2433
      %2491 = vmatpush.bf16.msra.mxu0 %v2432
      %2492 = vmatpush.bf16.msra.mxu0 %v2431
      %2493 = vmatmul.bf16.gmra.mxu0 %v2320
      %v2494 = vpop.f32.mrf.mxu0
      %v2495 = vadd.f32 %v2481, %v2494
      %v2496 = vpop.f32.mrf.mxu0
      %v2497 = vadd.f32 %v2483, %v2496
      %2498 = vdwg.mxu0
      %2499 = vmatpush.bf16.msra.mxu0 %v2446
      %2500 = vmatpush.bf16.msra.mxu0 %v2445
      %2501 = vmatpush.bf16.msra.mxu0 %v2444
      %2502 = vmatpush.bf16.msra.mxu0 %v2443
      %2503 = vmatpush.bf16.msra.mxu0 %v2442
      %2504 = vmatpush.bf16.msra.mxu0 %v2441
      %2505 = vmatpush.bf16.msra.mxu0 %v2440
      %2506 = vmatpush.bf16.msra.mxu0 %v2439
      %2507 = vmatmul.bf16.gmra.mxu0 %v2323
      %v2508 = vpop.f32.mrf.mxu0
      %v2509 = vadd.f32 %v2495, %v2508
      %v2510 = vpop.f32.mrf.mxu0
      %v2511 = vadd.f32 %v2497, %v2510
      %2512 = vdwg.mxu0
      %v2513 = vadd.f32 %v2237, %v2509
      %v2514 = vadd.f32 %v2238, %v2511
      %v2515 = vld [vmem:[%s397 + $0x18] sm:$0xff]
      %v2516 = vld [vmem:[%s397 + $0x20] sm:$0xf]
      %s2517 = scalar_lea.vmem %s3, 1536
      %v2518 = vld [vmem:[%s2517] sm:$0xf]
      %v2519 = vld [vmem:[%s2517 + $0x4] sm:$0xf]
      %v2520 = vld [vmem:[%s2517 + $0x8] sm:$0xf]
      %v2521 = vld [vmem:[%s2517 + $0xc] sm:$0xf]
      %v2522 = vld [vmem:[%s2517 + $0x10] sm:$0xf]
      %v2523 = vld [vmem:[%s2517 + $0x14] sm:$0xf]
      %v2524 = vld [vmem:[%s2517 + $0x18] sm:$0xf]
      %v2525 = vld [vmem:[%s2517 + $0x1c] sm:$0xf]
      %v2526 = vld [vmem:[%s2517 + $0x20] sm:$0xf]
      %v2527 = vld [vmem:[%s2517 + $0x24] sm:$0xf]
      %v2528 = vld [vmem:[%s2517 + $0x28] sm:$0xf]
      %v2529 = vld [vmem:[%s2517 + $0x2c] sm:$0xf]
      %v2530 = vld [vmem:[%s2517 + $0x30] sm:$0xf]
      %v2531 = vld [vmem:[%s2517 + $0x34] sm:$0xf]
      %v2532 = vld [vmem:[%s2517 + $0x38] sm:$0xf]
      %v2533 = vld [vmem:[%s2517 + $0x3c] sm:$0xf]
      %v2534 = vld [vmem:[%s2517 + $0x40] sm:$0xf]
      %v2535 = vld [vmem:[%s2517 + $0x44] sm:$0xf]
      %v2536 = vld [vmem:[%s2517 + $0x48] sm:$0xf]
      %v2537 = vld [vmem:[%s2517 + $0x4c] sm:$0xf]
      %v2538 = vld [vmem:[%s2517 + $0x50] sm:$0xf]
      %v2539 = vld [vmem:[%s2517 + $0x54] sm:$0xf]
      %v2540 = vld [vmem:[%s2517 + $0x58] sm:$0xf]
      %v2541 = vld [vmem:[%s2517 + $0x5c] sm:$0xf]
      %v2542 = vld [vmem:[%s2517 + $0x60] sm:$0xf]
      %v2543 = vld [vmem:[%s2517 + $0x64] sm:$0xf]
      %v2544 = vld [vmem:[%s2517 + $0x68] sm:$0xf]
      %v2545 = vld [vmem:[%s2517 + $0x6c] sm:$0xf]
      %v2546 = vld [vmem:[%s2517 + $0x70] sm:$0xf]
      %v2547 = vld [vmem:[%s2517 + $0x74] sm:$0xf]
      %v2548 = vld [vmem:[%s2517 + $0x78] sm:$0xf]
      %v2549 = vld [vmem:[%s2517 + $0x7c] sm:$0xf]
      %v2550 = vld [vmem:[%s2517 + $0x80] sm:$0xf]
      %v2551 = vld [vmem:[%s2517 + $0x84] sm:$0xf]
      %v2552 = vld [vmem:[%s2517 + $0x88] sm:$0xf]
      %v2553 = vld [vmem:[%s2517 + $0x8c] sm:$0xf]
      %v2554 = vld [vmem:[%s2517 + $0x90] sm:$0xf]
      %v2555 = vld [vmem:[%s2517 + $0x94] sm:$0xf]
      %v2556 = vld [vmem:[%s2517 + $0x98] sm:$0xf]
      %v2557 = vld [vmem:[%s2517 + $0x9c] sm:$0xf]
      %v2558 = vld [vmem:[%s2517 + $0xa0] sm:$0xf]
      %v2559 = vld [vmem:[%s2517 + $0xa4] sm:$0xf]
      %v2560 = vld [vmem:[%s2517 + $0xa8] sm:$0xf]
      %v2561 = vld [vmem:[%s2517 + $0xac] sm:$0xf]
      %v2562 = vld [vmem:[%s2517 + $0xb0] sm:$0xf]
      %v2563 = vld [vmem:[%s2517 + $0xb4] sm:$0xf]
      %v2564 = vld [vmem:[%s2517 + $0xb8] sm:$0xf]
      %v2565 = vld [vmem:[%s2517 + $0xbc] sm:$0xf]
      %v2568 = vunpack.c.l.b16 %v2515
      %v2569 = vunpack.c.h.b16 %v2515
      %v2570 = vunpack.c.l.b16 %v2516
      %v2571 = vpack.c.b16 %v2568, %v2303
      %v2572 = vpack.c.b16 %v2569, %v2304
      %v2573 = vpack.c.b16 %v2570, %v2305
      %v2625 = vunpack.c.l.b16 %v2518
      %v2626 = vunpack.c.l.b16 %v2519
      %v2627 = vunpack.c.l.b16 %v2520
      %v2628 = vunpack.c.l.b16 %v2521
      %v2629 = vunpack.c.l.b16 %v2522
      %v2630 = vunpack.c.l.b16 %v2523
      %v2631 = vunpack.c.l.b16 %v2524
      %v2632 = vunpack.c.l.b16 %v2525
      %v2633 = vunpack.c.l.b16 %v2526
      %v2634 = vunpack.c.l.b16 %v2527
      %v2635 = vunpack.c.l.b16 %v2528
      %v2636 = vunpack.c.l.b16 %v2529
      %v2637 = vunpack.c.l.b16 %v2530
      %v2638 = vunpack.c.l.b16 %v2531
      %v2639 = vunpack.c.l.b16 %v2532
      %v2640 = vunpack.c.l.b16 %v2533
      %v2641 = vunpack.c.l.b16 %v2534
      %v2642 = vunpack.c.l.b16 %v2535
      %v2643 = vunpack.c.l.b16 %v2536
      %v2644 = vunpack.c.l.b16 %v2537
      %v2645 = vunpack.c.l.b16 %v2538
      %v2646 = vunpack.c.l.b16 %v2539
      %v2647 = vunpack.c.l.b16 %v2540
      %v2648 = vunpack.c.l.b16 %v2541
      %v2649 = vunpack.c.l.b16 %v2542
      %v2650 = vunpack.c.l.b16 %v2543
      %v2651 = vunpack.c.l.b16 %v2544
      %v2652 = vunpack.c.l.b16 %v2545
      %v2653 = vunpack.c.l.b16 %v2546
      %v2654 = vunpack.c.l.b16 %v2547
      %v2655 = vunpack.c.l.b16 %v2548
      %v2656 = vunpack.c.l.b16 %v2549
      %v2657 = vunpack.c.l.b16 %v2550
      %v2658 = vunpack.c.l.b16 %v2551
      %v2659 = vunpack.c.l.b16 %v2552
      %v2660 = vunpack.c.l.b16 %v2553
      %v2661 = vunpack.c.l.b16 %v2554
      %v2662 = vunpack.c.l.b16 %v2555
      %v2663 = vunpack.c.l.b16 %v2556
      %v2664 = vunpack.c.l.b16 %v2557
      %v2665 = vunpack.c.l.b16 %v2558
      %v2666 = vunpack.c.l.b16 %v2559
      %v2667 = vunpack.c.l.b16 %v2560
      %v2668 = vunpack.c.l.b16 %v2561
      %v2669 = vunpack.c.l.b16 %v2562
      %v2670 = vunpack.c.l.b16 %v2563
      %v2671 = vunpack.c.l.b16 %v2564
      %v2672 = vunpack.c.l.b16 %v2565
      %v2673 = vpack.c.b16 %v2626, %v2625
      %v2674 = vpack.c.b16 %v2628, %v2627
      %v2675 = vpack.c.b16 %v2630, %v2629
      %v2676 = vpack.c.b16 %v2632, %v2631
      %v2677 = vpack.c.b16 %v2634, %v2633
      %v2678 = vpack.c.b16 %v2636, %v2635
      %v2679 = vpack.c.b16 %v2638, %v2637
      %v2680 = vpack.c.b16 %v2640, %v2639
      %v2681 = vpack.c.b16 %v2642, %v2641
      %v2682 = vpack.c.b16 %v2644, %v2643
      %v2683 = vpack.c.b16 %v2646, %v2645
      %v2684 = vpack.c.b16 %v2648, %v2647
      %v2685 = vpack.c.b16 %v2650, %v2649
      %v2686 = vpack.c.b16 %v2652, %v2651
      %v2687 = vpack.c.b16 %v2654, %v2653
      %v2688 = vpack.c.b16 %v2656, %v2655
      %v2689 = vpack.c.b16 %v2658, %v2657
      %v2690 = vpack.c.b16 %v2660, %v2659
      %v2691 = vpack.c.b16 %v2662, %v2661
      %v2692 = vpack.c.b16 %v2664, %v2663
      %v2693 = vpack.c.b16 %v2666, %v2665
      %v2694 = vpack.c.b16 %v2668, %v2667
      %v2695 = vpack.c.b16 %v2670, %v2669
      %v2696 = vpack.c.b16 %v2672, %v2671
      %2721 = vmatpush.bf16.msra.mxu0 %v2680
      %2722 = vmatpush.bf16.msra.mxu0 %v2679
      %2723 = vmatpush.bf16.msra.mxu0 %v2678
      %2724 = vmatpush.bf16.msra.mxu0 %v2677
      %2725 = vmatpush.bf16.msra.mxu0 %v2676
      %2726 = vmatpush.bf16.msra.mxu0 %v2675
      %2727 = vmatpush.bf16.msra.mxu0 %v2674
      %2728 = vmatpush.bf16.msra.mxu0 %v2673
      %2729 = vmatmul.bf16.gmra.mxu0 %v2571
      %v2730 = vpop.f32.mrf.mxu0
      %v2731 = vadd.f32 0.0, %v2730
      %v2732 = vpop.f32.mrf.mxu0
      %v2733 = vadd.f32 0.0, %v2732
      %2734 = vdwg.mxu0
      %2735 = vmatpush.bf16.msra.mxu0 %v2688
      %2736 = vmatpush.bf16.msra.mxu0 %v2687
      %2737 = vmatpush.bf16.msra.mxu0 %v2686
      %2738 = vmatpush.bf16.msra.mxu0 %v2685
      %2739 = vmatpush.bf16.msra.mxu0 %v2684
      %2740 = vmatpush.bf16.msra.mxu0 %v2683
      %2741 = vmatpush.bf16.msra.mxu0 %v2682
      %2742 = vmatpush.bf16.msra.mxu0 %v2681
      %2743 = vmatmul.bf16.gmra.mxu0 %v2572
      %v2744 = vpop.f32.mrf.mxu0
      %v2745 = vadd.f32 %v2731, %v2744
      %v2746 = vpop.f32.mrf.mxu0
      %v2747 = vadd.f32 %v2733, %v2746
      %2748 = vdwg.mxu0
      %2749 = vmatpush.bf16.msra.mxu0 %v2696
      %2750 = vmatpush.bf16.msra.mxu0 %v2695
      %2751 = vmatpush.bf16.msra.mxu0 %v2694
      %2752 = vmatpush.bf16.msra.mxu0 %v2693
      %2753 = vmatpush.bf16.msra.mxu0 %v2692
      %2754 = vmatpush.bf16.msra.mxu0 %v2691
      %2755 = vmatpush.bf16.msra.mxu0 %v2690
      %2756 = vmatpush.bf16.msra.mxu0 %v2689
      %2757 = vmatmul.bf16.gmra.mxu0 %v2573
      %v2758 = vpop.f32.mrf.mxu0
      %v2759 = vadd.f32 %v2745, %v2758
      %v2760 = vpop.f32.mrf.mxu0
      %v2761 = vadd.f32 %v2747, %v2760
      %2762 = vdwg.mxu0
      %v2763 = vadd.f32 %v2513, %v2759
      %v2764 = vadd.f32 %v2514, %v2761
      %v2765 = vld [vmem:[%s410] sm:$0x1]
      %v2766 = vadd.f32 %v2763, %v2764
      %v2767 = vrot.slane %v2766, 4
      %v2768 = vadd.f32 %v2766, %v2767
      %v2769 = vrot.slane %v2768, 2
      %v2770 = vadd.f32 %v2768, %v2769
      %v2771 = vrot.slane %v2770, 1
      %v2772 = vadd.f32 %v2770, %v2771
      %v2773 = vadd.f32 %v2765, %v2772
      %2774 = vst [vmem:[%s410] sm:$0x1] %v2773
      %v2775 = vld [vmem:[%s413] sm:$0x1]
      %v2776 = vmul.f32 %v2763, %v2763
      %v2777 = vmul.f32 %v2764, %v2764
      %v2778 = vadd.f32 %v2776, %v2777
      %v2779 = vrot.slane %v2778, 4
      %v2780 = vadd.f32 %v2778, %v2779
      %v2781 = vrot.slane %v2780, 2
      %v2782 = vadd.f32 %v2780, %v2781
      %v2783 = vrot.slane %v2782, 1
      %v2784 = vadd.f32 %v2782, %v2783
      %v2785 = vadd.f32 %v2775, %v2784
      %2786 = vst [vmem:[%s413] sm:$0x1] %v2785
      %v2787 = vld [vmem:[%s4] sm:$0x1]
      %v2789 = vperm.slane %v2787, 0
      %v2791 = vadd.f32 %v2763, %v2789
      %v2792 = vadd.f32 %v2764, %v2789
      %v2793 = vpack.c.bf16 %v2791, %v2791
      %v2794 = vpack.c.bf16 %v2792, %v2792
      %2795 = vst [vmem:[%s407] sm:$0xf] %v2793
      %2796 = vst [vmem:[%s407 + $0x4] sm:$0xf] %v2794
      %p2797 = scmp.lt.s32.totalorder %s23, 1
      %s2798 = scalar_select %p2797, %s23, 1
      %p2799 = scmp.lt.s32.totalorder %s24, 3
      %s2800 = scalar_select %p2799, %s24, 3
      %s2801 = smul.addr %s2800, 2
      %s2802 = smul.addr %s2798, 8
      %s2803 = sadd.s32 %s2801, %s2802
      %s2804 = smul.addr %s2803, 4
      %s2805 = scalar_lea.vmem %s5, %s2804
      %p2806 = scmp.lt.s32.totalorder %s23, 1
      %s2807 = scalar_select %p2806, %s23, 1
      %s2808 = scalar_lea.vmem %s6, %s2807
      %p2809 = scmp.lt.s32.totalorder %s23, 1
      %s2810 = scalar_select %p2809, %s23, 1
      %s2811 = scalar_lea.vmem %s7, %s2810
      // Predicated region
      $region45: #{downsampling_block_forward.4} parent=39 // pred_check
        %p2812 = pneg %p181
      $region46: #{downsampling_block_forward.4} parent=39 // pred_check_branch
        %2814 = sbr.rel (%p2812) target = $region48
      $region47: #{downsampling_block_forward.4} parent=39 // pred_region
        _
      $region48: #{downsampling_block_forward.4} parent=39 // pred_fallthru
        _
      // Predicated region
      $region49: #{downsampling_block_forward.4} parent=39 // pred_check
        %p2815 = pneg %p207
      $region50: #{downsampling_block_forward.4} parent=39 // pred_check_branch
        %2817 = sbr.rel (%p2815) target = $region52
      $region51: #{downsampling_block_forward.4} parent=39 // pred_region
        _
      $region52: #{downsampling_block_forward.4} parent=39 // pred_fallthru
        _
      // Predicated region
      $region53: #{downsampling_block_forward.4} parent=39 // pred_check
        %p2818 = pneg %p233
      $region54: #{downsampling_block_forward.4} parent=39 // pred_check_branch
        %2820 = sbr.rel (%p2818) target = $region56
      $region55: #{downsampling_block_forward.4} parent=39 // pred_region
        _
      $region56: #{downsampling_block_forward.4} parent=39 // pred_fallthru
        _
    $region40: #{downsampling_block_forward.4} parent=5 // pred_fallthru
      _
    %p2821 = scmp.le.s32.totalorder 2, %s14
    // Predicated region
    $region57: #{downsampling_block_forward.4} parent=5 // pred_check
      %p2822 = pneg %p2821
    $region58: #{downsampling_block_forward.4} parent=5 // pred_check_branch
      %2824 = sbr.rel (%p2822) target = $region60
    $region59: #{downsampling_block_forward.4} parent=5 // pred_region
      %s2825 = ssub.s32 %s14, 2
      // Predicated region
      $region61: #{downsampling_block_forward.4} parent=59 // pred_check
        %p2826 = pneg %p187
      $region62: #{downsampling_block_forward.4} parent=59 // pred_check_branch
        %2828 = sbr.rel (%p2826) target = $region64
      $region63: #{downsampling_block_forward.4} parent=59 // pred_region
        %p2829 = scmp.lt.s32.totalorder %s25, 1
        %s2830 = scalar_select %p2829, %s25, 1
        %p2831 = scmp.lt.s32.totalorder %s26, 3
        %s2832 = scalar_select %p2831, %s26, 3
        %s2833 = smul.addr %s2832, 2
        %s2834 = smul.addr %s2830, 8
        %s2835 = sadd.s32 %s2833, %s2834
        %s2836 = smul.addr %s2835, 4
        %s2837 = scalar_lea.vmem %s5, %s2836
      $region64: #{downsampling_block_forward.4} parent=59 // pred_fallthru
        _
      // Predicated region
      $region65: #{downsampling_block_forward.4} parent=59 // pred_check
        %p2838 = pneg %p213
      $region66: #{downsampling_block_forward.4} parent=59 // pred_check_branch
        %2840 = sbr.rel (%p2838) target = $region68
      $region67: #{downsampling_block_forward.4} parent=59 // pred_region
        %p2841 = scmp.lt.s32.totalorder %s25, 1
        %s2842 = scalar_select %p2841, %s25, 1
        %s2843 = scalar_lea.vmem %s6, %s2842
      $region68: #{downsampling_block_forward.4} parent=59 // pred_fallthru
        _
      // Predicated region
      $region69: #{downsampling_block_forward.4} parent=59 // pred_check
        %p2844 = pneg %p239
      $region70: #{downsampling_block_forward.4} parent=59 // pred_check_branch
        %2846 = sbr.rel (%p2844) target = $region72
      $region71: #{downsampling_block_forward.4} parent=59 // pred_region
        %p2847 = scmp.lt.s32.totalorder %s25, 1
        %s2848 = scalar_select %p2847, %s25, 1
        %s2849 = scalar_lea.vmem %s7, %s2848
      $region72: #{downsampling_block_forward.4} parent=59 // pred_fallthru
        _
    $region60: #{downsampling_block_forward.4} parent=5 // pred_fallthru
      _
  $region6: #{downsampling_block_forward.4} parent=0 // loop_footer
    %s18 = sadd.s32 1, %s14
  $region7: #{downsampling_block_forward.4} parent=0 // loop_footer_branch
    %13 = sbr.rel target = $region3
  $region8: #{downsampling_block_forward.4} parent=0 // loop_exit
    _

</llo_original>
